<compile_context>
chip_gen: v5e
topology: v5e:2x2
jax: 0.10.0
libtpu: 0.0.40
codegen_flags: <defaults>
</compile_context>

<pallas_src>
import functools

import jax
import jax.numpy as jnp
from jax.experimental import pallas as pl
from jax.experimental.pallas import tpu as pltpu

BN_EPS = 1e-5  # torch.nn.BatchNorm2d default


# ----------------------------- Pallas kernels ------------------------------

def conv_bias_kernel(w_ref, b_ref, p_ref, o_ref):
    """One (phase, M-tile) step of a phase-decomposed ConvTranspose2d:
    (C_out, K) @ (K, tm) + bias. bf16 inputs, f32 accumulate, M on lanes."""
    acc = jnp.dot(w_ref[...], p_ref[...], preferred_element_type=jnp.float32)
    o_ref[...] = acc + b_ref[...]


def conv_tanh_kernel(w_ref, b_ref, p_ref, o_ref):
    """Final layer: phase-decomposed ConvTranspose2d + bias + tanh (f32)."""
    acc = jnp.dot(w_ref[...], p_ref[...], preferred_element_type=jnp.float32)
    o_ref[...] = jnp.tanh(acc + b_ref[...])


def bn_relu_kernel(y_ref, scale_ref, shift_ref, o_ref):
    """BatchNorm (precomputed per-channel scale/shift from batch stats) + ReLU.
    f32 math, bf16 output (feeds the next layer's bf16 MXU matmul)."""
    y = y_ref[...]
    o_ref[...] = jnp.maximum(y * scale_ref[...] + shift_ref[...], 0.0).astype(o_ref.dtype)


# ------------------------------ Pallas wrappers -----------------------------

def _pick_tile(m):
    """Largest lane tile dividing M (multiple of 128), else the full extent."""
    if m % 128 != 0:
        return m
    for t in (2048, 1024, 512, 256, 128):
        if m % t == 0:
            return t
    return m


def conv_phase_matmul(w_mat, bias, patches, activation=None):
    """w_mat: (P, C_out, K) bf16; bias: (C_out, 1) f32; patches: (P, K, M) bf16.
    Returns (P, C_out, M) f32 (lane-dense: M on the lane axis)."""
    P, cout, K = w_mat.shape
    _, K2, M = patches.shape
    assert K2 == K
    tm = _pick_tile(M)
    kernel = conv_tanh_kernel if activation == "tanh" else conv_bias_kernel
    return pl.pallas_call(
        kernel,
        out_shape=jax.ShapeDtypeStruct((P, cout, M), jnp.float32),
        grid_spec=pltpu.PrefetchScalarGridSpec(
            num_scalar_prefetch=0,
            grid=(P, M // tm),
            in_specs=[
                pl.BlockSpec((None, cout, K), lambda ph, i: (ph, 0, 0)),
                pl.BlockSpec((cout, 1), lambda ph, i: (0, 0)),
                pl.BlockSpec((None, K, tm), lambda ph, i: (ph, 0, i)),
            ],
            out_specs=pl.BlockSpec((None, cout, tm), lambda ph, i: (ph, 0, i)),
        ),
        compiler_params=pltpu.CompilerParams(
            dimension_semantics=("parallel", "parallel")),
    )(w_mat, bias, patches)


def bn_relu(y, scale, shift):
    """y: (P, C, M) f32; scale/shift: (C, 1) f32. Returns (P, C, M) bf16."""
    P, C, M = y.shape
    tm = _pick_tile(M)
    return pl.pallas_call(
        bn_relu_kernel,
        out_shape=jax.ShapeDtypeStruct((P, C, M), jnp.bfloat16),
        grid_spec=pltpu.PrefetchScalarGridSpec(
            num_scalar_prefetch=0,
            grid=(P, M // tm),
            in_specs=[
                pl.BlockSpec((None, C, tm), lambda ph, i: (ph, 0, i)),
                pl.BlockSpec((C, 1), lambda ph, i: (0, 0)),
                pl.BlockSpec((C, 1), lambda ph, i: (0, 0)),
            ],
            out_specs=pl.BlockSpec((None, C, tm), lambda ph, i: (ph, 0, i)),
        ),
        compiler_params=pltpu.CompilerParams(
            dimension_semantics=("parallel", "parallel")),
    )(y, scale, shift)


# ------------------- ConvTranspose2d phase decomposition --------------------
# For output position oy:  oy + p = iy*s + ky.  Grouping outputs by residue
# c = oy mod s, every phase is a dense stride-1 conv with T = ceil((k-r)/s)
# taps per axis over the (slightly zero-padded) real activation — no dilation
# zeros are ever materialized or multiplied.

def phase_geometry(k, s, p):
    rs = [(c + p) % s for c in range(s)]        # kernel residue per output phase
    ds = [(c + p) // s for c in range(s)]       # input offset per output phase
    T = max((k - r + s - 1) // s for r in rs)   # taps per axis (padded to uniform)
    return rs, ds, T


def build_phase_weight_matrix(w, k, s, p):
    """w: PyTorch ConvTranspose2d weight (C_in, C_out, k, k) f32.
    Returns (P, C_out, K) bf16 with P = s*s phases, K = T*T*C_in."""
    cin, cout = int(w.shape[0]), int(w.shape[1])
    rs, _, T = phase_geometry(k, s, p)
    P, K = s * s, T * T * cin
    mat = jnp.zeros((P, cout, K), jnp.float32)
    for cy in range(s):
        for cx in range(s):
            ph = cy * s + cx
            for ty in range(T):
                for tx in range(T):
                    ky = rs[cy] + s * ty
                    kx = rs[cx] + s * tx
                    if ky >= k or kx >= k:      # padded dummy tap -> zero weight
                        continue
                    col = (ty * T + tx) * cin
                    mat = mat.at[ph, :, col:col + cin].set(jnp.transpose(w[:, :, ky, kx]))
    return mat.astype(jnp.bfloat16)


def build_phase_patches(a, k, s, p):
    """a: activation (C, N, H, W).  Returns patches (P, K, M) (same dtype as a)
    with K = T*T*C, M = N*Hp*Wp, plus the per-phase output geometry."""
    C, N, H, W = a.shape
    rs, ds, T = phase_geometry(k, s, p)
    Ho = (H - 1) * s - 2 * p + k
    Wo = (W - 1) * s - 2 * p + k
    assert Ho % s == 0 and Wo % s == 0, "phase decomposition needs k - s == 2*p"
    Hp, Wp = Ho // s, Wo // s
    L = max(max(0, T - 1 - d) for d in ds)
    Rh = max(max(0, Hp - 1 + d - (H - 1)) for d in ds)
    Rw = max(max(0, Wp - 1 + d - (W - 1)) for d in ds)
    a_pad = jnp.pad(a, ((0, 0), (0, 0), (L, Rh), (L, Rw)))
    phases = []
    for cy in range(s):
        for cx in range(s):
            taps = []
            for ty in range(T):
                for tx in range(T):
                    y0 = L + ds[cy] - ty
                    x0 = L + ds[cx] - tx
                    taps.append(a_pad[:, :, y0:y0 + Hp, x0:x0 + Wp])
            ph = jnp.stack(taps, axis=0)                      # (T*T, C, N, Hp, Wp)
            phases.append(ph.reshape(T * T * C, N * Hp * Wp))
    return jnp.stack(phases, axis=0), (N, Hp, Wp)             # (P, K, M)


def assemble_phases(y, N, Hp, Wp, s):
    """y: (s*s, C, N*Hp*Wp) -> (C, N, Hp*s, Wp*s); phase (cy,cx) -> (m*s+cy, l*s+cx)."""
    _, C, _ = y.shape
    y = y.reshape(s, s, C, N, Hp, Wp)
    y = jnp.transpose(y, (2, 3, 4, 0, 5, 1))                  # (C, N, Hp, s, Wp, s)
    return y.reshape(C, N, Hp * s, Wp * s)


# ------------------------------ Generator model -----------------------------

def make_layer_cfgs(latent_size, hidden_size):
    h = hidden_size
    return [
        dict(cin=latent_size, cout=h * 8, k=4, s=1, p=0, bn=True),
        dict(cin=h * 8,       cout=h * 4, k=4, s=2, p=1, bn=True),
        dict(cin=h * 4,       cout=h * 2, k=4, s=2, p=1, bn=True),
        dict(cin=h * 2,       cout=h,     k=4, s=2, p=1, bn=True),
        dict(cin=h,           cout=3,     k=5, s=3, p=1, bn=False),
    ]


def init_params(key, cfgs):
    params = []
    for cfg in cfgs:
        key, kw, kb = jax.random.split(key, 3)
        w = 0.02 * jax.random.normal(
            kw, (cfg["cin"], cfg["cout"], cfg["k"], cfg["k"]), jnp.float32)
        b = 0.02 * jax.random.normal(kb, (cfg["cout"], 1), jnp.float32)
        layer = {
            "w": build_phase_weight_matrix(w, cfg["k"], cfg["s"], cfg["p"]),  # hoisted
            "b": b,
        }
        if cfg["bn"]:
            layer["gamma"] = jnp.ones((cfg["cout"],), jnp.float32)
            layer["beta"] = jnp.zeros((cfg["cout"],), jnp.float32)
        params.append(layer)
    return params


def generator_forward(x_nchw, params, cfgs):
    # NCHW -> (C, N, H, W); bf16 activations feed the bf16 MXU matmuls.
    a = jnp.transpose(x_nchw, (1, 0, 2, 3)).astype(jnp.bfloat16)

    for cfg, layer in zip(cfgs, params):
        patches, (N, Hp, Wp) = build_phase_patches(a, cfg["k"], cfg["s"], cfg["p"])
        if cfg["bn"]:
            y = conv_phase_matmul(layer["w"], layer["b"], patches)   # (P, C, M) f32
            P, C, M = y.shape
            cnt = float(P * M)                 # == N * Ho * Wo (full batch stats)
            mean = jnp.sum(y, axis=(0, 2)) / cnt
            var = jnp.maximum(jnp.sum(y * y, axis=(0, 2)) / cnt - mean * mean, 0.0)
            inv = jax.lax.rsqrt(var + BN_EPS)
            scale = (layer["gamma"] * inv)[:, None]                  # (C, 1)
            shift = (layer["beta"] - mean * layer["gamma"] * inv)[:, None]
            y = bn_relu(y, scale, shift)                             # (P, C, M) bf16
        else:
            y = conv_phase_matmul(layer["w"], layer["b"], patches, activation="tanh")
        a = assemble_phases(y, N, Hp, Wp, cfg["s"])

    return jnp.transpose(a, (1, 0, 2, 3))                            # -> NCHW


# ---------------------------------- main -------------------------------------

if __name__ == "__main__":
    latent_size, hidden_size, batch = 16, 8, 2

    key = jax.random.PRNGKey(0)
    key, xkey = jax.random.split(key)
    x = jax.random.normal(xkey, (batch, latent_size, 1, 1), jnp.float32)

    cfgs = make_layer_cfgs(latent_size, hidden_size)
    params = init_params(key, cfgs)

    fwd = jax.jit(functools.partial(generator_forward, cfgs=cfgs))
    out = jax.block_until_ready(fwd(x, params))

    assert out.shape == (batch, 3, 96, 96), out.shape
    assert out.dtype == jnp.float32
    assert bool(jnp.all(jnp.isfinite(out)))
    assert bool(jnp.all(jnp.abs(out) <= 1.0))  # tanh output range
    print("KERNEL_OK")
</pallas_src>

<mosaic_0001>
module attributes {stable_mosaic.version = 11 : i64} {
  func.func @conv_bias_kernel(%arg0: i32, %arg1: i32, %arg2: memref<1x64x256xbf16, #tpu.memory_space<vmem>>, %arg3: memref<64x1xf32, #tpu.memory_space<vmem>>, %arg4: memref<1x256x32xbf16, #tpu.memory_space<vmem>>, %arg5: memref<1x64x32xf32, #tpu.memory_space<vmem>>) attributes {dimension_semantics = [#tpu.dimension_semantics<parallel>, #tpu.dimension_semantics<parallel>], iteration_bounds = array<i64: 1, 1>, scalar_prefetch = 0 : i64, scratch_operands = 0 : i64, tpu.core_type = #tpu.core_type<tc>, window_params = [{transform_indices = @transform_0, window_bounds = array<i64: 1, 64, 256>}, {pipeline_mode = #tpu.pipeline_mode<synchronous>, transform_indices = @transform_1, window_bounds = array<i64: 64, 1>}, {transform_indices = @transform_2, window_bounds = array<i64: 1, 256, 32>}, {transform_indices = @transform_3, window_bounds = array<i64: 1, 64, 32>}]} {
    %c0 = arith.constant 0 : index
    %c0_0 = arith.constant 0 : index
    %c0_1 = arith.constant 0 : index
    %0 = vector.load %arg2[%c0, %c0_0, %c0_1] : memref<1x64x256xbf16, #tpu.memory_space<vmem>>, vector<1x64x256xbf16>
    %1 = vector.shape_cast %0 : vector<1x64x256xbf16> to vector<64x256xbf16>
    %c0_2 = arith.constant 0 : index
    %c0_3 = arith.constant 0 : index
    %c0_4 = arith.constant 0 : index
    %2 = vector.load %arg4[%c0_2, %c0_3, %c0_4] : memref<1x256x32xbf16, #tpu.memory_space<vmem>>, vector<1x256x32xbf16>
    %3 = vector.shape_cast %2 : vector<1x256x32xbf16> to vector<256x32xbf16>
    %cst = arith.constant dense<0.000000e+00> : vector<64x32xf32>
    %4 = tpu.matmul %1, %3, %cst {dimension_numbers = #tpu.dot_dimension_numbers<[1], [0], [0], [1], [0, 0, 1, 1], [], []>} : vector<64x256xbf16>, vector<256x32xbf16>, vector<64x32xf32> -> vector<64x32xf32>
    %c0_5 = arith.constant 0 : index
    %c0_6 = arith.constant 0 : index
    %5 = vector.load %arg3[%c0_5, %c0_6] : memref<64x1xf32, #tpu.memory_space<vmem>>, vector<64x1xf32>
    %6 = vector.broadcast %5 : vector<64x1xf32> to vector<64x32xf32>
    %7 = arith.addf %4, %6 : vector<64x32xf32>
    %c0_7 = arith.constant 0 : index
    %c0_8 = arith.constant 0 : index
    %c0_9 = arith.constant 0 : index
    %8 = vector.load %arg5[%c0_7, %c0_8, %c0_9] : memref<1x64x32xf32, #tpu.memory_space<vmem>>, vector<1x64x32xf32>
    %9 = vector.shape_cast %8 : vector<1x64x32xf32> to vector<64x32xf32>
    %10 = vector.shape_cast %7 : vector<64x32xf32> to vector<1x64x32xf32>
    tpu.vector_store %arg5[%c0_7, %c0_8, %c0_9], %10 {strides = array<i32>} : memref<1x64x32xf32, #tpu.memory_space<vmem>>, vector<1x64x32xf32>,
    return
  }
  func.func @transform_0(%arg0: i32, %arg1: i32) -> (i32, i32, i32) {
    %c0_i32 = arith.constant 0 : i32
    %c0_i32_0 = arith.constant 0 : i32
    %c0_i32_1 = arith.constant 0 : i32
    return %arg0, %c0_i32, %c0_i32_0 : i32, i32, i32
  }
  func.func @transform_1(%arg0: i32, %arg1: i32) -> (i32, i32) {
    %c0_i32 = arith.constant 0 : i32
    %c0_i32_0 = arith.constant 0 : i32
    %c0_i32_1 = arith.constant 0 : i32
    return %c0_i32, %c0_i32_0 : i32, i32
  }
  func.func @transform_2(%arg0: i32, %arg1: i32) -> (i32, i32, i32) {
    %c0_i32 = arith.constant 0 : i32
    %c0_i32_0 = arith.constant 0 : i32
    return %arg0, %c0_i32, %arg1 : i32, i32, i32
  }
  func.func @transform_3(%arg0: i32, %arg1: i32) -> (i32, i32, i32) {
    %c0_i32 = arith.constant 0 : i32
    %c0_i32_0 = arith.constant 0 : i32
    return %arg0, %c0_i32, %arg1 : i32, i32, i32
  }
}

module attributes {stable_mosaic.version = 11 : i64} {
  func.func @bn_relu_kernel(%arg0: i32, %arg1: i32, %arg2: memref<1x64x32xf32, #tpu.memory_space<vmem>>, %arg3: memref<64x1xf32, #tpu.memory_space<vmem>>, %arg4: memref<64x1xf32, #tpu.memory_space<vmem>>, %arg5: memref<1x64x32xbf16, #tpu.memory_space<vmem>>) attributes {dimension_semantics = [#tpu.dimension_semantics<parallel>, #tpu.dimension_semantics<parallel>], iteration_bounds = array<i64: 1, 1>, scalar_prefetch = 0 : i64, scratch_operands = 0 : i64, tpu.core_type = #tpu.core_type<tc>, window_params = [{transform_indices = @transform_0, window_bounds = array<i64: 1, 64, 32>}, {pipeline_mode = #tpu.pipeline_mode<synchronous>, transform_indices = @transform_1, window_bounds = array<i64: 64, 1>}, {pipeline_mode = #tpu.pipeline_mode<synchronous>, transform_indices = @transform_2, window_bounds = array<i64: 64, 1>}, {transform_indices = @transform_3, window_bounds = array<i64: 1, 64, 32>}]} {
    %c0 = arith.constant 0 : index
    %c0_0 = arith.constant 0 : index
    %c0_1 = arith.constant 0 : index
    %0 = vector.load %arg2[%c0, %c0_0, %c0_1] : memref<1x64x32xf32, #tpu.memory_space<vmem>>, vector<1x64x32xf32>
    %1 = vector.shape_cast %0 : vector<1x64x32xf32> to vector<64x32xf32>
    %c0_2 = arith.constant 0 : index
    %c0_3 = arith.constant 0 : index
    %2 = vector.load %arg3[%c0_2, %c0_3] : memref<64x1xf32, #tpu.memory_space<vmem>>, vector<64x1xf32>
    %3 = vector.broadcast %2 : vector<64x1xf32> to vector<64x32xf32>
    %4 = arith.mulf %1, %3 : vector<64x32xf32>
    %c0_4 = arith.constant 0 : index
    %c0_5 = arith.constant 0 : index
    %5 = vector.load %arg4[%c0_4, %c0_5] : memref<64x1xf32, #tpu.memory_space<vmem>>, vector<64x1xf32>
    %6 = vector.broadcast %5 : vector<64x1xf32> to vector<64x32xf32>
    %7 = arith.addf %4, %6 : vector<64x32xf32>
    %cst = arith.constant 0.000000e+00 : f32
    %8 = vector.broadcast %cst : f32 to vector<64x32xf32>
    %9 = arith.maximumf %7, %8 : vector<64x32xf32>
    %10 = arith.truncf %9 : vector<64x32xf32> to vector<64x32xbf16>
    %c0_6 = arith.constant 0 : index
    %c0_7 = arith.constant 0 : index
    %c0_8 = arith.constant 0 : index
    %11 = vector.load %arg5[%c0_6, %c0_7, %c0_8] : memref<1x64x32xbf16, #tpu.memory_space<vmem>>, vector<1x64x32xbf16>
    %12 = vector.shape_cast %11 : vector<1x64x32xbf16> to vector<64x32xbf16>
    %13 = vector.shape_cast %10 : vector<64x32xbf16> to vector<1x64x32xbf16>
    tpu.vector_store %arg5[%c0_6, %c0_7, %c0_8], %13 {strides = array<i32>} : memref<1x64x32xbf16, #tpu.memory_space<vmem>>, vector<1x64x32xbf16>,
    return
  }
  func.func @transform_0(%arg0: i32, %arg1: i32) -> (i32, i32, i32) {
    %c0_i32 = arith.constant 0 : i32
    %c0_i32_0 = arith.constant 0 : i32
    return %arg0, %c0_i32, %arg1 : i32, i32, i32
  }
  func.func @transform_1(%arg0: i32, %arg1: i32) -> (i32, i32) {
    %c0_i32 = arith.constant 0 : i32
    %c0_i32_0 = arith.constant 0 : i32
    %c0_i32_1 = arith.constant 0 : i32
    return %c0_i32, %c0_i32_0 : i32, i32
  }
  func.func @transform_2(%arg0: i32, %arg1: i32) -> (i32, i32) {
    %c0_i32 = arith.constant 0 : i32
    %c0_i32_0 = arith.constant 0 : i32
    %c0_i32_1 = arith.constant 0 : i32
    return %c0_i32, %c0_i32_0 : i32, i32
  }
  func.func @transform_3(%arg0: i32, %arg1: i32) -> (i32, i32, i32) {
    %c0_i32 = arith.constant 0 : i32
    %c0_i32_0 = arith.constant 0 : i32
    return %arg0, %c0_i32, %arg1 : i32, i32, i32
  }
}

module attributes {stable_mosaic.version = 11 : i64} {
  func.func @conv_bias_kernel(%arg0: i32, %arg1: i32, %arg2: memref<1x32x256xbf16, #tpu.memory_space<vmem>>, %arg3: memref<32x1xf32, #tpu.memory_space<vmem>>, %arg4: memref<1x256x32xbf16, #tpu.memory_space<vmem>>, %arg5: memref<1x32x32xf32, #tpu.memory_space<vmem>>) attributes {dimension_semantics = [#tpu.dimension_semantics<parallel>, #tpu.dimension_semantics<parallel>], iteration_bounds = array<i64: 4, 1>, scalar_prefetch = 0 : i64, scratch_operands = 0 : i64, tpu.core_type = #tpu.core_type<tc>, window_params = [{transform_indices = @transform_0, window_bounds = array<i64: 1, 32, 256>}, {pipeline_mode = #tpu.pipeline_mode<synchronous>, transform_indices = @transform_1, window_bounds = array<i64: 32, 1>}, {transform_indices = @transform_2, window_bounds = array<i64: 1, 256, 32>}, {transform_indices = @transform_3, window_bounds = array<i64: 1, 32, 32>}]} {
    %c0 = arith.constant 0 : index
    %c0_0 = arith.constant 0 : index
    %c0_1 = arith.constant 0 : index
    %0 = vector.load %arg2[%c0, %c0_0, %c0_1] : memref<1x32x256xbf16, #tpu.memory_space<vmem>>, vector<1x32x256xbf16>
    %1 = vector.shape_cast %0 : vector<1x32x256xbf16> to vector<32x256xbf16>
    %c0_2 = arith.constant 0 : index
    %c0_3 = arith.constant 0 : index
    %c0_4 = arith.constant 0 : index
    %2 = vector.load %arg4[%c0_2, %c0_3, %c0_4] : memref<1x256x32xbf16, #tpu.memory_space<vmem>>, vector<1x256x32xbf16>
    %3 = vector.shape_cast %2 : vector<1x256x32xbf16> to vector<256x32xbf16>
    %cst = arith.constant dense<0.000000e+00> : vector<32x32xf32>
    %4 = tpu.matmul %1, %3, %cst {dimension_numbers = #tpu.dot_dimension_numbers<[1], [0], [0], [1], [0, 0, 1, 1], [], []>} : vector<32x256xbf16>, vector<256x32xbf16>, vector<32x32xf32> -> vector<32x32xf32>
    %c0_5 = arith.constant 0 : index
    %c0_6 = arith.constant 0 : index
    %5 = vector.load %arg3[%c0_5, %c0_6] : memref<32x1xf32, #tpu.memory_space<vmem>>, vector<32x1xf32>
    %6 = vector.broadcast %5 : vector<32x1xf32> to vector<32x32xf32>
    %7 = arith.addf %4, %6 : vector<32x32xf32>
    %c0_7 = arith.constant 0 : index
    %c0_8 = arith.constant 0 : index
    %c0_9 = arith.constant 0 : index
    %8 = vector.load %arg5[%c0_7, %c0_8, %c0_9] : memref<1x32x32xf32, #tpu.memory_space<vmem>>, vector<1x32x32xf32>
    %9 = vector.shape_cast %8 : vector<1x32x32xf32> to vector<32x32xf32>
    %10 = vector.shape_cast %7 : vector<32x32xf32> to vector<1x32x32xf32>
    tpu.vector_store %arg5[%c0_7, %c0_8, %c0_9], %10 {strides = array<i32>} : memref<1x32x32xf32, #tpu.memory_space<vmem>>, vector<1x32x32xf32>,
    return
  }
  func.func @transform_0(%arg0: i32, %arg1: i32) -> (i32, i32, i32) {
    %c0_i32 = arith.constant 0 : i32
    %c0_i32_0 = arith.constant 0 : i32
    %c0_i32_1 = arith.constant 0 : i32
    return %arg0, %c0_i32, %c0_i32_0 : i32, i32, i32
  }
  func.func @transform_1(%arg0: i32, %arg1: i32) -> (i32, i32) {
    %c0_i32 = arith.constant 0 : i32
    %c0_i32_0 = arith.constant 0 : i32
    %c0_i32_1 = arith.constant 0 : i32
    return %c0_i32, %c0_i32_0 : i32, i32
  }
  func.func @transform_2(%arg0: i32, %arg1: i32) -> (i32, i32, i32) {
    %c0_i32 = arith.constant 0 : i32
    %c0_i32_0 = arith.constant 0 : i32
    return %arg0, %c0_i32, %arg1 : i32, i32, i32
  }
  func.func @transform_3(%arg0: i32, %arg1: i32) -> (i32, i32, i32) {
    %c0_i32 = arith.constant 0 : i32
    %c0_i32_0 = arith.constant 0 : i32
    return %arg0, %c0_i32, %arg1 : i32, i32, i32
  }
}

module attributes {stable_mosaic.version = 11 : i64} {
  func.func @bn_relu_kernel(%arg0: i32, %arg1: i32, %arg2: memref<1x32x32xf32, #tpu.memory_space<vmem>>, %arg3: memref<32x1xf32, #tpu.memory_space<vmem>>, %arg4: memref<32x1xf32, #tpu.memory_space<vmem>>, %arg5: memref<1x32x32xbf16, #tpu.memory_space<vmem>>) attributes {dimension_semantics = [#tpu.dimension_semantics<parallel>, #tpu.dimension_semantics<parallel>], iteration_bounds = array<i64: 4, 1>, scalar_prefetch = 0 : i64, scratch_operands = 0 : i64, tpu.core_type = #tpu.core_type<tc>, window_params = [{transform_indices = @transform_0, window_bounds = array<i64: 1, 32, 32>}, {pipeline_mode = #tpu.pipeline_mode<synchronous>, transform_indices = @transform_1, window_bounds = array<i64: 32, 1>}, {pipeline_mode = #tpu.pipeline_mode<synchronous>, transform_indices = @transform_2, window_bounds = array<i64: 32, 1>}, {transform_indices = @transform_3, window_bounds = array<i64: 1, 32, 32>}]} {
    %c0 = arith.constant 0 : index
    %c0_0 = arith.constant 0 : index
    %c0_1 = arith.constant 0 : index
    %0 = vector.load %arg2[%c0, %c0_0, %c0_1] : memref<1x32x32xf32, #tpu.memory_space<vmem>>, vector<1x32x32xf32>
    %1 = vector.shape_cast %0 : vector<1x32x32xf32> to vector<32x32xf32>
    %c0_2 = arith.constant 0 : index
    %c0_3 = arith.constant 0 : index
    %2 = vector.load %arg3[%c0_2, %c0_3] : memref<32x1xf32, #tpu.memory_space<vmem>>, vector<32x1xf32>
    %3 = vector.broadcast %2 : vector<32x1xf32> to vector<32x32xf32>
    %4 = arith.mulf %1, %3 : vector<32x32xf32>
    %c0_4 = arith.constant 0 : index
    %c0_5 = arith.constant 0 : index
    %5 = vector.load %arg4[%c0_4, %c0_5] : memref<32x1xf32, #tpu.memory_space<vmem>>, vector<32x1xf32>
    %6 = vector.broadcast %5 : vector<32x1xf32> to vector<32x32xf32>
    %7 = arith.addf %4, %6 : vector<32x32xf32>
    %cst = arith.constant 0.000000e+00 : f32
    %8 = vector.broadcast %cst : f32 to vector<32x32xf32>
    %9 = arith.maximumf %7, %8 : vector<32x32xf32>
    %10 = arith.truncf %9 : vector<32x32xf32> to vector<32x32xbf16>
    %c0_6 = arith.constant 0 : index
    %c0_7 = arith.constant 0 : index
    %c0_8 = arith.constant 0 : index
    %11 = vector.load %arg5[%c0_6, %c0_7, %c0_8] : memref<1x32x32xbf16, #tpu.memory_space<vmem>>, vector<1x32x32xbf16>
    %12 = vector.shape_cast %11 : vector<1x32x32xbf16> to vector<32x32xbf16>
    %13 = vector.shape_cast %10 : vector<32x32xbf16> to vector<1x32x32xbf16>
    tpu.vector_store %arg5[%c0_6, %c0_7, %c0_8], %13 {strides = array<i32>} : memref<1x32x32xbf16, #tpu.memory_space<vmem>>, vector<1x32x32xbf16>,
    return
  }
  func.func @transform_0(%arg0: i32, %arg1: i32) -> (i32, i32, i32) {
    %c0_i32 = arith.constant 0 : i32
    %c0_i32_0 = arith.constant 0 : i32
    return %arg0, %c0_i32, %arg1 : i32, i32, i32
  }
  func.func @transform_1(%arg0: i32, %arg1: i32) -> (i32, i32) {
    %c0_i32 = arith.constant 0 : i32
    %c0_i32_0 = arith.constant 0 : i32
    %c0_i32_1 = arith.constant 0 : i32
    return %c0_i32, %c0_i32_0 : i32, i32
  }
  func.func @transform_2(%arg0: i32, %arg1: i32) -> (i32, i32) {
    %c0_i32 = arith.constant 0 : i32
    %c0_i32_0 = arith.constant 0 : i32
    %c0_i32_1 = arith.constant 0 : i32
    return %c0_i32, %c0_i32_0 : i32, i32
  }
  func.func @transform_3(%arg0: i32, %arg1: i32) -> (i32, i32, i32) {
    %c0_i32 = arith.constant 0 : i32
    %c0_i32_0 = arith.constant 0 : i32
    return %arg0, %c0_i32, %arg1 : i32, i32, i32
  }
}

module attributes {stable_mosaic.version = 11 : i64} {
  func.func @conv_bias_kernel(%arg0: i32, %arg1: i32, %arg2: memref<1x16x128xbf16, #tpu.memory_space<vmem>>, %arg3: memref<16x1xf32, #tpu.memory_space<vmem>>, %arg4: memref<1x128x128xbf16, #tpu.memory_space<vmem>>, %arg5: memref<1x16x128xf32, #tpu.memory_space<vmem>>) attributes {dimension_semantics = [#tpu.dimension_semantics<parallel>, #tpu.dimension_semantics<parallel>], iteration_bounds = array<i64: 4, 1>, scalar_prefetch = 0 : i64, scratch_operands = 0 : i64, tpu.core_type = #tpu.core_type<tc>, window_params = [{transform_indices = @transform_0, window_bounds = array<i64: 1, 16, 128>}, {pipeline_mode = #tpu.pipeline_mode<synchronous>, transform_indices = @transform_1, window_bounds = array<i64: 16, 1>}, {transform_indices = @transform_2, window_bounds = array<i64: 1, 128, 128>}, {transform_indices = @transform_3, window_bounds = array<i64: 1, 16, 128>}]} {
    %c0 = arith.constant 0 : index
    %c0_0 = arith.constant 0 : index
    %c0_1 = arith.constant 0 : index
    %0 = vector.load %arg2[%c0, %c0_0, %c0_1] : memref<1x16x128xbf16, #tpu.memory_space<vmem>>, vector<1x16x128xbf16>
    %1 = vector.shape_cast %0 : vector<1x16x128xbf16> to vector<16x128xbf16>
    %c0_2 = arith.constant 0 : index
    %c0_3 = arith.constant 0 : index
    %c0_4 = arith.constant 0 : index
    %2 = vector.load %arg4[%c0_2, %c0_3, %c0_4] : memref<1x128x128xbf16, #tpu.memory_space<vmem>>, vector<1x128x128xbf16>
    %3 = vector.shape_cast %2 : vector<1x128x128xbf16> to vector<128x128xbf16>
    %cst = arith.constant dense<0.000000e+00> : vector<16x128xf32>
    %4 = tpu.matmul %1, %3, %cst {dimension_numbers = #tpu.dot_dimension_numbers<[1], [0], [0], [1], [0, 0, 1, 1], [], []>} : vector<16x128xbf16>, vector<128x128xbf16>, vector<16x128xf32> -> vector<16x128xf32>
    %c0_5 = arith.constant 0 : index
    %c0_6 = arith.constant 0 : index
    %5 = vector.load %arg3[%c0_5, %c0_6] : memref<16x1xf32, #tpu.memory_space<vmem>>, vector<16x1xf32>
    %6 = vector.broadcast %5 : vector<16x1xf32> to vector<16x128xf32>
    %7 = arith.addf %4, %6 : vector<16x128xf32>
    %c0_7 = arith.constant 0 : index
    %c0_8 = arith.constant 0 : index
    %c0_9 = arith.constant 0 : index
    %8 = vector.load %arg5[%c0_7, %c0_8, %c0_9] : memref<1x16x128xf32, #tpu.memory_space<vmem>>, vector<1x16x128xf32>
    %9 = vector.shape_cast %8 : vector<1x16x128xf32> to vector<16x128xf32>
    %10 = vector.shape_cast %7 : vector<16x128xf32> to vector<1x16x128xf32>
    tpu.vector_store %arg5[%c0_7, %c0_8, %c0_9], %10 {strides = array<i32>} : memref<1x16x128xf32, #tpu.memory_space<vmem>>, vector<1x16x128xf32>,
    return
  }
  func.func @transform_0(%arg0: i32, %arg1: i32) -> (i32, i32, i32) {
    %c0_i32 = arith.constant 0 : i32
    %c0_i32_0 = arith.constant 0 : i32
    %c0_i32_1 = arith.constant 0 : i32
    return %arg0, %c0_i32, %c0_i32_0 : i32, i32, i32
  }
  func.func @transform_1(%arg0: i32, %arg1: i32) -> (i32, i32) {
    %c0_i32 = arith.constant 0 : i32
    %c0_i32_0 = arith.constant 0 : i32
    %c0_i32_1 = arith.constant 0 : i32
    return %c0_i32, %c0_i32_0 : i32, i32
  }
  func.func @transform_2(%arg0: i32, %arg1: i32) -> (i32, i32, i32) {
    %c0_i32 = arith.constant 0 : i32
    %c0_i32_0 = arith.constant 0 : i32
    return %arg0, %c0_i32, %arg1 : i32, i32, i32
  }
  func.func @transform_3(%arg0: i32, %arg1: i32) -> (i32, i32, i32) {
    %c0_i32 = arith.constant 0 : i32
    %c0_i32_0 = arith.constant 0 : i32
    return %arg0, %c0_i32, %arg1 : i32, i32, i32
  }
}

module attributes {stable_mosaic.version = 11 : i64} {
  func.func @bn_relu_kernel(%arg0: i32, %arg1: i32, %arg2: memref<1x16x128xf32, #tpu.memory_space<vmem>>, %arg3: memref<16x1xf32, #tpu.memory_space<vmem>>, %arg4: memref<16x1xf32, #tpu.memory_space<vmem>>, %arg5: memref<1x16x128xbf16, #tpu.memory_space<vmem>>) attributes {dimension_semantics = [#tpu.dimension_semantics<parallel>, #tpu.dimension_semantics<parallel>], iteration_bounds = array<i64: 4, 1>, scalar_prefetch = 0 : i64, scratch_operands = 0 : i64, tpu.core_type = #tpu.core_type<tc>, window_params = [{transform_indices = @transform_0, window_bounds = array<i64: 1, 16, 128>}, {pipeline_mode = #tpu.pipeline_mode<synchronous>, transform_indices = @transform_1, window_bounds = array<i64: 16, 1>}, {pipeline_mode = #tpu.pipeline_mode<synchronous>, transform_indices = @transform_2, window_bounds = array<i64: 16, 1>}, {transform_indices = @transform_3, window_bounds = array<i64: 1, 16, 128>}]} {
    %c0 = arith.constant 0 : index
    %c0_0 = arith.constant 0 : index
    %c0_1 = arith.constant 0 : index
    %0 = vector.load %arg2[%c0, %c0_0, %c0_1] : memref<1x16x128xf32, #tpu.memory_space<vmem>>, vector<1x16x128xf32>
    %1 = vector.shape_cast %0 : vector<1x16x128xf32> to vector<16x128xf32>
    %c0_2 = arith.constant 0 : index
    %c0_3 = arith.constant 0 : index
    %2 = vector.load %arg3[%c0_2, %c0_3] : memref<16x1xf32, #tpu.memory_space<vmem>>, vector<16x1xf32>
    %3 = vector.broadcast %2 : vector<16x1xf32> to vector<16x128xf32>
    %4 = arith.mulf %1, %3 : vector<16x128xf32>
    %c0_4 = arith.constant 0 : index
    %c0_5 = arith.constant 0 : index
    %5 = vector.load %arg4[%c0_4, %c0_5] : memref<16x1xf32, #tpu.memory_space<vmem>>, vector<16x1xf32>
    %6 = vector.broadcast %5 : vector<16x1xf32> to vector<16x128xf32>
    %7 = arith.addf %4, %6 : vector<16x128xf32>
    %cst = arith.constant 0.000000e+00 : f32
    %8 = vector.broadcast %cst : f32 to vector<16x128xf32>
    %9 = arith.maximumf %7, %8 : vector<16x128xf32>
    %10 = arith.truncf %9 : vector<16x128xf32> to vector<16x128xbf16>
    %c0_6 = arith.constant 0 : index
    %c0_7 = arith.constant 0 : index
    %c0_8 = arith.constant 0 : index
    %11 = vector.load %arg5[%c0_6, %c0_7, %c0_8] : memref<1x16x128xbf16, #tpu.memory_space<vmem>>, vector<1x16x128xbf16>
    %12 = vector.shape_cast %11 : vector<1x16x128xbf16> to vector<16x128xbf16>
    %13 = vector.shape_cast %10 : vector<16x128xbf16> to vector<1x16x128xbf16>
    tpu.vector_store %arg5[%c0_6, %c0_7, %c0_8], %13 {strides = array<i32>} : memref<1x16x128xbf16, #tpu.memory_space<vmem>>, vector<1x16x128xbf16>,
    return
  }
  func.func @transform_0(%arg0: i32, %arg1: i32) -> (i32, i32, i32) {
    %c0_i32 = arith.constant 0 : i32
    %c0_i32_0 = arith.constant 0 : i32
    return %arg0, %c0_i32, %arg1 : i32, i32, i32
  }
  func.func @transform_1(%arg0: i32, %arg1: i32) -> (i32, i32) {
    %c0_i32 = arith.constant 0 : i32
    %c0_i32_0 = arith.constant 0 : i32
    %c0_i32_1 = arith.constant 0 : i32
    return %c0_i32, %c0_i32_0 : i32, i32
  }
  func.func @transform_2(%arg0: i32, %arg1: i32) -> (i32, i32) {
    %c0_i32 = arith.constant 0 : i32
    %c0_i32_0 = arith.constant 0 : i32
    %c0_i32_1 = arith.constant 0 : i32
    return %c0_i32, %c0_i32_0 : i32, i32
  }
  func.func @transform_3(%arg0: i32, %arg1: i32) -> (i32, i32, i32) {
    %c0_i32 = arith.constant 0 : i32
    %c0_i32_0 = arith.constant 0 : i32
    return %arg0, %c0_i32, %arg1 : i32, i32, i32
  }
}

module attributes {stable_mosaic.version = 11 : i64} {
  func.func @conv_bias_kernel(%arg0: i32, %arg1: i32, %arg2: memref<1x8x64xbf16, #tpu.memory_space<vmem>>, %arg3: memref<8x1xf32, #tpu.memory_space<vmem>>, %arg4: memref<1x64x512xbf16, #tpu.memory_space<vmem>>, %arg5: memref<1x8x512xf32, #tpu.memory_space<vmem>>) attributes {dimension_semantics = [#tpu.dimension_semantics<parallel>, #tpu.dimension_semantics<parallel>], iteration_bounds = array<i64: 4, 1>, scalar_prefetch = 0 : i64, scratch_operands = 0 : i64, tpu.core_type = #tpu.core_type<tc>, window_params = [{transform_indices = @transform_0, window_bounds = array<i64: 1, 8, 64>}, {pipeline_mode = #tpu.pipeline_mode<synchronous>, transform_indices = @transform_1, window_bounds = array<i64: 8, 1>}, {transform_indices = @transform_2, window_bounds = array<i64: 1, 64, 512>}, {transform_indices = @transform_3, window_bounds = array<i64: 1, 8, 512>}]} {
    %c0 = arith.constant 0 : index
    %c0_0 = arith.constant 0 : index
    %c0_1 = arith.constant 0 : index
    %0 = vector.load %arg2[%c0, %c0_0, %c0_1] : memref<1x8x64xbf16, #tpu.memory_space<vmem>>, vector<1x8x64xbf16>
    %1 = vector.shape_cast %0 : vector<1x8x64xbf16> to vector<8x64xbf16>
    %c0_2 = arith.constant 0 : index
    %c0_3 = arith.constant 0 : index
    %c0_4 = arith.constant 0 : index
    %2 = vector.load %arg4[%c0_2, %c0_3, %c0_4] : memref<1x64x512xbf16, #tpu.memory_space<vmem>>, vector<1x64x512xbf16>
    %3 = vector.shape_cast %2 : vector<1x64x512xbf16> to vector<64x512xbf16>
    %cst = arith.constant dense<0.000000e+00> : vector<8x512xf32>
    %4 = tpu.matmul %1, %3, %cst {dimension_numbers = #tpu.dot_dimension_numbers<[1], [0], [0], [1], [0, 0, 1, 1], [], []>} : vector<8x64xbf16>, vector<64x512xbf16>, vector<8x512xf32> -> vector<8x512xf32>
    %c0_5 = arith.constant 0 : index
    %c0_6 = arith.constant 0 : index
    %5 = vector.load %arg3[%c0_5, %c0_6] : memref<8x1xf32, #tpu.memory_space<vmem>>, vector<8x1xf32>
    %6 = vector.broadcast %5 : vector<8x1xf32> to vector<8x512xf32>
    %7 = arith.addf %4, %6 : vector<8x512xf32>
    %c0_7 = arith.constant 0 : index
    %c0_8 = arith.constant 0 : index
    %c0_9 = arith.constant 0 : index
    %8 = vector.load %arg5[%c0_7, %c0_8, %c0_9] : memref<1x8x512xf32, #tpu.memory_space<vmem>>, vector<1x8x512xf32>
    %9 = vector.shape_cast %8 : vector<1x8x512xf32> to vector<8x512xf32>
    %10 = vector.shape_cast %7 : vector<8x512xf32> to vector<1x8x512xf32>
    tpu.vector_store %arg5[%c0_7, %c0_8, %c0_9], %10 {strides = array<i32>} : memref<1x8x512xf32, #tpu.memory_space<vmem>>, vector<1x8x512xf32>,
    return
  }
  func.func @transform_0(%arg0: i32, %arg1: i32) -> (i32, i32, i32) {
    %c0_i32 = arith.constant 0 : i32
    %c0_i32_0 = arith.constant 0 : i32
    %c0_i32_1 = arith.constant 0 : i32
    return %arg0, %c0_i32, %c0_i32_0 : i32, i32, i32
  }
  func.func @transform_1(%arg0: i32, %arg1: i32) -> (i32, i32) {
    %c0_i32 = arith.constant 0 : i32
    %c0_i32_0 = arith.constant 0 : i32
    %c0_i32_1 = arith.constant 0 : i32
    return %c0_i32, %c0_i32_0 : i32, i32
  }
  func.func @transform_2(%arg0: i32, %arg1: i32) -> (i32, i32, i32) {
    %c0_i32 = arith.constant 0 : i32
    %c0_i32_0 = arith.constant 0 : i32
    return %arg0, %c0_i32, %arg1 : i32, i32, i32
  }
  func.func @transform_3(%arg0: i32, %arg1: i32) -> (i32, i32, i32) {
    %c0_i32 = arith.constant 0 : i32
    %c0_i32_0 = arith.constant 0 : i32
    return %arg0, %c0_i32, %arg1 : i32, i32, i32
  }
}

module attributes {stable_mosaic.version = 11 : i64} {
  func.func @bn_relu_kernel(%arg0: i32, %arg1: i32, %arg2: memref<1x8x512xf32, #tpu.memory_space<vmem>>, %arg3: memref<8x1xf32, #tpu.memory_space<vmem>>, %arg4: memref<8x1xf32, #tpu.memory_space<vmem>>, %arg5: memref<1x8x512xbf16, #tpu.memory_space<vmem>>) attributes {dimension_semantics = [#tpu.dimension_semantics<parallel>, #tpu.dimension_semantics<parallel>], iteration_bounds = array<i64: 4, 1>, scalar_prefetch = 0 : i64, scratch_operands = 0 : i64, tpu.core_type = #tpu.core_type<tc>, window_params = [{transform_indices = @transform_0, window_bounds = array<i64: 1, 8, 512>}, {pipeline_mode = #tpu.pipeline_mode<synchronous>, transform_indices = @transform_1, window_bounds = array<i64: 8, 1>}, {pipeline_mode = #tpu.pipeline_mode<synchronous>, transform_indices = @transform_2, window_bounds = array<i64: 8, 1>}, {transform_indices = @transform_3, window_bounds = array<i64: 1, 8, 512>}]} {
    %c0 = arith.constant 0 : index
    %c0_0 = arith.constant 0 : index
    %c0_1 = arith.constant 0 : index
    %0 = vector.load %arg2[%c0, %c0_0, %c0_1] : memref<1x8x512xf32, #tpu.memory_space<vmem>>, vector<1x8x512xf32>
    %1 = vector.shape_cast %0 : vector<1x8x512xf32> to vector<8x512xf32>
    %c0_2 = arith.constant 0 : index
    %c0_3 = arith.constant 0 : index
    %2 = vector.load %arg3[%c0_2, %c0_3] : memref<8x1xf32, #tpu.memory_space<vmem>>, vector<8x1xf32>
    %3 = vector.broadcast %2 : vector<8x1xf32> to vector<8x512xf32>
    %4 = arith.mulf %1, %3 : vector<8x512xf32>
    %c0_4 = arith.constant 0 : index
    %c0_5 = arith.constant 0 : index
    %5 = vector.load %arg4[%c0_4, %c0_5] : memref<8x1xf32, #tpu.memory_space<vmem>>, vector<8x1xf32>
    %6 = vector.broadcast %5 : vector<8x1xf32> to vector<8x512xf32>
    %7 = arith.addf %4, %6 : vector<8x512xf32>
    %cst = arith.constant 0.000000e+00 : f32
    %8 = vector.broadcast %cst : f32 to vector<8x512xf32>
    %9 = arith.maximumf %7, %8 : vector<8x512xf32>
    %10 = arith.truncf %9 : vector<8x512xf32> to vector<8x512xbf16>
    %c0_6 = arith.constant 0 : index
    %c0_7 = arith.constant 0 : index
    %c0_8 = arith.constant 0 : index
    %11 = vector.load %arg5[%c0_6, %c0_7, %c0_8] : memref<1x8x512xbf16, #tpu.memory_space<vmem>>, vector<1x8x512xbf16>
    %12 = vector.shape_cast %11 : vector<1x8x512xbf16> to vector<8x512xbf16>
    %13 = vector.shape_cast %10 : vector<8x512xbf16> to vector<1x8x512xbf16>
    tpu.vector_store %arg5[%c0_6, %c0_7, %c0_8], %13 {strides = array<i32>} : memref<1x8x512xbf16, #tpu.memory_space<vmem>>, vector<1x8x512xbf16>,
    return
  }
  func.func @transform_0(%arg0: i32, %arg1: i32) -> (i32, i32, i32) {
    %c0_i32 = arith.constant 0 : i32
    %c0_i32_0 = arith.constant 0 : i32
    return %arg0, %c0_i32, %arg1 : i32, i32, i32
  }
  func.func @transform_1(%arg0: i32, %arg1: i32) -> (i32, i32) {
    %c0_i32 = arith.constant 0 : i32
    %c0_i32_0 = arith.constant 0 : i32
    %c0_i32_1 = arith.constant 0 : i32
    return %c0_i32, %c0_i32_0 : i32, i32
  }
  func.func @transform_2(%arg0: i32, %arg1: i32) -> (i32, i32) {
    %c0_i32 = arith.constant 0 : i32
    %c0_i32_0 = arith.constant 0 : i32
    %c0_i32_1 = arith.constant 0 : i32
    return %c0_i32, %c0_i32_0 : i32, i32
  }
  func.func @transform_3(%arg0: i32, %arg1: i32) -> (i32, i32, i32) {
    %c0_i32 = arith.constant 0 : i32
    %c0_i32_0 = arith.constant 0 : i32
    return %arg0, %c0_i32, %arg1 : i32, i32, i32
  }
}

module attributes {stable_mosaic.version = 11 : i64} {
  func.func @conv_tanh_kernel(%arg0: i32, %arg1: i32, %arg2: memref<1x3x32xbf16, #tpu.memory_space<vmem>>, %arg3: memref<3x1xf32, #tpu.memory_space<vmem>>, %arg4: memref<1x32x2048xbf16, #tpu.memory_space<vmem>>, %arg5: memref<1x3x2048xf32, #tpu.memory_space<vmem>>) attributes {dimension_semantics = [#tpu.dimension_semantics<parallel>, #tpu.dimension_semantics<parallel>], iteration_bounds = array<i64: 9, 1>, scalar_prefetch = 0 : i64, scratch_operands = 0 : i64, tpu.core_type = #tpu.core_type<tc>, window_params = [{transform_indices = @transform_0, window_bounds = array<i64: 1, 3, 32>}, {pipeline_mode = #tpu.pipeline_mode<synchronous>, transform_indices = @transform_1, window_bounds = array<i64: 3, 1>}, {transform_indices = @transform_2, window_bounds = array<i64: 1, 32, 2048>}, {transform_indices = @transform_3, window_bounds = array<i64: 1, 3, 2048>}]} {
    %c0 = arith.constant 0 : index
    %c0_0 = arith.constant 0 : index
    %c0_1 = arith.constant 0 : index
    %0 = vector.load %arg2[%c0, %c0_0, %c0_1] : memref<1x3x32xbf16, #tpu.memory_space<vmem>>, vector<1x3x32xbf16>
    %1 = vector.shape_cast %0 : vector<1x3x32xbf16> to vector<3x32xbf16>
    %c0_2 = arith.constant 0 : index
    %c0_3 = arith.constant 0 : index
    %c0_4 = arith.constant 0 : index
    %2 = vector.load %arg4[%c0_2, %c0_3, %c0_4] : memref<1x32x2048xbf16, #tpu.memory_space<vmem>>, vector<1x32x2048xbf16>
    %3 = vector.shape_cast %2 : vector<1x32x2048xbf16> to vector<32x2048xbf16>
    %cst = arith.constant dense<0.000000e+00> : vector<3x2048xf32>
    %4 = tpu.matmul %1, %3, %cst {dimension_numbers = #tpu.dot_dimension_numbers<[1], [0], [0], [1], [0, 0, 1, 1], [], []>} : vector<3x32xbf16>, vector<32x2048xbf16>, vector<3x2048xf32> -> vector<3x2048xf32>
    %c0_5 = arith.constant 0 : index
    %c0_6 = arith.constant 0 : index
    %5 = vector.load %arg3[%c0_5, %c0_6] : memref<3x1xf32, #tpu.memory_space<vmem>>, vector<3x1xf32>
    %6 = vector.broadcast %5 : vector<3x1xf32> to vector<3x2048xf32>
    %7 = arith.addf %4, %6 : vector<3x2048xf32>
    %8 = math.tanh %7 : vector<3x2048xf32>
    %c0_7 = arith.constant 0 : index
    %c0_8 = arith.constant 0 : index
    %c0_9 = arith.constant 0 : index
    %9 = vector.load %arg5[%c0_7, %c0_8, %c0_9] : memref<1x3x2048xf32, #tpu.memory_space<vmem>>, vector<1x3x2048xf32>
    %10 = vector.shape_cast %9 : vector<1x3x2048xf32> to vector<3x2048xf32>
    %11 = vector.shape_cast %8 : vector<3x2048xf32> to vector<1x3x2048xf32>
    tpu.vector_store %arg5[%c0_7, %c0_8, %c0_9], %11 {strides = array<i32>} : memref<1x3x2048xf32, #tpu.memory_space<vmem>>, vector<1x3x2048xf32>,
    return
  }
  func.func @transform_0(%arg0: i32, %arg1: i32) -> (i32, i32, i32) {
    %c0_i32 = arith.constant 0 : i32
    %c0_i32_0 = arith.constant 0 : i32
    %c0_i32_1 = arith.constant 0 : i32
    return %arg0, %c0_i32, %c0_i32_0 : i32, i32, i32
  }
  func.func @transform_1(%arg0: i32, %arg1: i32) -> (i32, i32) {
    %c0_i32 = arith.constant 0 : i32
    %c0_i32_0 = arith.constant 0 : i32
    %c0_i32_1 = arith.constant 0 : i32
    return %c0_i32, %c0_i32_0 : i32, i32
  }
  func.func @transform_2(%arg0: i32, %arg1: i32) -> (i32, i32, i32) {
    %c0_i32 = arith.constant 0 : i32
    %c0_i32_0 = arith.constant 0 : i32
    return %arg0, %c0_i32, %arg1 : i32, i32, i32
  }
  func.func @transform_3(%arg0: i32, %arg1: i32) -> (i32, i32, i32) {
    %c0_i32 = arith.constant 0 : i32
    %c0_i32_0 = arith.constant 0 : i32
    return %arg0, %c0_i32, %arg1 : i32, i32, i32
  }
}

</mosaic_0001>

<llo_original>
// kernel: generator_forward.10
$region0: #{generator_forward.10}
  #allocation0 [shape = 'u32[]', space=smem, size = 0x4, offset = 0x4, fixed_abs, tag = 'smem constant byte address 0x4 - core index']
  #allocation1 [shape = 'u32[72,128]{1,0:T(1,128)}', space=vmem, size = 0x9000, scoped, tag = 'internal scratch']
  %s0 = inlined_call_operand.vmem [shape: f32[1,64,32], index: 0, kind: input, shape index: {}]
  %s1 = inlined_call_operand.vmem [shape: f32[64,1], index: 1, kind: input, shape index: {}]
  %s2 = inlined_call_operand.vmem [shape: f32[64,1], index: 2, kind: input, shape index: {}]
  %s3 = inlined_call_operand.vmem [shape: bf16[1,64,32], index: 3, kind: output, shape index: {}]
  %s4 = sld [smem:[#allocation0]]
  $region22: #{generator_forward.10} parent=0
    _
  %s6 = ssub.s32 1, %s4
  %s7 = scalar_select 0, %s6, %s4
  // Predicated region
  $region2: #{generator_forward.10} parent=0 // pred_check
    _
  $region3: #{generator_forward.10} parent=0 // pred_check_branch
    %9 = sbr.rel (0) target = $region5
  $region4: #{generator_forward.10} parent=0 // pred_region
    _
  $region5: #{generator_forward.10} parent=0 // pred_fallthru
    _
  // Predicated region
  $region6: #{generator_forward.10} parent=0 // pred_check
    _
  $region7: #{generator_forward.10} parent=0 // pred_check_branch
    %11 = sbr.rel (0) target = $region9
  $region8: #{generator_forward.10} parent=0 // pred_region
    _
  $region9: #{generator_forward.10} parent=0 // pred_fallthru
    _
  // Predicated region
  $region10: #{generator_forward.10} parent=0 // pred_check
    _
  $region11: #{generator_forward.10} parent=0 // pred_check_branch
    %13 = sbr.rel (0) target = $region13
  $region12: #{generator_forward.10} parent=0 // pred_region
    _
  $region13: #{generator_forward.10} parent=0 // pred_fallthru
    _
  %v14 = vld [vmem:[%s0] sm:$0xff]
  %v15 = vld [vmem:[%s0 + $0x8] sm:$0xff]
  %v16 = vld [vmem:[%s0 + $0x10] sm:$0xff]
  %v17 = vld [vmem:[%s0 + $0x18] sm:$0xff]
  %v18 = vld [vmem:[%s0 + $0x20] sm:$0xff]
  %v19 = vld [vmem:[%s0 + $0x28] sm:$0xff]
  %v20 = vld [vmem:[%s0 + $0x30] sm:$0xff]
  %v21 = vld [vmem:[%s0 + $0x38] sm:$0xff]
  %v22 = vld [vmem:[%s1] sm:$0xff]
  %v23 = vld [vmem:[%s1 + $0x8] sm:$0xff]
  %v24 = vld [vmem:[%s1 + $0x10] sm:$0xff]
  %v25 = vld [vmem:[%s1 + $0x18] sm:$0xff]
  %v26 = vld [vmem:[%s1 + $0x20] sm:$0xff]
  %v27 = vld [vmem:[%s1 + $0x28] sm:$0xff]
  %v28 = vld [vmem:[%s1 + $0x30] sm:$0xff]
  %v29 = vld [vmem:[%s1 + $0x38] sm:$0xff]
  %31 = vset.pattern.permute.xlu0 0
  %32 = vperm.xlu0 %31, %v22
  %v33 = vpop.permute.xlu0 %32
  %36 = vset.pattern.permute.xlu0 0
  %37 = vperm.xlu0 %36, %v23
  %v38 = vpop.permute.xlu0 %37
  %41 = vset.pattern.permute.xlu0 0
  %42 = vperm.xlu0 %41, %v24
  %v43 = vpop.permute.xlu0 %42
  %46 = vset.pattern.permute.xlu0 0
  %47 = vperm.xlu0 %46, %v25
  %v48 = vpop.permute.xlu0 %47
  %51 = vset.pattern.permute.xlu0 0
  %52 = vperm.xlu0 %51, %v26
  %v53 = vpop.permute.xlu0 %52
  %56 = vset.pattern.permute.xlu0 0
  %57 = vperm.xlu0 %56, %v27
  %v58 = vpop.permute.xlu0 %57
  %61 = vset.pattern.permute.xlu0 0
  %62 = vperm.xlu0 %61, %v28
  %v63 = vpop.permute.xlu0 %62
  %66 = vset.pattern.permute.xlu0 0
  %67 = vperm.xlu0 %66, %v29
  %v68 = vpop.permute.xlu0 %67
  %v70 = vmul.f32 %v14, %v33
  %v71 = vmul.f32 %v15, %v38
  %v72 = vmul.f32 %v16, %v43
  %v73 = vmul.f32 %v17, %v48
  %v74 = vmul.f32 %v18, %v53
  %v75 = vmul.f32 %v19, %v58
  %v76 = vmul.f32 %v20, %v63
  %v77 = vmul.f32 %v21, %v68
  %v78 = vld [vmem:[%s2] sm:$0xff]
  %v79 = vld [vmem:[%s2 + $0x8] sm:$0xff]
  %v80 = vld [vmem:[%s2 + $0x10] sm:$0xff]
  %v81 = vld [vmem:[%s2 + $0x18] sm:$0xff]
  %v82 = vld [vmem:[%s2 + $0x20] sm:$0xff]
  %v83 = vld [vmem:[%s2 + $0x28] sm:$0xff]
  %v84 = vld [vmem:[%s2 + $0x30] sm:$0xff]
  %v85 = vld [vmem:[%s2 + $0x38] sm:$0xff]
  %87 = vset.pattern.permute.xlu0 0
  %88 = vperm.xlu0 %87, %v78
  %v89 = vpop.permute.xlu0 %88
  %92 = vset.pattern.permute.xlu0 0
  %93 = vperm.xlu0 %92, %v79
  %v94 = vpop.permute.xlu0 %93
  %97 = vset.pattern.permute.xlu0 0
  %98 = vperm.xlu0 %97, %v80
  %v99 = vpop.permute.xlu0 %98
  %102 = vset.pattern.permute.xlu0 0
  %103 = vperm.xlu0 %102, %v81
  %v104 = vpop.permute.xlu0 %103
  %107 = vset.pattern.permute.xlu0 0
  %108 = vperm.xlu0 %107, %v82
  %v109 = vpop.permute.xlu0 %108
  %112 = vset.pattern.permute.xlu0 0
  %113 = vperm.xlu0 %112, %v83
  %v114 = vpop.permute.xlu0 %113
  %117 = vset.pattern.permute.xlu0 0
  %118 = vperm.xlu0 %117, %v84
  %v119 = vpop.permute.xlu0 %118
  %122 = vset.pattern.permute.xlu0 0
  %123 = vperm.xlu0 %122, %v85
  %v124 = vpop.permute.xlu0 %123
  %v126 = vadd.f32 %v70, %v89
  %v127 = vadd.f32 %v71, %v94
  %v128 = vadd.f32 %v72, %v99
  %v129 = vadd.f32 %v73, %v104
  %v130 = vadd.f32 %v74, %v109
  %v131 = vadd.f32 %v75, %v114
  %v132 = vadd.f32 %v76, %v119
  %v133 = vadd.f32 %v77, %v124
  %v134 = vmax.f32 %v126, 0.0
  %v135 = vmax.f32 %v127, 0.0
  %v136 = vmax.f32 %v128, 0.0
  %v137 = vmax.f32 %v129, 0.0
  %v138 = vmax.f32 %v130, 0.0
  %v139 = vmax.f32 %v131, 0.0
  %v140 = vmax.f32 %v132, 0.0
  %v141 = vmax.f32 %v133, 0.0
  %v142 = vpack.c.bf16 %v134, %v134
  %v143 = vpack.c.bf16 %v135, %v135
  %v144 = vpack.c.bf16 %v136, %v136
  %v145 = vpack.c.bf16 %v137, %v137
  %v146 = vpack.c.bf16 %v138, %v138
  %v147 = vpack.c.bf16 %v139, %v139
  %v148 = vpack.c.bf16 %v140, %v140
  %v149 = vpack.c.bf16 %v141, %v141
  %vm150 = vcmask 257024
  %151 = vst.msk [vmem:[%s3] sm:$0xf] %vm150, %v142
  %152 = vst.msk [vmem:[%s3 + $0x4] sm:$0xf] %vm150, %v143
  %153 = vst.msk [vmem:[%s3 + $0x8] sm:$0xf] %vm150, %v144
  %154 = vst.msk [vmem:[%s3 + $0xc] sm:$0xf] %vm150, %v145
  %155 = vst.msk [vmem:[%s3 + $0x10] sm:$0xf] %vm150, %v146
  %156 = vst.msk [vmem:[%s3 + $0x14] sm:$0xf] %vm150, %v147
  %157 = vst.msk [vmem:[%s3 + $0x18] sm:$0xf] %vm150, %v148
  %158 = vst.msk [vmem:[%s3 + $0x1c] sm:$0xf] %vm150, %v149
  // Predicated region
  $region14: #{generator_forward.10} parent=0 // pred_check
    _
  $region15: #{generator_forward.10} parent=0 // pred_check_branch
    %160 = sbr.rel (0) target = $region17
  $region16: #{generator_forward.10} parent=0 // pred_region
    _
  $region17: #{generator_forward.10} parent=0 // pred_fallthru
    _
  // Predicated region
  $region18: #{generator_forward.10} parent=0 // pred_check
    _
  $region19: #{generator_forward.10} parent=0 // pred_check_branch
    %162 = sbr.rel (0) target = $region21
  $region20: #{generator_forward.10} parent=0 // pred_region
    _
  $region21: #{generator_forward.10} parent=0 // pred_fallthru
    _

// kernel: generator_forward.9
$region0: #{generator_forward.9}
  #allocation0 [shape = 'u32[]', space=smem, size = 0x4, offset = 0x4, fixed_abs, tag = 'smem constant byte address 0x4 - core index']
  #allocation1 [shape = 'u32[72,128]{1,0:T(1,128)}', space=vmem, size = 0x9000, scoped, tag = 'internal scratch']
  %s0 = inlined_call_operand.hbm [shape: bf16[1,64,256], index: 0, kind: input, shape index: {}]
  %s1 = inlined_call_operand.vmem [shape: f32[64,1], index: 1, kind: input, shape index: {}]
  %s2 = inlined_call_operand.vmem [shape: bf16[1,256,32], index: 2, kind: input, shape index: {}]
  %s3 = inlined_call_operand.vmem [shape: f32[1,64,32], index: 3, kind: output, shape index: {}]
  %s4 = sld [smem:[#allocation0]]
  $region26: #{generator_forward.9} parent=0
    _
  %s6 = ssub.s32 1, %s4
  %s7 = scalar_select 0, %s6, %s4
  $region1: #{generator_forward.9} parent=0
    #allocation2 [shape = 'u8[32768]{0}', space=vmem, size = 0x8000, scoped, tag = 'input window, operand 0, single buffered']
    #allocation3 [shape = 's32[1]{0}', space=sflag, size = 0x4, scoped, tag = 'scoped memory for generator_forward.9']
    %8 = vsyncpa [#allocation3], 0
    // Predicated region
    $region2: #{generator_forward.9} parent=1 // pred_check
      _
    $region3: #{generator_forward.9} parent=1 // pred_check_branch
      %10 = sbr.rel (0) target = $region5
    $region4: #{generator_forward.9} parent=1 // pred_region
      %12 = vsyncadd [#allocation3], 0
      %s13 = sshll.u32 %s0, 4
      %s14 = int_to_ptr.hbm [resolvable:$true] %s13
      %s15 = sshll.u32 [#allocation2], 4
      %s16 = int_to_ptr.vmem [resolvable:$true] %s15
      %21 = dma.hbm_to_vmem [thread:$0]  %s14, 1024, %s16, [#allocation3], 128, 128, 8
    $region5: #{generator_forward.9} parent=1 // pred_fallthru
      _
    // Predicated region
    $region6: #{generator_forward.9} parent=1 // pred_check
      _
    $region7: #{generator_forward.9} parent=1 // pred_check_branch
      %23 = sbr.rel (0) target = $region9
    $region8: #{generator_forward.9} parent=1 // pred_region
      _
    $region9: #{generator_forward.9} parent=1 // pred_fallthru
      _
    // Predicated region
    $region10: #{generator_forward.9} parent=1 // pred_check
      _
    $region11: #{generator_forward.9} parent=1 // pred_check_branch
      %25 = sbr.rel (0) target = $region13
    $region12: #{generator_forward.9} parent=1 // pred_region
      _
    $region13: #{generator_forward.9} parent=1 // pred_fallthru
      _
    // Predicated region
    $region14: #{generator_forward.9} parent=1 // pred_check
      _
    $region15: #{generator_forward.9} parent=1 // pred_check_branch
      %27 = sbr.rel (0) target = $region17
    $region16: #{generator_forward.9} parent=1 // pred_region
      %29 = dma.done [#allocation3], 1024
    $region17: #{generator_forward.9} parent=1 // pred_fallthru
      _
    %v30 = vld [vmem:[#allocation2] sm:$0xff]
    %v31 = vld [vmem:[#allocation2 + $0x8] sm:$0xff]
    %v32 = vld [vmem:[#allocation2 + $0x10] sm:$0xff]
    %v33 = vld [vmem:[#allocation2 + $0x18] sm:$0xff]
    %v34 = vld [vmem:[#allocation2 + $0x20] sm:$0xff]
    %v35 = vld [vmem:[#allocation2 + $0x28] sm:$0xff]
    %v36 = vld [vmem:[#allocation2 + $0x30] sm:$0xff]
    %v37 = vld [vmem:[#allocation2 + $0x38] sm:$0xff]
    %v38 = vld [vmem:[%s2] sm:$0xf]
    %v39 = vld [vmem:[%s2 + $0x4] sm:$0xf]
    %v40 = vld [vmem:[%s2 + $0x8] sm:$0xf]
    %v41 = vld [vmem:[%s2 + $0xc] sm:$0xf]
    %v42 = vld [vmem:[%s2 + $0x10] sm:$0xf]
    %v43 = vld [vmem:[%s2 + $0x14] sm:$0xf]
    %v44 = vld [vmem:[%s2 + $0x18] sm:$0xf]
    %v45 = vld [vmem:[%s2 + $0x1c] sm:$0xf]
    %v46 = vld [vmem:[%s2 + $0x20] sm:$0xf]
    %v47 = vld [vmem:[%s2 + $0x24] sm:$0xf]
    %v48 = vld [vmem:[%s2 + $0x28] sm:$0xf]
    %v49 = vld [vmem:[%s2 + $0x2c] sm:$0xf]
    %v50 = vld [vmem:[%s2 + $0x30] sm:$0xf]
    %v51 = vld [vmem:[%s2 + $0x34] sm:$0xf]
    %v52 = vld [vmem:[%s2 + $0x38] sm:$0xf]
    %v53 = vld [vmem:[%s2 + $0x3c] sm:$0xf]
    %v54 = vld [vmem:[%s2 + $0x40] sm:$0xf]
    %v55 = vld [vmem:[%s2 + $0x44] sm:$0xf]
    %v56 = vld [vmem:[%s2 + $0x48] sm:$0xf]
    %v57 = vld [vmem:[%s2 + $0x4c] sm:$0xf]
    %v58 = vld [vmem:[%s2 + $0x50] sm:$0xf]
    %v59 = vld [vmem:[%s2 + $0x54] sm:$0xf]
    %v60 = vld [vmem:[%s2 + $0x58] sm:$0xf]
    %v61 = vld [vmem:[%s2 + $0x5c] sm:$0xf]
    %v62 = vld [vmem:[%s2 + $0x60] sm:$0xf]
    %v63 = vld [vmem:[%s2 + $0x64] sm:$0xf]
    %v64 = vld [vmem:[%s2 + $0x68] sm:$0xf]
    %v65 = vld [vmem:[%s2 + $0x6c] sm:$0xf]
    %v66 = vld [vmem:[%s2 + $0x70] sm:$0xf]
    %v67 = vld [vmem:[%s2 + $0x74] sm:$0xf]
    %v68 = vld [vmem:[%s2 + $0x78] sm:$0xf]
    %v69 = vld [vmem:[%s2 + $0x7c] sm:$0xf]
    %v70 = vld [vmem:[%s1] sm:$0xff]
    %v71 = vld [vmem:[%s1 + $0x8] sm:$0xff]
    %v72 = vld [vmem:[%s1 + $0x10] sm:$0xff]
    %v73 = vld [vmem:[%s1 + $0x18] sm:$0xff]
    %v74 = vld [vmem:[%s1 + $0x20] sm:$0xff]
    %v75 = vld [vmem:[%s1 + $0x28] sm:$0xff]
    %v76 = vld [vmem:[%s1 + $0x30] sm:$0xff]
    %v77 = vld [vmem:[%s1 + $0x38] sm:$0xff]
    %79 = vset.pattern.permute.xlu0 0
    %80 = vperm.xlu0 %79, %v70
    %v81 = vpop.permute.xlu0 %80
    %84 = vset.pattern.permute.xlu0 0
    %85 = vperm.xlu0 %84, %v71
    %v86 = vpop.permute.xlu0 %85
    %89 = vset.pattern.permute.xlu0 0
    %90 = vperm.xlu0 %89, %v72
    %v91 = vpop.permute.xlu0 %90
    %94 = vset.pattern.permute.xlu0 0
    %95 = vperm.xlu0 %94, %v73
    %v96 = vpop.permute.xlu0 %95
    %99 = vset.pattern.permute.xlu0 0
    %100 = vperm.xlu0 %99, %v74
    %v101 = vpop.permute.xlu0 %100
    %104 = vset.pattern.permute.xlu0 0
    %105 = vperm.xlu0 %104, %v75
    %v106 = vpop.permute.xlu0 %105
    %109 = vset.pattern.permute.xlu0 0
    %110 = vperm.xlu0 %109, %v76
    %v111 = vpop.permute.xlu0 %110
    %114 = vset.pattern.permute.xlu0 0
    %115 = vperm.xlu0 %114, %v77
    %v116 = vpop.permute.xlu0 %115
    %v126 = vunpack.c.l.b16 %v30
    %v127 = vunpack.c.h.b16 %v30
    %v128 = vunpack.c.l.b16 %v31
    %v129 = vunpack.c.h.b16 %v31
    %v130 = vunpack.c.l.b16 %v32
    %v131 = vunpack.c.h.b16 %v32
    %v132 = vunpack.c.l.b16 %v33
    %v133 = vunpack.c.h.b16 %v33
    %v134 = vunpack.c.l.b16 %v34
    %v135 = vunpack.c.h.b16 %v34
    %v136 = vunpack.c.l.b16 %v35
    %v137 = vunpack.c.h.b16 %v35
    %v138 = vunpack.c.l.b16 %v36
    %v139 = vunpack.c.h.b16 %v36
    %v140 = vunpack.c.l.b16 %v37
    %v141 = vunpack.c.h.b16 %v37
    %v142 = vpack.c.b16 %v128, %v126
    %v143 = vpack.c.b16 %v129, %v127
    %v144 = vpack.c.b16 %v132, %v130
    %v145 = vpack.c.b16 %v133, %v131
    %v146 = vpack.c.b16 %v136, %v134
    %v147 = vpack.c.b16 %v137, %v135
    %v148 = vpack.c.b16 %v140, %v138
    %v149 = vpack.c.b16 %v141, %v139
    %v190 = vunpack.c.l.b16 %v38
    %v191 = vunpack.c.l.b16 %v39
    %v192 = vunpack.c.l.b16 %v40
    %v193 = vunpack.c.l.b16 %v41
    %v194 = vunpack.c.l.b16 %v42
    %v195 = vunpack.c.l.b16 %v43
    %v196 = vunpack.c.l.b16 %v44
    %v197 = vunpack.c.l.b16 %v45
    %v198 = vunpack.c.l.b16 %v46
    %v199 = vunpack.c.l.b16 %v47
    %v200 = vunpack.c.l.b16 %v48
    %v201 = vunpack.c.l.b16 %v49
    %v202 = vunpack.c.l.b16 %v50
    %v203 = vunpack.c.l.b16 %v51
    %v204 = vunpack.c.l.b16 %v52
    %v205 = vunpack.c.l.b16 %v53
    %v206 = vunpack.c.l.b16 %v54
    %v207 = vunpack.c.l.b16 %v55
    %v208 = vunpack.c.l.b16 %v56
    %v209 = vunpack.c.l.b16 %v57
    %v210 = vunpack.c.l.b16 %v58
    %v211 = vunpack.c.l.b16 %v59
    %v212 = vunpack.c.l.b16 %v60
    %v213 = vunpack.c.l.b16 %v61
    %v214 = vunpack.c.l.b16 %v62
    %v215 = vunpack.c.l.b16 %v63
    %v216 = vunpack.c.l.b16 %v64
    %v217 = vunpack.c.l.b16 %v65
    %v218 = vunpack.c.l.b16 %v66
    %v219 = vunpack.c.l.b16 %v67
    %v220 = vunpack.c.l.b16 %v68
    %v221 = vunpack.c.l.b16 %v69
    %v222 = vpack.c.b16 %v191, %v190
    %v223 = vpack.c.b16 %v193, %v192
    %v224 = vpack.c.b16 %v195, %v194
    %v225 = vpack.c.b16 %v197, %v196
    %v226 = vpack.c.b16 %v199, %v198
    %v227 = vpack.c.b16 %v201, %v200
    %v228 = vpack.c.b16 %v203, %v202
    %v229 = vpack.c.b16 %v205, %v204
    %v230 = vpack.c.b16 %v207, %v206
    %v231 = vpack.c.b16 %v209, %v208
    %v232 = vpack.c.b16 %v211, %v210
    %v233 = vpack.c.b16 %v213, %v212
    %v234 = vpack.c.b16 %v215, %v214
    %v235 = vpack.c.b16 %v217, %v216
    %v236 = vpack.c.b16 %v219, %v218
    %v237 = vpack.c.b16 %v221, %v220
    %254 = vmatpush.bf16.msra.mxu0 %v229
    %255 = vmatpush.bf16.msra.mxu0 %v228
    %256 = vmatpush.bf16.msra.mxu0 %v227
    %257 = vmatpush.bf16.msra.mxu0 %v226
    %258 = vmatpush.bf16.msra.mxu0 %v225
    %259 = vmatpush.bf16.msra.mxu0 %v224
    %260 = vmatpush.bf16.msra.mxu0 %v223
    %261 = vmatpush.bf16.msra.mxu0 %v222
    %262 = vmatmul.bf16.gmra.mxu0 %v142
    %v263 = vpop.f32.mrf.mxu0
    %v264 = vadd.f32 %v81, %v263
    %v265 = vpop.f32.mrf.mxu0
    %v266 = vadd.f32 %v86, %v265
    %267 = vmatmul.bf16.gmra.mxu0 %v144
    %v268 = vpop.f32.mrf.mxu0
    %v269 = vadd.f32 %v91, %v268
    %v270 = vpop.f32.mrf.mxu0
    %v271 = vadd.f32 %v96, %v270
    %272 = vmatmul.bf16.gmra.mxu0 %v146
    %v273 = vpop.f32.mrf.mxu0
    %v274 = vadd.f32 %v101, %v273
    %v275 = vpop.f32.mrf.mxu0
    %v276 = vadd.f32 %v106, %v275
    %277 = vmatmul.bf16.gmra.mxu0 %v148
    %v278 = vpop.f32.mrf.mxu0
    %v279 = vadd.f32 %v111, %v278
    %v280 = vpop.f32.mrf.mxu0
    %v281 = vadd.f32 %v116, %v280
    %282 = vdwg.mxu0
    %283 = vmatpush.bf16.msra.mxu0 %v237
    %284 = vmatpush.bf16.msra.mxu0 %v236
    %285 = vmatpush.bf16.msra.mxu0 %v235
    %286 = vmatpush.bf16.msra.mxu0 %v234
    %287 = vmatpush.bf16.msra.mxu0 %v233
    %288 = vmatpush.bf16.msra.mxu0 %v232
    %289 = vmatpush.bf16.msra.mxu0 %v231
    %290 = vmatpush.bf16.msra.mxu0 %v230
    %291 = vmatmul.bf16.gmra.mxu0 %v143
    %v292 = vpop.f32.mrf.mxu0
    %v293 = vadd.f32 %v264, %v292
    %v294 = vpop.f32.mrf.mxu0
    %v295 = vadd.f32 %v266, %v294
    %296 = vmatmul.bf16.gmra.mxu0 %v145
    %v297 = vpop.f32.mrf.mxu0
    %v298 = vadd.f32 %v269, %v297
    %v299 = vpop.f32.mrf.mxu0
    %v300 = vadd.f32 %v271, %v299
    %301 = vmatmul.bf16.gmra.mxu0 %v147
    %v302 = vpop.f32.mrf.mxu0
    %v303 = vadd.f32 %v274, %v302
    %v304 = vpop.f32.mrf.mxu0
    %v305 = vadd.f32 %v276, %v304
    %306 = vmatmul.bf16.gmra.mxu0 %v149
    %v307 = vpop.f32.mrf.mxu0
    %v308 = vadd.f32 %v279, %v307
    %v309 = vpop.f32.mrf.mxu0
    %v310 = vadd.f32 %v281, %v309
    %311 = vdwg.mxu0
    %vm312 = vcmask 261120
    %313 = vst.msk [vmem:[%s3] sm:$0xff] %vm312, %v293
    %314 = vst.msk [vmem:[%s3 + $0x8] sm:$0xff] %vm312, %v295
    %315 = vst.msk [vmem:[%s3 + $0x10] sm:$0xff] %vm312, %v298
    %316 = vst.msk [vmem:[%s3 + $0x18] sm:$0xff] %vm312, %v300
    %317 = vst.msk [vmem:[%s3 + $0x20] sm:$0xff] %vm312, %v303
    %318 = vst.msk [vmem:[%s3 + $0x28] sm:$0xff] %vm312, %v305
    %319 = vst.msk [vmem:[%s3 + $0x30] sm:$0xff] %vm312, %v308
    %320 = vst.msk [vmem:[%s3 + $0x38] sm:$0xff] %vm312, %v310
    // Predicated region
    $region18: #{generator_forward.9} parent=1 // pred_check
      _
    $region19: #{generator_forward.9} parent=1 // pred_check_branch
      %322 = sbr.rel (0) target = $region21
    $region20: #{generator_forward.9} parent=1 // pred_region
      _
    $region21: #{generator_forward.9} parent=1 // pred_fallthru
      _
    // Predicated region
    $region22: #{generator_forward.9} parent=1 // pred_check
      _
    $region23: #{generator_forward.9} parent=1 // pred_check_branch
      %324 = sbr.rel (0) target = $region25
    $region24: #{generator_forward.9} parent=1 // pred_region
      _
    $region25: #{generator_forward.9} parent=1 // pred_fallthru
      _
    %325 = vsyncpa [#allocation3], 1

// kernel: generator_forward.11
$region0: #{generator_forward.11}
  #allocation0 [shape = 'u32[]', space=smem, size = 0x4, offset = 0x4, fixed_abs, tag = 'smem constant byte address 0x4 - core index']
  #allocation1 [shape = 'u32[72,128]{1,0:T(1,128)}', space=vmem, size = 0x9000, scoped, tag = 'internal scratch']
  %s0 = inlined_call_operand.vmem [shape: bf16[4,32,256], index: 0, kind: input, shape index: {}]
  %s1 = inlined_call_operand.vmem [shape: f32[32,1], index: 1, kind: input, shape index: {}]
  %s2 = inlined_call_operand.vmem [shape: bf16[4,256,32], index: 2, kind: input, shape index: {}]
  %s3 = inlined_call_operand.vmem [shape: f32[4,32,32], index: 3, kind: output, shape index: {}]
  %s4 = sld [smem:[#allocation0]]
  $region45: #{generator_forward.11} parent=0
    _
  %s6 = ssub.s32 1, %s4
  %s7 = scalar_select 0, %s6, %s4
  loop: start=0, step=1, limit=6
  $region2: #{generator_forward.11} parent=0 // loop_pre_header
    _
  $region3: #{generator_forward.11} parent=0 // loop_header
    %s9 = sphi 0, %s13
    %p10 = scmp.ge.s32.totalorder %s9, 6
    %s16 = sphi 0, %s28
    %s17 = sphi 0, %s24
    %s18 = sphi 0, %s16
    %s19 = sphi 0, %s17
    %s20 = sphi 0, %s18
    %s21 = sphi 0, %s19
    %s31 = sphi 0, %s33
    %s34 = sphi 0, %s31
    %s35 = sphi 0, %s34
    %s51 = sphi 0, %s35
    %s55 = sphi 0, %s55
    %s57 = sphi 0, %s55
    %s58 = sphi 0, %s57
    %s72 = sphi 0, %s58
    %s80 = sphi 0, %s82
    %s83 = sphi 0, %s80
    %s84 = sphi 0, %s83
    %s100 = sphi 0, %s84
    %s108 = sphi 0, %s110
    %s111 = sphi 0, %s108
    %s112 = sphi 0, %s111
    %s128 = sphi 0, %s112
  $region4: #{generator_forward.11} parent=0 // loop_header_branch
    %12 = sbr.rel (%p10) target = $region8
  $region5: #{generator_forward.11} parent=0 // loop_body
    %s14 = ssub.s32 %s9, 1
    %s15 = ssub.s32 %s9, 2
    %s22 = sadd.s32 1, %s17
    %p23 = scmp.ge.s32.totalorder %s22, 1
    %s24 = scalar_select %p23, 0, %s22
    %s25 = sadd.s32 1, %s16
    %s26 = scalar_select %p23, %s25, %s16
    %p27 = scmp.ge.s32.totalorder %s26, 4
    %s28 = scalar_select %p27, 0, %s26
    %s29 = ssub.s32 %s16, %s28
    %p30 = scmp.eq.s32.totalorder %s29, 0
    %s32 = sadd.s32 %s31, 1
    %s33 = scalar_select %p30, %s31, %s32
    %p36 = pneg %p30
    %p37 = scmp.eq.s32.totalorder %s9, 3
    %p38 = por %p36, %p37
    %p39 = scmp.ne.s32.totalorder %s31, %s34
    %p40 = scmp.eq.s32.totalorder %s9, 0
    %p41 = por %p39, %p40
    %p42 = scmp.ne.s32.totalorder %s31, %s34
    %p43 = scmp.eq.s32.totalorder %s14, 3
    %p44 = por %p42, %p43
    %p45 = scmp.ne.s32.totalorder %s34, %s35
    %p46 = scmp.eq.s32.totalorder %s14, 0
    %p47 = por %p45, %p46
    %p48 = scmp.ne.s32.totalorder %s34, %s35
    %p49 = scmp.eq.s32.totalorder %s15, 3
    %p50 = por %p48, %p49
    %p52 = scmp.ne.s32.totalorder %s35, %s51
    %p53 = scmp.eq.s32.totalorder %s15, 0
    %p54 = por %p52, %p53
    %s56 = sadd.s32 %s55, 1
    %p59 = scmp.eq.s32.totalorder %s9, 3
    %p60 = scmp.ne.s32.totalorder %s55, %s57
    %p61 = scmp.eq.s32.totalorder %s9, 0
    %p62 = por %p60, %p61
    %p63 = scmp.ne.s32.totalorder %s55, %s57
    %p64 = scmp.eq.s32.totalorder %s14, 3
    %p65 = por %p63, %p64
    %p66 = scmp.ne.s32.totalorder %s57, %s58
    %p67 = scmp.eq.s32.totalorder %s14, 0
    %p68 = por %p66, %p67
    %p69 = scmp.ne.s32.totalorder %s57, %s58
    %p70 = scmp.eq.s32.totalorder %s15, 3
    %p71 = por %p69, %p70
    %p73 = scmp.ne.s32.totalorder %s58, %s72
    %p74 = scmp.eq.s32.totalorder %s15, 0
    %p75 = por %p73, %p74
    %s76 = ssub.s32 %s16, %s28
    %s77 = ssub.s32 %s17, %s24
    %s78 = sor.u32 %s76, %s77
    %p79 = scmp.eq.s32.totalorder %s78, 0
    %s81 = sadd.s32 %s80, 1
    %s82 = scalar_select %p79, %s80, %s81
    %p85 = pneg %p79
    %p86 = scmp.eq.s32.totalorder %s9, 3
    %p87 = por %p85, %p86
    %p88 = scmp.ne.s32.totalorder %s80, %s83
    %p89 = scmp.eq.s32.totalorder %s9, 0
    %p90 = por %p88, %p89
    %p91 = scmp.ne.s32.totalorder %s80, %s83
    %p92 = scmp.eq.s32.totalorder %s14, 3
    %p93 = por %p91, %p92
    %p94 = scmp.ne.s32.totalorder %s83, %s84
    %p95 = scmp.eq.s32.totalorder %s14, 0
    %p96 = por %p94, %p95
    %p97 = scmp.ne.s32.totalorder %s83, %s84
    %p98 = scmp.eq.s32.totalorder %s15, 3
    %p99 = por %p97, %p98
    %p101 = scmp.ne.s32.totalorder %s84, %s100
    %p102 = scmp.eq.s32.totalorder %s15, 0
    %p103 = por %p101, %p102
    %s104 = ssub.s32 %s16, %s28
    %s105 = ssub.s32 %s17, %s24
    %s106 = sor.u32 %s104, %s105
    %p107 = scmp.eq.s32.totalorder %s106, 0
    %s109 = sadd.s32 %s108, 1
    %s110 = scalar_select %p107, %s108, %s109
    %p113 = pneg %p107
    %p114 = scmp.eq.s32.totalorder %s9, 3
    %p115 = por %p113, %p114
    %p116 = scmp.ne.s32.totalorder %s108, %s111
    %p117 = scmp.eq.s32.totalorder %s9, 0
    %p118 = por %p116, %p117
    %p119 = scmp.ne.s32.totalorder %s108, %s111
    %p120 = scmp.eq.s32.totalorder %s14, 3
    %p121 = por %p119, %p120
    %p122 = scmp.ne.s32.totalorder %s111, %s112
    %p123 = scmp.eq.s32.totalorder %s14, 0
    %p124 = por %p122, %p123
    %p125 = scmp.ne.s32.totalorder %s111, %s112
    %p126 = scmp.eq.s32.totalorder %s15, 3
    %p127 = por %p125, %p126
    %p129 = scmp.ne.s32.totalorder %s112, %s128
    %p130 = scmp.eq.s32.totalorder %s15, 0
    %p131 = por %p129, %p130
    %p132 = scmp.le.s32.totalorder 1, %s9
    %p133 = scmp.lt.s32.totalorder %s9, 5
    %p134 = pnand %p132, %p133
    %p135 = pneg %p134
    // Predicated region
    $region9: #{generator_forward.11} parent=5 // pred_check
      _
    $region10: #{generator_forward.11} parent=5 // pred_check_branch
      %137 = sbr.rel (%p134) target = $region12
    $region11: #{generator_forward.11} parent=5 // pred_region
      %s138 = ssub.s32 %s9, 1
      // Predicated region
      $region13: #{generator_forward.11} parent=11 // pred_check
        %p139 = pneg %p68
      $region14: #{generator_forward.11} parent=11 // pred_check_branch
        %141 = sbr.rel (%p139) target = $region16
      $region15: #{generator_forward.11} parent=11 // pred_region
        _
      $region16: #{generator_forward.11} parent=11 // pred_fallthru
        _
    $region12: #{generator_forward.11} parent=5 // pred_fallthru
      _
    %p142 = scmp.lt.s32.totalorder %s9, 4
    // Predicated region
    $region17: #{generator_forward.11} parent=5 // pred_check
      %p143 = pneg %p142
    $region18: #{generator_forward.11} parent=5 // pred_check_branch
      %145 = sbr.rel (%p143) target = $region20
    $region19: #{generator_forward.11} parent=5 // pred_region
      // Predicated region
      $region21: #{generator_forward.11} parent=19 // pred_check
        %p146 = pneg %p41
      $region22: #{generator_forward.11} parent=19 // pred_check_branch
        %148 = sbr.rel (%p146) target = $region24
      $region23: #{generator_forward.11} parent=19 // pred_region
        %p149 = scmp.lt.s32.totalorder %s16, 3
        %s150 = scalar_select %p149, %s16, 3
        %s151 = smul.addr %s150, 8
        %s152 = smul.addr %s151, 4
        %s153 = scalar_lea.vmem %s0, %s152
      $region24: #{generator_forward.11} parent=19 // pred_fallthru
        _
      // Predicated region
      $region25: #{generator_forward.11} parent=19 // pred_check
        %p154 = pneg %p90
      $region26: #{generator_forward.11} parent=19 // pred_check_branch
        %156 = sbr.rel (%p154) target = $region28
      $region27: #{generator_forward.11} parent=19 // pred_region
        %p157 = scmp.lt.s32.totalorder %s16, 3
        %s158 = scalar_select %p157, %s16, 3
        %p159 = scmp.lt.s32.totalorder %s17, 0
        %s160 = scalar_select %p159, %s17, 0
        %s161 = smul.addr %s158, 32
        %s162 = sadd.s32 %s160, %s161
        %s163 = smul.addr %s162, 4
        %s164 = scalar_lea.vmem %s2, %s163
      $region28: #{generator_forward.11} parent=19 // pred_fallthru
        _
    $region20: #{generator_forward.11} parent=5 // pred_fallthru
      _
    %p165 = scmp.le.s32.totalorder 1, %s9
    %p166 = scmp.lt.s32.totalorder %s9, 5
    %p167 = pnand %p165, %p166
    %p168 = pneg %p167
    // Predicated region
    $region29: #{generator_forward.11} parent=5 // pred_check
      _
    $region30: #{generator_forward.11} parent=5 // pred_check_branch
      %170 = sbr.rel (%p167) target = $region32
    $region31: #{generator_forward.11} parent=5 // pred_region
      %s171 = ssub.s32 %s9, 1
      %p172 = scmp.lt.s32.totalorder %s18, 3
      %s173 = scalar_select %p172, %s18, 3
      %s174 = smul.addr %s173, 8
      %s175 = smul.addr %s174, 4
      %s176 = scalar_lea.vmem %s0, %s175
      %p177 = pneg %p47
      %p178 = pneg %p44
      %p179 = pneg %p68
      %p180 = pneg %p65
      %p181 = scmp.lt.s32.totalorder %s18, 3
      %s182 = scalar_select %p181, %s18, 3
      %p183 = scmp.lt.s32.totalorder %s19, 0
      %s184 = scalar_select %p183, %s19, 0
      %s185 = smul.addr %s182, 32
      %s186 = sadd.s32 %s184, %s185
      %s187 = smul.addr %s186, 4
      %s188 = scalar_lea.vmem %s2, %s187
      %p189 = pneg %p96
      %p190 = pneg %p93
      %p191 = pneg %p124
      %p192 = pneg %p121
      %p193 = scmp.lt.s32.totalorder %s18, 3
      %s194 = scalar_select %p193, %s18, 3
      %p195 = scmp.lt.s32.totalorder %s19, 0
      %s196 = scalar_select %p195, %s19, 0
      %s197 = smul.addr %s194, 4
      %s198 = sadd.s32 %s196, %s197
      %s199 = smul.addr %s198, 8
      %s200 = scalar_lea.vmem %s3, %s199
      %p201 = scmp.lt.s32.totalorder %s18, 3
      %s202 = scalar_select %p201, %s18, 3
      %s203 = smul.addr %s202, 8
      %s204 = smul.addr %s203, 4
      %s205 = scalar_lea.vmem %s0, %s204
      %p206 = scmp.lt.s32.totalorder %s18, 3
      %s207 = scalar_select %p206, %s18, 3
      %p208 = scmp.lt.s32.totalorder %s19, 0
      %s209 = scalar_select %p208, %s19, 0
      %s210 = smul.addr %s207, 32
      %s211 = sadd.s32 %s209, %s210
      %s212 = smul.addr %s211, 4
      %s213 = scalar_lea.vmem %s2, %s212
      %p214 = scmp.lt.s32.totalorder %s18, 3
      %s215 = scalar_select %p214, %s18, 3
      %p216 = scmp.lt.s32.totalorder %s19, 0
      %s217 = scalar_select %p216, %s19, 0
      %s218 = smul.addr %s215, 4
      %s219 = sadd.s32 %s217, %s218
      %s220 = smul.addr %s219, 8
      %s221 = scalar_lea.vmem %s3, %s220
      %v222 = vld [vmem:[%s205] sm:$0xff]
      %v223 = vld [vmem:[%s205 + $0x8] sm:$0xff]
      %v224 = vld [vmem:[%s205 + $0x10] sm:$0xff]
      %v225 = vld [vmem:[%s205 + $0x18] sm:$0xff]
      %v226 = vld [vmem:[%s213] sm:$0xf]
      %v227 = vld [vmem:[%s213 + $0x4] sm:$0xf]
      %v228 = vld [vmem:[%s213 + $0x8] sm:$0xf]
      %v229 = vld [vmem:[%s213 + $0xc] sm:$0xf]
      %v230 = vld [vmem:[%s213 + $0x10] sm:$0xf]
      %v231 = vld [vmem:[%s213 + $0x14] sm:$0xf]
      %v232 = vld [vmem:[%s213 + $0x18] sm:$0xf]
      %v233 = vld [vmem:[%s213 + $0x1c] sm:$0xf]
      %v234 = vld [vmem:[%s213 + $0x20] sm:$0xf]
      %v235 = vld [vmem:[%s213 + $0x24] sm:$0xf]
      %v236 = vld [vmem:[%s213 + $0x28] sm:$0xf]
      %v237 = vld [vmem:[%s213 + $0x2c] sm:$0xf]
      %v238 = vld [vmem:[%s213 + $0x30] sm:$0xf]
      %v239 = vld [vmem:[%s213 + $0x34] sm:$0xf]
      %v240 = vld [vmem:[%s213 + $0x38] sm:$0xf]
      %v241 = vld [vmem:[%s213 + $0x3c] sm:$0xf]
      %v242 = vld [vmem:[%s213 + $0x40] sm:$0xf]
      %v243 = vld [vmem:[%s213 + $0x44] sm:$0xf]
      %v244 = vld [vmem:[%s213 + $0x48] sm:$0xf]
      %v245 = vld [vmem:[%s213 + $0x4c] sm:$0xf]
      %v246 = vld [vmem:[%s213 + $0x50] sm:$0xf]
      %v247 = vld [vmem:[%s213 + $0x54] sm:$0xf]
      %v248 = vld [vmem:[%s213 + $0x58] sm:$0xf]
      %v249 = vld [vmem:[%s213 + $0x5c] sm:$0xf]
      %v250 = vld [vmem:[%s213 + $0x60] sm:$0xf]
      %v251 = vld [vmem:[%s213 + $0x64] sm:$0xf]
      %v252 = vld [vmem:[%s213 + $0x68] sm:$0xf]
      %v253 = vld [vmem:[%s213 + $0x6c] sm:$0xf]
      %v254 = vld [vmem:[%s213 + $0x70] sm:$0xf]
      %v255 = vld [vmem:[%s213 + $0x74] sm:$0xf]
      %v256 = vld [vmem:[%s213 + $0x78] sm:$0xf]
      %v257 = vld [vmem:[%s213 + $0x7c] sm:$0xf]
      %v258 = vld [vmem:[%s1] sm:$0xff]
      %v259 = vld [vmem:[%s1 + $0x8] sm:$0xff]
      %v260 = vld [vmem:[%s1 + $0x10] sm:$0xff]
      %v261 = vld [vmem:[%s1 + $0x18] sm:$0xff]
      %263 = vset.pattern.permute.xlu0 0
      %264 = vperm.xlu0 %263, %v258
      %v265 = vpop.permute.xlu0 %264
      %268 = vset.pattern.permute.xlu0 0
      %269 = vperm.xlu0 %268, %v259
      %v270 = vpop.permute.xlu0 %269
      %273 = vset.pattern.permute.xlu0 0
      %274 = vperm.xlu0 %273, %v260
      %v275 = vpop.permute.xlu0 %274
      %278 = vset.pattern.permute.xlu0 0
      %279 = vperm.xlu0 %278, %v261
      %v280 = vpop.permute.xlu0 %279
      %v286 = vunpack.c.l.b16 %v222
      %v287 = vunpack.c.h.b16 %v222
      %v288 = vunpack.c.l.b16 %v223
      %v289 = vunpack.c.h.b16 %v223
      %v290 = vunpack.c.l.b16 %v224
      %v291 = vunpack.c.h.b16 %v224
      %v292 = vunpack.c.l.b16 %v225
      %v293 = vunpack.c.h.b16 %v225
      %v294 = vpack.c.b16 %v288, %v286
      %v295 = vpack.c.b16 %v289, %v287
      %v296 = vpack.c.b16 %v292, %v290
      %v297 = vpack.c.b16 %v293, %v291
      %v334 = vunpack.c.l.b16 %v226
      %v335 = vunpack.c.l.b16 %v227
      %v336 = vunpack.c.l.b16 %v228
      %v337 = vunpack.c.l.b16 %v229
      %v338 = vunpack.c.l.b16 %v230
      %v339 = vunpack.c.l.b16 %v231
      %v340 = vunpack.c.l.b16 %v232
      %v341 = vunpack.c.l.b16 %v233
      %v342 = vunpack.c.l.b16 %v234
      %v343 = vunpack.c.l.b16 %v235
      %v344 = vunpack.c.l.b16 %v236
      %v345 = vunpack.c.l.b16 %v237
      %v346 = vunpack.c.l.b16 %v238
      %v347 = vunpack.c.l.b16 %v239
      %v348 = vunpack.c.l.b16 %v240
      %v349 = vunpack.c.l.b16 %v241
      %v350 = vunpack.c.l.b16 %v242
      %v351 = vunpack.c.l.b16 %v243
      %v352 = vunpack.c.l.b16 %v244
      %v353 = vunpack.c.l.b16 %v245
      %v354 = vunpack.c.l.b16 %v246
      %v355 = vunpack.c.l.b16 %v247
      %v356 = vunpack.c.l.b16 %v248
      %v357 = vunpack.c.l.b16 %v249
      %v358 = vunpack.c.l.b16 %v250
      %v359 = vunpack.c.l.b16 %v251
      %v360 = vunpack.c.l.b16 %v252
      %v361 = vunpack.c.l.b16 %v253
      %v362 = vunpack.c.l.b16 %v254
      %v363 = vunpack.c.l.b16 %v255
      %v364 = vunpack.c.l.b16 %v256
      %v365 = vunpack.c.l.b16 %v257
      %v366 = vpack.c.b16 %v335, %v334
      %v367 = vpack.c.b16 %v337, %v336
      %v368 = vpack.c.b16 %v339, %v338
      %v369 = vpack.c.b16 %v341, %v340
      %v370 = vpack.c.b16 %v343, %v342
      %v371 = vpack.c.b16 %v345, %v344
      %v372 = vpack.c.b16 %v347, %v346
      %v373 = vpack.c.b16 %v349, %v348
      %v374 = vpack.c.b16 %v351, %v350
      %v375 = vpack.c.b16 %v353, %v352
      %v376 = vpack.c.b16 %v355, %v354
      %v377 = vpack.c.b16 %v357, %v356
      %v378 = vpack.c.b16 %v359, %v358
      %v379 = vpack.c.b16 %v361, %v360
      %v380 = vpack.c.b16 %v363, %v362
      %v381 = vpack.c.b16 %v365, %v364
      %398 = vmatpush.bf16.msra.mxu0 %v373
      %399 = vmatpush.bf16.msra.mxu0 %v372
      %400 = vmatpush.bf16.msra.mxu0 %v371
      %401 = vmatpush.bf16.msra.mxu0 %v370
      %402 = vmatpush.bf16.msra.mxu0 %v369
      %403 = vmatpush.bf16.msra.mxu0 %v368
      %404 = vmatpush.bf16.msra.mxu0 %v367
      %405 = vmatpush.bf16.msra.mxu0 %v366
      %406 = vmatmul.bf16.gmra.mxu0 %v294
      %v407 = vpop.f32.mrf.mxu0
      %v408 = vadd.f32 %v265, %v407
      %v409 = vpop.f32.mrf.mxu0
      %v410 = vadd.f32 %v270, %v409
      %411 = vmatmul.bf16.gmra.mxu0 %v296
      %v412 = vpop.f32.mrf.mxu0
      %v413 = vadd.f32 %v275, %v412
      %v414 = vpop.f32.mrf.mxu0
      %v415 = vadd.f32 %v280, %v414
      %416 = vdwg.mxu0
      %417 = vmatpush.bf16.msra.mxu0 %v381
      %418 = vmatpush.bf16.msra.mxu0 %v380
      %419 = vmatpush.bf16.msra.mxu0 %v379
      %420 = vmatpush.bf16.msra.mxu0 %v378
      %421 = vmatpush.bf16.msra.mxu0 %v377
      %422 = vmatpush.bf16.msra.mxu0 %v376
      %423 = vmatpush.bf16.msra.mxu0 %v375
      %424 = vmatpush.bf16.msra.mxu0 %v374
      %425 = vmatmul.bf16.gmra.mxu0 %v295
      %v426 = vpop.f32.mrf.mxu0
      %v427 = vadd.f32 %v408, %v426
      %v428 = vpop.f32.mrf.mxu0
      %v429 = vadd.f32 %v410, %v428
      %430 = vmatmul.bf16.gmra.mxu0 %v297
      %v431 = vpop.f32.mrf.mxu0
      %v432 = vadd.f32 %v413, %v431
      %v433 = vpop.f32.mrf.mxu0
      %v434 = vadd.f32 %v415, %v433
      %435 = vdwg.mxu0
      %vm436 = vcmask 261120
      %437 = vst.msk [vmem:[%s221] sm:$0xff] %vm436, %v427
      %438 = vst.msk [vmem:[%s221 + $0x8] sm:$0xff] %vm436, %v429
      %439 = vst.msk [vmem:[%s221 + $0x10] sm:$0xff] %vm436, %v432
      %440 = vst.msk [vmem:[%s221 + $0x18] sm:$0xff] %vm436, %v434
      %p441 = scmp.lt.s32.totalorder %s18, 3
      %s442 = scalar_select %p441, %s18, 3
      %p443 = scmp.lt.s32.totalorder %s19, 0
      %s444 = scalar_select %p443, %s19, 0
      %s445 = smul.addr %s442, 4
      %s446 = sadd.s32 %s444, %s445
      %s447 = smul.addr %s446, 8
      %s448 = scalar_lea.vmem %s3, %s447
      // Predicated region
      $region33: #{generator_forward.11} parent=31 // pred_check
        %p449 = pneg %p121
      $region34: #{generator_forward.11} parent=31 // pred_check_branch
        %451 = sbr.rel (%p449) target = $region36
      $region35: #{generator_forward.11} parent=31 // pred_region
        _
      $region36: #{generator_forward.11} parent=31 // pred_fallthru
        _
    $region32: #{generator_forward.11} parent=5 // pred_fallthru
      _
    %p452 = scmp.le.s32.totalorder 2, %s9
    // Predicated region
    $region37: #{generator_forward.11} parent=5 // pred_check
      %p453 = pneg %p452
    $region38: #{generator_forward.11} parent=5 // pred_check_branch
      %455 = sbr.rel (%p453) target = $region40
    $region39: #{generator_forward.11} parent=5 // pred_region
      %s456 = ssub.s32 %s9, 2
      // Predicated region
      $region41: #{generator_forward.11} parent=39 // pred_check
        %p457 = pneg %p127
      $region42: #{generator_forward.11} parent=39 // pred_check_branch
        %459 = sbr.rel (%p457) target = $region44
      $region43: #{generator_forward.11} parent=39 // pred_region
        %p460 = scmp.lt.s32.totalorder %s20, 3
        %s461 = scalar_select %p460, %s20, 3
        %p462 = scmp.lt.s32.totalorder %s21, 0
        %s463 = scalar_select %p462, %s21, 0
        %s464 = smul.addr %s461, 4
        %s465 = sadd.s32 %s463, %s464
        %s466 = smul.addr %s465, 8
        %s467 = scalar_lea.vmem %s3, %s466
      $region44: #{generator_forward.11} parent=39 // pred_fallthru
        _
    $region40: #{generator_forward.11} parent=5 // pred_fallthru
      _
  $region6: #{generator_forward.11} parent=0 // loop_footer
    %s13 = sadd.s32 1, %s9
  $region7: #{generator_forward.11} parent=0 // loop_footer_branch
    %8 = sbr.rel target = $region3
  $region8: #{generator_forward.11} parent=0 // loop_exit
    _

// kernel: generator_forward.12
$region0: #{generator_forward.12}
  #allocation0 [shape = 'u32[]', space=smem, size = 0x4, offset = 0x4, fixed_abs, tag = 'smem constant byte address 0x4 - core index']
  #allocation1 [shape = 'u32[72,128]{1,0:T(1,128)}', space=vmem, size = 0x9000, scoped, tag = 'internal scratch']
  %s0 = inlined_call_operand.vmem [shape: f32[4,32,32], index: 0, kind: input, shape index: {}]
  %s1 = inlined_call_operand.vmem [shape: f32[32,1], index: 1, kind: input, shape index: {}]
  %s2 = inlined_call_operand.vmem [shape: f32[32,1], index: 2, kind: input, shape index: {}]
  %s3 = inlined_call_operand.vmem [shape: bf16[4,32,32], index: 3, kind: output, shape index: {}]
  %s4 = sld [smem:[#allocation0]]
  $region45: #{generator_forward.12} parent=0
    _
  %s6 = ssub.s32 1, %s4
  %s7 = scalar_select 0, %s6, %s4
  loop: start=0, step=1, limit=6
  $region2: #{generator_forward.12} parent=0 // loop_pre_header
    _
  $region3: #{generator_forward.12} parent=0 // loop_header
    %s9 = sphi 0, %s13
    %p10 = scmp.ge.s32.totalorder %s9, 6
    %s16 = sphi 0, %s28
    %s17 = sphi 0, %s24
    %s18 = sphi 0, %s16
    %s19 = sphi 0, %s17
    %s20 = sphi 0, %s18
    %s21 = sphi 0, %s19
    %s33 = sphi 0, %s35
    %s36 = sphi 0, %s33
    %s37 = sphi 0, %s36
    %s53 = sphi 0, %s37
    %s57 = sphi 0, %s57
    %s59 = sphi 0, %s57
    %s60 = sphi 0, %s59
    %s74 = sphi 0, %s60
    %s78 = sphi 0, %s78
    %s80 = sphi 0, %s78
    %s81 = sphi 0, %s80
    %s95 = sphi 0, %s81
    %s103 = sphi 0, %s105
    %s106 = sphi 0, %s103
    %s107 = sphi 0, %s106
    %s123 = sphi 0, %s107
  $region4: #{generator_forward.12} parent=0 // loop_header_branch
    %12 = sbr.rel (%p10) target = $region8
  $region5: #{generator_forward.12} parent=0 // loop_body
    %s14 = ssub.s32 %s9, 1
    %s15 = ssub.s32 %s9, 2
    %s22 = sadd.s32 1, %s17
    %p23 = scmp.ge.s32.totalorder %s22, 1
    %s24 = scalar_select %p23, 0, %s22
    %s25 = sadd.s32 1, %s16
    %s26 = scalar_select %p23, %s25, %s16
    %p27 = scmp.ge.s32.totalorder %s26, 4
    %s28 = scalar_select %p27, 0, %s26
    %s29 = ssub.s32 %s16, %s28
    %s30 = ssub.s32 %s17, %s24
    %s31 = sor.u32 %s29, %s30
    %p32 = scmp.eq.s32.totalorder %s31, 0
    %s34 = sadd.s32 %s33, 1
    %s35 = scalar_select %p32, %s33, %s34
    %p38 = pneg %p32
    %p39 = scmp.eq.s32.totalorder %s9, 3
    %p40 = por %p38, %p39
    %p41 = scmp.ne.s32.totalorder %s33, %s36
    %p42 = scmp.eq.s32.totalorder %s9, 0
    %p43 = por %p41, %p42
    %p44 = scmp.ne.s32.totalorder %s33, %s36
    %p45 = scmp.eq.s32.totalorder %s14, 3
    %p46 = por %p44, %p45
    %p47 = scmp.ne.s32.totalorder %s36, %s37
    %p48 = scmp.eq.s32.totalorder %s14, 0
    %p49 = por %p47, %p48
    %p50 = scmp.ne.s32.totalorder %s36, %s37
    %p51 = scmp.eq.s32.totalorder %s15, 3
    %p52 = por %p50, %p51
    %p54 = scmp.ne.s32.totalorder %s37, %s53
    %p55 = scmp.eq.s32.totalorder %s15, 0
    %p56 = por %p54, %p55
    %s58 = sadd.s32 %s57, 1
    %p61 = scmp.eq.s32.totalorder %s9, 3
    %p62 = scmp.ne.s32.totalorder %s57, %s59
    %p63 = scmp.eq.s32.totalorder %s9, 0
    %p64 = por %p62, %p63
    %p65 = scmp.ne.s32.totalorder %s57, %s59
    %p66 = scmp.eq.s32.totalorder %s14, 3
    %p67 = por %p65, %p66
    %p68 = scmp.ne.s32.totalorder %s59, %s60
    %p69 = scmp.eq.s32.totalorder %s14, 0
    %p70 = por %p68, %p69
    %p71 = scmp.ne.s32.totalorder %s59, %s60
    %p72 = scmp.eq.s32.totalorder %s15, 3
    %p73 = por %p71, %p72
    %p75 = scmp.ne.s32.totalorder %s60, %s74
    %p76 = scmp.eq.s32.totalorder %s15, 0
    %p77 = por %p75, %p76
    %s79 = sadd.s32 %s78, 1
    %p82 = scmp.eq.s32.totalorder %s9, 3
    %p83 = scmp.ne.s32.totalorder %s78, %s80
    %p84 = scmp.eq.s32.totalorder %s9, 0
    %p85 = por %p83, %p84
    %p86 = scmp.ne.s32.totalorder %s78, %s80
    %p87 = scmp.eq.s32.totalorder %s14, 3
    %p88 = por %p86, %p87
    %p89 = scmp.ne.s32.totalorder %s80, %s81
    %p90 = scmp.eq.s32.totalorder %s14, 0
    %p91 = por %p89, %p90
    %p92 = scmp.ne.s32.totalorder %s80, %s81
    %p93 = scmp.eq.s32.totalorder %s15, 3
    %p94 = por %p92, %p93
    %p96 = scmp.ne.s32.totalorder %s81, %s95
    %p97 = scmp.eq.s32.totalorder %s15, 0
    %p98 = por %p96, %p97
    %s99 = ssub.s32 %s16, %s28
    %s100 = ssub.s32 %s17, %s24
    %s101 = sor.u32 %s99, %s100
    %p102 = scmp.eq.s32.totalorder %s101, 0
    %s104 = sadd.s32 %s103, 1
    %s105 = scalar_select %p102, %s103, %s104
    %p108 = pneg %p102
    %p109 = scmp.eq.s32.totalorder %s9, 3
    %p110 = por %p108, %p109
    %p111 = scmp.ne.s32.totalorder %s103, %s106
    %p112 = scmp.eq.s32.totalorder %s9, 0
    %p113 = por %p111, %p112
    %p114 = scmp.ne.s32.totalorder %s103, %s106
    %p115 = scmp.eq.s32.totalorder %s14, 3
    %p116 = por %p114, %p115
    %p117 = scmp.ne.s32.totalorder %s106, %s107
    %p118 = scmp.eq.s32.totalorder %s14, 0
    %p119 = por %p117, %p118
    %p120 = scmp.ne.s32.totalorder %s106, %s107
    %p121 = scmp.eq.s32.totalorder %s15, 3
    %p122 = por %p120, %p121
    %p124 = scmp.ne.s32.totalorder %s107, %s123
    %p125 = scmp.eq.s32.totalorder %s15, 0
    %p126 = por %p124, %p125
    %p127 = scmp.le.s32.totalorder 1, %s9
    %p128 = scmp.lt.s32.totalorder %s9, 5
    %p129 = pnand %p127, %p128
    %p130 = pneg %p129
    // Predicated region
    $region9: #{generator_forward.12} parent=5 // pred_check
      _
    $region10: #{generator_forward.12} parent=5 // pred_check_branch
      %132 = sbr.rel (%p129) target = $region12
    $region11: #{generator_forward.12} parent=5 // pred_region
      %s133 = ssub.s32 %s9, 1
      // Predicated region
      $region13: #{generator_forward.12} parent=11 // pred_check
        %p134 = pneg %p70
      $region14: #{generator_forward.12} parent=11 // pred_check_branch
        %136 = sbr.rel (%p134) target = $region16
      $region15: #{generator_forward.12} parent=11 // pred_region
        _
      $region16: #{generator_forward.12} parent=11 // pred_fallthru
        _
      // Predicated region
      $region17: #{generator_forward.12} parent=11 // pred_check
        %p137 = pneg %p91
      $region18: #{generator_forward.12} parent=11 // pred_check_branch
        %139 = sbr.rel (%p137) target = $region20
      $region19: #{generator_forward.12} parent=11 // pred_region
        _
      $region20: #{generator_forward.12} parent=11 // pred_fallthru
        _
    $region12: #{generator_forward.12} parent=5 // pred_fallthru
      _
    %p140 = scmp.lt.s32.totalorder %s9, 4
    // Predicated region
    $region21: #{generator_forward.12} parent=5 // pred_check
      %p141 = pneg %p140
    $region22: #{generator_forward.12} parent=5 // pred_check_branch
      %143 = sbr.rel (%p141) target = $region24
    $region23: #{generator_forward.12} parent=5 // pred_region
      // Predicated region
      $region25: #{generator_forward.12} parent=23 // pred_check
        %p144 = pneg %p43
      $region26: #{generator_forward.12} parent=23 // pred_check_branch
        %146 = sbr.rel (%p144) target = $region28
      $region27: #{generator_forward.12} parent=23 // pred_region
        %p147 = scmp.lt.s32.totalorder %s16, 3
        %s148 = scalar_select %p147, %s16, 3
        %p149 = scmp.lt.s32.totalorder %s17, 0
        %s150 = scalar_select %p149, %s17, 0
        %s151 = smul.addr %s148, 4
        %s152 = sadd.s32 %s150, %s151
        %s153 = smul.addr %s152, 8
        %s154 = scalar_lea.vmem %s0, %s153
      $region28: #{generator_forward.12} parent=23 // pred_fallthru
        _
    $region24: #{generator_forward.12} parent=5 // pred_fallthru
      _
    %p155 = scmp.le.s32.totalorder 1, %s9
    %p156 = scmp.lt.s32.totalorder %s9, 5
    %p157 = pnand %p155, %p156
    %p158 = pneg %p157
    // Predicated region
    $region29: #{generator_forward.12} parent=5 // pred_check
      _
    $region30: #{generator_forward.12} parent=5 // pred_check_branch
      %160 = sbr.rel (%p157) target = $region32
    $region31: #{generator_forward.12} parent=5 // pred_region
      %s161 = ssub.s32 %s9, 1
      %p162 = scmp.lt.s32.totalorder %s18, 3
      %s163 = scalar_select %p162, %s18, 3
      %p164 = scmp.lt.s32.totalorder %s19, 0
      %s165 = scalar_select %p164, %s19, 0
      %s166 = smul.addr %s163, 4
      %s167 = sadd.s32 %s165, %s166
      %s168 = smul.addr %s167, 8
      %s169 = scalar_lea.vmem %s0, %s168
      %p170 = pneg %p49
      %p171 = pneg %p46
      %p172 = pneg %p70
      %p173 = pneg %p67
      %p174 = pneg %p91
      %p175 = pneg %p88
      %p176 = pneg %p119
      %p177 = pneg %p116
      %p178 = scmp.lt.s32.totalorder %s18, 3
      %s179 = scalar_select %p178, %s18, 3
      %p180 = scmp.lt.s32.totalorder %s19, 0
      %s181 = scalar_select %p180, %s19, 0
      %s182 = smul.addr %s179, 4
      %s183 = sadd.s32 %s181, %s182
      %s184 = smul.addr %s183, 4
      %s185 = scalar_lea.vmem %s3, %s184
      %p186 = scmp.lt.s32.totalorder %s18, 3
      %s187 = scalar_select %p186, %s18, 3
      %p188 = scmp.lt.s32.totalorder %s19, 0
      %s189 = scalar_select %p188, %s19, 0
      %s190 = smul.addr %s187, 4
      %s191 = sadd.s32 %s189, %s190
      %s192 = smul.addr %s191, 8
      %s193 = scalar_lea.vmem %s0, %s192
      %p194 = scmp.lt.s32.totalorder %s18, 3
      %s195 = scalar_select %p194, %s18, 3
      %p196 = scmp.lt.s32.totalorder %s19, 0
      %s197 = scalar_select %p196, %s19, 0
      %s198 = smul.addr %s195, 4
      %s199 = sadd.s32 %s197, %s198
      %s200 = smul.addr %s199, 4
      %s201 = scalar_lea.vmem %s3, %s200
      %v202 = vld [vmem:[%s193] sm:$0xff]
      %v203 = vld [vmem:[%s193 + $0x8] sm:$0xff]
      %v204 = vld [vmem:[%s193 + $0x10] sm:$0xff]
      %v205 = vld [vmem:[%s193 + $0x18] sm:$0xff]
      %v206 = vld [vmem:[%s1] sm:$0xff]
      %v207 = vld [vmem:[%s1 + $0x8] sm:$0xff]
      %v208 = vld [vmem:[%s1 + $0x10] sm:$0xff]
      %v209 = vld [vmem:[%s1 + $0x18] sm:$0xff]
      %211 = vset.pattern.permute.xlu0 0
      %212 = vperm.xlu0 %211, %v206
      %v213 = vpop.permute.xlu0 %212
      %216 = vset.pattern.permute.xlu0 0
      %217 = vperm.xlu0 %216, %v207
      %v218 = vpop.permute.xlu0 %217
      %221 = vset.pattern.permute.xlu0 0
      %222 = vperm.xlu0 %221, %v208
      %v223 = vpop.permute.xlu0 %222
      %226 = vset.pattern.permute.xlu0 0
      %227 = vperm.xlu0 %226, %v209
      %v228 = vpop.permute.xlu0 %227
      %v230 = vmul.f32 %v202, %v213
      %v231 = vmul.f32 %v203, %v218
      %v232 = vmul.f32 %v204, %v223
      %v233 = vmul.f32 %v205, %v228
      %v234 = vld [vmem:[%s2] sm:$0xff]
      %v235 = vld [vmem:[%s2 + $0x8] sm:$0xff]
      %v236 = vld [vmem:[%s2 + $0x10] sm:$0xff]
      %v237 = vld [vmem:[%s2 + $0x18] sm:$0xff]
      %239 = vset.pattern.permute.xlu0 0
      %240 = vperm.xlu0 %239, %v234
      %v241 = vpop.permute.xlu0 %240
      %244 = vset.pattern.permute.xlu0 0
      %245 = vperm.xlu0 %244, %v235
      %v246 = vpop.permute.xlu0 %245
      %249 = vset.pattern.permute.xlu0 0
      %250 = vperm.xlu0 %249, %v236
      %v251 = vpop.permute.xlu0 %250
      %254 = vset.pattern.permute.xlu0 0
      %255 = vperm.xlu0 %254, %v237
      %v256 = vpop.permute.xlu0 %255
      %v258 = vadd.f32 %v230, %v241
      %v259 = vadd.f32 %v231, %v246
      %v260 = vadd.f32 %v232, %v251
      %v261 = vadd.f32 %v233, %v256
      %v262 = vmax.f32 %v258, 0.0
      %v263 = vmax.f32 %v259, 0.0
      %v264 = vmax.f32 %v260, 0.0
      %v265 = vmax.f32 %v261, 0.0
      %v266 = vpack.c.bf16 %v262, %v262
      %v267 = vpack.c.bf16 %v263, %v263
      %v268 = vpack.c.bf16 %v264, %v264
      %v269 = vpack.c.bf16 %v265, %v265
      %vm270 = vcmask 257024
      %271 = vst.msk [vmem:[%s201] sm:$0xf] %vm270, %v266
      %272 = vst.msk [vmem:[%s201 + $0x4] sm:$0xf] %vm270, %v267
      %273 = vst.msk [vmem:[%s201 + $0x8] sm:$0xf] %vm270, %v268
      %274 = vst.msk [vmem:[%s201 + $0xc] sm:$0xf] %vm270, %v269
      %p275 = scmp.lt.s32.totalorder %s18, 3
      %s276 = scalar_select %p275, %s18, 3
      %p277 = scmp.lt.s32.totalorder %s19, 0
      %s278 = scalar_select %p277, %s19, 0
      %s279 = smul.addr %s276, 4
      %s280 = sadd.s32 %s278, %s279
      %s281 = smul.addr %s280, 4
      %s282 = scalar_lea.vmem %s3, %s281
      // Predicated region
      $region33: #{generator_forward.12} parent=31 // pred_check
        %p283 = pneg %p116
      $region34: #{generator_forward.12} parent=31 // pred_check_branch
        %285 = sbr.rel (%p283) target = $region36
      $region35: #{generator_forward.12} parent=31 // pred_region
        _
      $region36: #{generator_forward.12} parent=31 // pred_fallthru
        _
    $region32: #{generator_forward.12} parent=5 // pred_fallthru
      _
    %p286 = scmp.le.s32.totalorder 2, %s9
    // Predicated region
    $region37: #{generator_forward.12} parent=5 // pred_check
      %p287 = pneg %p286
    $region38: #{generator_forward.12} parent=5 // pred_check_branch
      %289 = sbr.rel (%p287) target = $region40
    $region39: #{generator_forward.12} parent=5 // pred_region
      %s290 = ssub.s32 %s9, 2
      // Predicated region
      $region41: #{generator_forward.12} parent=39 // pred_check
        %p291 = pneg %p122
      $region42: #{generator_forward.12} parent=39 // pred_check_branch
        %293 = sbr.rel (%p291) target = $region44
      $region43: #{generator_forward.12} parent=39 // pred_region
        %p294 = scmp.lt.s32.totalorder %s20, 3
        %s295 = scalar_select %p294, %s20, 3
        %p296 = scmp.lt.s32.totalorder %s21, 0
        %s297 = scalar_select %p296, %s21, 0
        %s298 = smul.addr %s295, 4
        %s299 = sadd.s32 %s297, %s298
        %s300 = smul.addr %s299, 4
        %s301 = scalar_lea.vmem %s3, %s300
      $region44: #{generator_forward.12} parent=39 // pred_fallthru
        _
    $region40: #{generator_forward.12} parent=5 // pred_fallthru
      _
  $region6: #{generator_forward.12} parent=0 // loop_footer
    %s13 = sadd.s32 1, %s9
  $region7: #{generator_forward.12} parent=0 // loop_footer_branch
    %8 = sbr.rel target = $region3
  $region8: #{generator_forward.12} parent=0 // loop_exit
    _

// kernel: generator_forward.14
$region0: #{generator_forward.14}
  #allocation0 [shape = 'u32[]', space=smem, size = 0x4, offset = 0x4, fixed_abs, tag = 'smem constant byte address 0x4 - core index']
  #allocation1 [shape = 'u32[72,128]{1,0:T(1,128)}', space=vmem, size = 0x9000, scoped, tag = 'internal scratch']
  %s0 = inlined_call_operand.vmem [shape: f32[4,16,128], index: 0, kind: input, shape index: {}]
  %s1 = inlined_call_operand.vmem [shape: f32[16,1], index: 1, kind: input, shape index: {}]
  %s2 = inlined_call_operand.vmem [shape: f32[16,1], index: 2, kind: input, shape index: {}]
  %s3 = inlined_call_operand.vmem [shape: bf16[4,16,128], index: 3, kind: output, shape index: {}]
  %s4 = sld [smem:[#allocation0]]
  $region45: #{generator_forward.14} parent=0
    _
  %s6 = ssub.s32 1, %s4
  %s7 = scalar_select 0, %s6, %s4
  loop: start=0, step=1, limit=6
  $region2: #{generator_forward.14} parent=0 // loop_pre_header
    _
  $region3: #{generator_forward.14} parent=0 // loop_header
    %s9 = sphi 0, %s13
    %p10 = scmp.ge.s32.totalorder %s9, 6
    %s16 = sphi 0, %s28
    %s17 = sphi 0, %s24
    %s18 = sphi 0, %s16
    %s19 = sphi 0, %s17
    %s20 = sphi 0, %s18
    %s21 = sphi 0, %s19
    %s33 = sphi 0, %s35
    %s36 = sphi 0, %s33
    %s37 = sphi 0, %s36
    %s53 = sphi 0, %s37
    %s57 = sphi 0, %s57
    %s59 = sphi 0, %s57
    %s60 = sphi 0, %s59
    %s74 = sphi 0, %s60
    %s78 = sphi 0, %s78
    %s80 = sphi 0, %s78
    %s81 = sphi 0, %s80
    %s95 = sphi 0, %s81
    %s103 = sphi 0, %s105
    %s106 = sphi 0, %s103
    %s107 = sphi 0, %s106
    %s123 = sphi 0, %s107
  $region4: #{generator_forward.14} parent=0 // loop_header_branch
    %12 = sbr.rel (%p10) target = $region8
  $region5: #{generator_forward.14} parent=0 // loop_body
    %s14 = ssub.s32 %s9, 1
    %s15 = ssub.s32 %s9, 2
    %s22 = sadd.s32 1, %s17
    %p23 = scmp.ge.s32.totalorder %s22, 1
    %s24 = scalar_select %p23, 0, %s22
    %s25 = sadd.s32 1, %s16
    %s26 = scalar_select %p23, %s25, %s16
    %p27 = scmp.ge.s32.totalorder %s26, 4
    %s28 = scalar_select %p27, 0, %s26
    %s29 = ssub.s32 %s16, %s28
    %s30 = ssub.s32 %s17, %s24
    %s31 = sor.u32 %s29, %s30
    %p32 = scmp.eq.s32.totalorder %s31, 0
    %s34 = sadd.s32 %s33, 1
    %s35 = scalar_select %p32, %s33, %s34
    %p38 = pneg %p32
    %p39 = scmp.eq.s32.totalorder %s9, 3
    %p40 = por %p38, %p39
    %p41 = scmp.ne.s32.totalorder %s33, %s36
    %p42 = scmp.eq.s32.totalorder %s9, 0
    %p43 = por %p41, %p42
    %p44 = scmp.ne.s32.totalorder %s33, %s36
    %p45 = scmp.eq.s32.totalorder %s14, 3
    %p46 = por %p44, %p45
    %p47 = scmp.ne.s32.totalorder %s36, %s37
    %p48 = scmp.eq.s32.totalorder %s14, 0
    %p49 = por %p47, %p48
    %p50 = scmp.ne.s32.totalorder %s36, %s37
    %p51 = scmp.eq.s32.totalorder %s15, 3
    %p52 = por %p50, %p51
    %p54 = scmp.ne.s32.totalorder %s37, %s53
    %p55 = scmp.eq.s32.totalorder %s15, 0
    %p56 = por %p54, %p55
    %s58 = sadd.s32 %s57, 1
    %p61 = scmp.eq.s32.totalorder %s9, 3
    %p62 = scmp.ne.s32.totalorder %s57, %s59
    %p63 = scmp.eq.s32.totalorder %s9, 0
    %p64 = por %p62, %p63
    %p65 = scmp.ne.s32.totalorder %s57, %s59
    %p66 = scmp.eq.s32.totalorder %s14, 3
    %p67 = por %p65, %p66
    %p68 = scmp.ne.s32.totalorder %s59, %s60
    %p69 = scmp.eq.s32.totalorder %s14, 0
    %p70 = por %p68, %p69
    %p71 = scmp.ne.s32.totalorder %s59, %s60
    %p72 = scmp.eq.s32.totalorder %s15, 3
    %p73 = por %p71, %p72
    %p75 = scmp.ne.s32.totalorder %s60, %s74
    %p76 = scmp.eq.s32.totalorder %s15, 0
    %p77 = por %p75, %p76
    %s79 = sadd.s32 %s78, 1
    %p82 = scmp.eq.s32.totalorder %s9, 3
    %p83 = scmp.ne.s32.totalorder %s78, %s80
    %p84 = scmp.eq.s32.totalorder %s9, 0
    %p85 = por %p83, %p84
    %p86 = scmp.ne.s32.totalorder %s78, %s80
    %p87 = scmp.eq.s32.totalorder %s14, 3
    %p88 = por %p86, %p87
    %p89 = scmp.ne.s32.totalorder %s80, %s81
    %p90 = scmp.eq.s32.totalorder %s14, 0
    %p91 = por %p89, %p90
    %p92 = scmp.ne.s32.totalorder %s80, %s81
    %p93 = scmp.eq.s32.totalorder %s15, 3
    %p94 = por %p92, %p93
    %p96 = scmp.ne.s32.totalorder %s81, %s95
    %p97 = scmp.eq.s32.totalorder %s15, 0
    %p98 = por %p96, %p97
    %s99 = ssub.s32 %s16, %s28
    %s100 = ssub.s32 %s17, %s24
    %s101 = sor.u32 %s99, %s100
    %p102 = scmp.eq.s32.totalorder %s101, 0
    %s104 = sadd.s32 %s103, 1
    %s105 = scalar_select %p102, %s103, %s104
    %p108 = pneg %p102
    %p109 = scmp.eq.s32.totalorder %s9, 3
    %p110 = por %p108, %p109
    %p111 = scmp.ne.s32.totalorder %s103, %s106
    %p112 = scmp.eq.s32.totalorder %s9, 0
    %p113 = por %p111, %p112
    %p114 = scmp.ne.s32.totalorder %s103, %s106
    %p115 = scmp.eq.s32.totalorder %s14, 3
    %p116 = por %p114, %p115
    %p117 = scmp.ne.s32.totalorder %s106, %s107
    %p118 = scmp.eq.s32.totalorder %s14, 0
    %p119 = por %p117, %p118
    %p120 = scmp.ne.s32.totalorder %s106, %s107
    %p121 = scmp.eq.s32.totalorder %s15, 3
    %p122 = por %p120, %p121
    %p124 = scmp.ne.s32.totalorder %s107, %s123
    %p125 = scmp.eq.s32.totalorder %s15, 0
    %p126 = por %p124, %p125
    %p127 = scmp.le.s32.totalorder 1, %s9
    %p128 = scmp.lt.s32.totalorder %s9, 5
    %p129 = pnand %p127, %p128
    %p130 = pneg %p129
    // Predicated region
    $region9: #{generator_forward.14} parent=5 // pred_check
      _
    $region10: #{generator_forward.14} parent=5 // pred_check_branch
      %132 = sbr.rel (%p129) target = $region12
    $region11: #{generator_forward.14} parent=5 // pred_region
      %s133 = ssub.s32 %s9, 1
      // Predicated region
      $region13: #{generator_forward.14} parent=11 // pred_check
        %p134 = pneg %p70
      $region14: #{generator_forward.14} parent=11 // pred_check_branch
        %136 = sbr.rel (%p134) target = $region16
      $region15: #{generator_forward.14} parent=11 // pred_region
        _
      $region16: #{generator_forward.14} parent=11 // pred_fallthru
        _
      // Predicated region
      $region17: #{generator_forward.14} parent=11 // pred_check
        %p137 = pneg %p91
      $region18: #{generator_forward.14} parent=11 // pred_check_branch
        %139 = sbr.rel (%p137) target = $region20
      $region19: #{generator_forward.14} parent=11 // pred_region
        _
      $region20: #{generator_forward.14} parent=11 // pred_fallthru
        _
    $region12: #{generator_forward.14} parent=5 // pred_fallthru
      _
    %p140 = scmp.lt.s32.totalorder %s9, 4
    // Predicated region
    $region21: #{generator_forward.14} parent=5 // pred_check
      %p141 = pneg %p140
    $region22: #{generator_forward.14} parent=5 // pred_check_branch
      %143 = sbr.rel (%p141) target = $region24
    $region23: #{generator_forward.14} parent=5 // pred_region
      // Predicated region
      $region25: #{generator_forward.14} parent=23 // pred_check
        %p144 = pneg %p43
      $region26: #{generator_forward.14} parent=23 // pred_check_branch
        %146 = sbr.rel (%p144) target = $region28
      $region27: #{generator_forward.14} parent=23 // pred_region
        %p147 = scmp.lt.s32.totalorder %s16, 3
        %s148 = scalar_select %p147, %s16, 3
        %p149 = scmp.lt.s32.totalorder %s17, 0
        %s150 = scalar_select %p149, %s17, 0
        %s151 = smul.addr %s148, 2
        %s152 = sadd.s32 %s150, %s151
        %s153 = smul.addr %s152, 8
        %s154 = scalar_lea.vmem %s0, %s153
      $region28: #{generator_forward.14} parent=23 // pred_fallthru
        _
    $region24: #{generator_forward.14} parent=5 // pred_fallthru
      _
    %p155 = scmp.le.s32.totalorder 1, %s9
    %p156 = scmp.lt.s32.totalorder %s9, 5
    %p157 = pnand %p155, %p156
    %p158 = pneg %p157
    // Predicated region
    $region29: #{generator_forward.14} parent=5 // pred_check
      _
    $region30: #{generator_forward.14} parent=5 // pred_check_branch
      %160 = sbr.rel (%p157) target = $region32
    $region31: #{generator_forward.14} parent=5 // pred_region
      %s161 = ssub.s32 %s9, 1
      %p162 = scmp.lt.s32.totalorder %s18, 3
      %s163 = scalar_select %p162, %s18, 3
      %p164 = scmp.lt.s32.totalorder %s19, 0
      %s165 = scalar_select %p164, %s19, 0
      %s166 = smul.addr %s163, 2
      %s167 = sadd.s32 %s165, %s166
      %s168 = smul.addr %s167, 8
      %s169 = scalar_lea.vmem %s0, %s168
      %p170 = pneg %p49
      %p171 = pneg %p46
      %p172 = pneg %p70
      %p173 = pneg %p67
      %p174 = pneg %p91
      %p175 = pneg %p88
      %p176 = pneg %p119
      %p177 = pneg %p116
      %p178 = scmp.lt.s32.totalorder %s18, 3
      %s179 = scalar_select %p178, %s18, 3
      %p180 = scmp.lt.s32.totalorder %s19, 0
      %s181 = scalar_select %p180, %s19, 0
      %s182 = smul.addr %s179, 2
      %s183 = sadd.s32 %s181, %s182
      %s184 = smul.addr %s183, 4
      %s185 = scalar_lea.vmem %s3, %s184
      %p186 = scmp.lt.s32.totalorder %s18, 3
      %s187 = scalar_select %p186, %s18, 3
      %p188 = scmp.lt.s32.totalorder %s19, 0
      %s189 = scalar_select %p188, %s19, 0
      %s190 = smul.addr %s187, 2
      %s191 = sadd.s32 %s189, %s190
      %s192 = smul.addr %s191, 8
      %s193 = scalar_lea.vmem %s0, %s192
      %p194 = scmp.lt.s32.totalorder %s18, 3
      %s195 = scalar_select %p194, %s18, 3
      %p196 = scmp.lt.s32.totalorder %s19, 0
      %s197 = scalar_select %p196, %s19, 0
      %s198 = smul.addr %s195, 2
      %s199 = sadd.s32 %s197, %s198
      %s200 = smul.addr %s199, 4
      %s201 = scalar_lea.vmem %s3, %s200
      %v202 = vld [vmem:[%s193] sm:$0xff]
      %v203 = vld [vmem:[%s193 + $0x8] sm:$0xff]
      %v204 = vld [vmem:[%s1] sm:$0xff]
      %v205 = vld [vmem:[%s1 + $0x8] sm:$0xff]
      %207 = vset.pattern.permute.xlu0 0
      %208 = vperm.xlu0 %207, %v204
      %v209 = vpop.permute.xlu0 %208
      %212 = vset.pattern.permute.xlu0 0
      %213 = vperm.xlu0 %212, %v205
      %v214 = vpop.permute.xlu0 %213
      %v216 = vmul.f32 %v202, %v209
      %v217 = vmul.f32 %v203, %v214
      %v218 = vld [vmem:[%s2] sm:$0xff]
      %v219 = vld [vmem:[%s2 + $0x8] sm:$0xff]
      %221 = vset.pattern.permute.xlu0 0
      %222 = vperm.xlu0 %221, %v218
      %v223 = vpop.permute.xlu0 %222
      %226 = vset.pattern.permute.xlu0 0
      %227 = vperm.xlu0 %226, %v219
      %v228 = vpop.permute.xlu0 %227
      %v230 = vadd.f32 %v216, %v223
      %v231 = vadd.f32 %v217, %v228
      %v232 = vmax.f32 %v230, 0.0
      %v233 = vmax.f32 %v231, 0.0
      %v234 = vpack.c.bf16 %v232, %v232
      %v235 = vpack.c.bf16 %v233, %v233
      %236 = vst [vmem:[%s201] sm:$0xf] %v234
      %237 = vst [vmem:[%s201 + $0x4] sm:$0xf] %v235
      %p238 = scmp.lt.s32.totalorder %s18, 3
      %s239 = scalar_select %p238, %s18, 3
      %p240 = scmp.lt.s32.totalorder %s19, 0
      %s241 = scalar_select %p240, %s19, 0
      %s242 = smul.addr %s239, 2
      %s243 = sadd.s32 %s241, %s242
      %s244 = smul.addr %s243, 4
      %s245 = scalar_lea.vmem %s3, %s244
      // Predicated region
      $region33: #{generator_forward.14} parent=31 // pred_check
        %p246 = pneg %p116
      $region34: #{generator_forward.14} parent=31 // pred_check_branch
        %248 = sbr.rel (%p246) target = $region36
      $region35: #{generator_forward.14} parent=31 // pred_region
        _
      $region36: #{generator_forward.14} parent=31 // pred_fallthru
        _
    $region32: #{generator_forward.14} parent=5 // pred_fallthru
      _
    %p249 = scmp.le.s32.totalorder 2, %s9
    // Predicated region
    $region37: #{generator_forward.14} parent=5 // pred_check
      %p250 = pneg %p249
    $region38: #{generator_forward.14} parent=5 // pred_check_branch
      %252 = sbr.rel (%p250) target = $region40
    $region39: #{generator_forward.14} parent=5 // pred_region
      %s253 = ssub.s32 %s9, 2
      // Predicated region
      $region41: #{generator_forward.14} parent=39 // pred_check
        %p254 = pneg %p122
      $region42: #{generator_forward.14} parent=39 // pred_check_branch
        %256 = sbr.rel (%p254) target = $region44
      $region43: #{generator_forward.14} parent=39 // pred_region
        %p257 = scmp.lt.s32.totalorder %s20, 3
        %s258 = scalar_select %p257, %s20, 3
        %p259 = scmp.lt.s32.totalorder %s21, 0
        %s260 = scalar_select %p259, %s21, 0
        %s261 = smul.addr %s258, 2
        %s262 = sadd.s32 %s260, %s261
        %s263 = smul.addr %s262, 4
        %s264 = scalar_lea.vmem %s3, %s263
      $region44: #{generator_forward.14} parent=39 // pred_fallthru
        _
    $region40: #{generator_forward.14} parent=5 // pred_fallthru
      _
  $region6: #{generator_forward.14} parent=0 // loop_footer
    %s13 = sadd.s32 1, %s9
  $region7: #{generator_forward.14} parent=0 // loop_footer_branch
    %8 = sbr.rel target = $region3
  $region8: #{generator_forward.14} parent=0 // loop_exit
    _

// kernel: generator_forward.13
$region0: #{generator_forward.13}
  #allocation0 [shape = 'u32[]', space=smem, size = 0x4, offset = 0x4, fixed_abs, tag = 'smem constant byte address 0x4 - core index']
  #allocation1 [shape = 'u32[72,128]{1,0:T(1,128)}', space=vmem, size = 0x9000, scoped, tag = 'internal scratch']
  %s0 = inlined_call_operand.vmem [shape: bf16[4,16,128], index: 0, kind: input, shape index: {}]
  %s1 = inlined_call_operand.vmem [shape: f32[16,1], index: 1, kind: input, shape index: {}]
  %s2 = inlined_call_operand.vmem [shape: bf16[4,128,128], index: 2, kind: input, shape index: {}]
  %s3 = inlined_call_operand.vmem [shape: f32[4,16,128], index: 3, kind: output, shape index: {}]
  %s4 = sld [smem:[#allocation0]]
  $region45: #{generator_forward.13} parent=0
    _
  %s6 = ssub.s32 1, %s4
  %s7 = scalar_select 0, %s6, %s4
  loop: start=0, step=1, limit=6
  $region2: #{generator_forward.13} parent=0 // loop_pre_header
    _
  $region3: #{generator_forward.13} parent=0 // loop_header
    %s9 = sphi 0, %s13
    %p10 = scmp.ge.s32.totalorder %s9, 6
    %s16 = sphi 0, %s28
    %s17 = sphi 0, %s24
    %s18 = sphi 0, %s16
    %s19 = sphi 0, %s17
    %s20 = sphi 0, %s18
    %s21 = sphi 0, %s19
    %s31 = sphi 0, %s33
    %s34 = sphi 0, %s31
    %s35 = sphi 0, %s34
    %s51 = sphi 0, %s35
    %s55 = sphi 0, %s55
    %s57 = sphi 0, %s55
    %s58 = sphi 0, %s57
    %s72 = sphi 0, %s58
    %s80 = sphi 0, %s82
    %s83 = sphi 0, %s80
    %s84 = sphi 0, %s83
    %s100 = sphi 0, %s84
    %s108 = sphi 0, %s110
    %s111 = sphi 0, %s108
    %s112 = sphi 0, %s111
    %s128 = sphi 0, %s112
  $region4: #{generator_forward.13} parent=0 // loop_header_branch
    %12 = sbr.rel (%p10) target = $region8
  $region5: #{generator_forward.13} parent=0 // loop_body
    %s14 = ssub.s32 %s9, 1
    %s15 = ssub.s32 %s9, 2
    %s22 = sadd.s32 1, %s17
    %p23 = scmp.ge.s32.totalorder %s22, 1
    %s24 = scalar_select %p23, 0, %s22
    %s25 = sadd.s32 1, %s16
    %s26 = scalar_select %p23, %s25, %s16
    %p27 = scmp.ge.s32.totalorder %s26, 4
    %s28 = scalar_select %p27, 0, %s26
    %s29 = ssub.s32 %s16, %s28
    %p30 = scmp.eq.s32.totalorder %s29, 0
    %s32 = sadd.s32 %s31, 1
    %s33 = scalar_select %p30, %s31, %s32
    %p36 = pneg %p30
    %p37 = scmp.eq.s32.totalorder %s9, 3
    %p38 = por %p36, %p37
    %p39 = scmp.ne.s32.totalorder %s31, %s34
    %p40 = scmp.eq.s32.totalorder %s9, 0
    %p41 = por %p39, %p40
    %p42 = scmp.ne.s32.totalorder %s31, %s34
    %p43 = scmp.eq.s32.totalorder %s14, 3
    %p44 = por %p42, %p43
    %p45 = scmp.ne.s32.totalorder %s34, %s35
    %p46 = scmp.eq.s32.totalorder %s14, 0
    %p47 = por %p45, %p46
    %p48 = scmp.ne.s32.totalorder %s34, %s35
    %p49 = scmp.eq.s32.totalorder %s15, 3
    %p50 = por %p48, %p49
    %p52 = scmp.ne.s32.totalorder %s35, %s51
    %p53 = scmp.eq.s32.totalorder %s15, 0
    %p54 = por %p52, %p53
    %s56 = sadd.s32 %s55, 1
    %p59 = scmp.eq.s32.totalorder %s9, 3
    %p60 = scmp.ne.s32.totalorder %s55, %s57
    %p61 = scmp.eq.s32.totalorder %s9, 0
    %p62 = por %p60, %p61
    %p63 = scmp.ne.s32.totalorder %s55, %s57
    %p64 = scmp.eq.s32.totalorder %s14, 3
    %p65 = por %p63, %p64
    %p66 = scmp.ne.s32.totalorder %s57, %s58
    %p67 = scmp.eq.s32.totalorder %s14, 0
    %p68 = por %p66, %p67
    %p69 = scmp.ne.s32.totalorder %s57, %s58
    %p70 = scmp.eq.s32.totalorder %s15, 3
    %p71 = por %p69, %p70
    %p73 = scmp.ne.s32.totalorder %s58, %s72
    %p74 = scmp.eq.s32.totalorder %s15, 0
    %p75 = por %p73, %p74
    %s76 = ssub.s32 %s16, %s28
    %s77 = ssub.s32 %s17, %s24
    %s78 = sor.u32 %s76, %s77
    %p79 = scmp.eq.s32.totalorder %s78, 0
    %s81 = sadd.s32 %s80, 1
    %s82 = scalar_select %p79, %s80, %s81
    %p85 = pneg %p79
    %p86 = scmp.eq.s32.totalorder %s9, 3
    %p87 = por %p85, %p86
    %p88 = scmp.ne.s32.totalorder %s80, %s83
    %p89 = scmp.eq.s32.totalorder %s9, 0
    %p90 = por %p88, %p89
    %p91 = scmp.ne.s32.totalorder %s80, %s83
    %p92 = scmp.eq.s32.totalorder %s14, 3
    %p93 = por %p91, %p92
    %p94 = scmp.ne.s32.totalorder %s83, %s84
    %p95 = scmp.eq.s32.totalorder %s14, 0
    %p96 = por %p94, %p95
    %p97 = scmp.ne.s32.totalorder %s83, %s84
    %p98 = scmp.eq.s32.totalorder %s15, 3
    %p99 = por %p97, %p98
    %p101 = scmp.ne.s32.totalorder %s84, %s100
    %p102 = scmp.eq.s32.totalorder %s15, 0
    %p103 = por %p101, %p102
    %s104 = ssub.s32 %s16, %s28
    %s105 = ssub.s32 %s17, %s24
    %s106 = sor.u32 %s104, %s105
    %p107 = scmp.eq.s32.totalorder %s106, 0
    %s109 = sadd.s32 %s108, 1
    %s110 = scalar_select %p107, %s108, %s109
    %p113 = pneg %p107
    %p114 = scmp.eq.s32.totalorder %s9, 3
    %p115 = por %p113, %p114
    %p116 = scmp.ne.s32.totalorder %s108, %s111
    %p117 = scmp.eq.s32.totalorder %s9, 0
    %p118 = por %p116, %p117
    %p119 = scmp.ne.s32.totalorder %s108, %s111
    %p120 = scmp.eq.s32.totalorder %s14, 3
    %p121 = por %p119, %p120
    %p122 = scmp.ne.s32.totalorder %s111, %s112
    %p123 = scmp.eq.s32.totalorder %s14, 0
    %p124 = por %p122, %p123
    %p125 = scmp.ne.s32.totalorder %s111, %s112
    %p126 = scmp.eq.s32.totalorder %s15, 3
    %p127 = por %p125, %p126
    %p129 = scmp.ne.s32.totalorder %s112, %s128
    %p130 = scmp.eq.s32.totalorder %s15, 0
    %p131 = por %p129, %p130
    %p132 = scmp.le.s32.totalorder 1, %s9
    %p133 = scmp.lt.s32.totalorder %s9, 5
    %p134 = pnand %p132, %p133
    %p135 = pneg %p134
    // Predicated region
    $region9: #{generator_forward.13} parent=5 // pred_check
      _
    $region10: #{generator_forward.13} parent=5 // pred_check_branch
      %137 = sbr.rel (%p134) target = $region12
    $region11: #{generator_forward.13} parent=5 // pred_region
      %s138 = ssub.s32 %s9, 1
      // Predicated region
      $region13: #{generator_forward.13} parent=11 // pred_check
        %p139 = pneg %p68
      $region14: #{generator_forward.13} parent=11 // pred_check_branch
        %141 = sbr.rel (%p139) target = $region16
      $region15: #{generator_forward.13} parent=11 // pred_region
        _
      $region16: #{generator_forward.13} parent=11 // pred_fallthru
        _
    $region12: #{generator_forward.13} parent=5 // pred_fallthru
      _
    %p142 = scmp.lt.s32.totalorder %s9, 4
    // Predicated region
    $region17: #{generator_forward.13} parent=5 // pred_check
      %p143 = pneg %p142
    $region18: #{generator_forward.13} parent=5 // pred_check_branch
      %145 = sbr.rel (%p143) target = $region20
    $region19: #{generator_forward.13} parent=5 // pred_region
      // Predicated region
      $region21: #{generator_forward.13} parent=19 // pred_check
        %p146 = pneg %p41
      $region22: #{generator_forward.13} parent=19 // pred_check_branch
        %148 = sbr.rel (%p146) target = $region24
      $region23: #{generator_forward.13} parent=19 // pred_region
        %p149 = scmp.lt.s32.totalorder %s16, 3
        %s150 = scalar_select %p149, %s16, 3
        %s151 = smul.addr %s150, 2
        %s152 = smul.addr %s151, 4
        %s153 = scalar_lea.vmem %s0, %s152
      $region24: #{generator_forward.13} parent=19 // pred_fallthru
        _
      // Predicated region
      $region25: #{generator_forward.13} parent=19 // pred_check
        %p154 = pneg %p90
      $region26: #{generator_forward.13} parent=19 // pred_check_branch
        %156 = sbr.rel (%p154) target = $region28
      $region27: #{generator_forward.13} parent=19 // pred_region
        %p157 = scmp.lt.s32.totalorder %s16, 3
        %s158 = scalar_select %p157, %s16, 3
        %p159 = scmp.lt.s32.totalorder %s17, 0
        %s160 = scalar_select %p159, %s17, 0
        %s161 = smul.addr %s158, 16
        %s162 = sadd.s32 %s160, %s161
        %s163 = smul.addr %s162, 4
        %s164 = scalar_lea.vmem %s2, %s163
      $region28: #{generator_forward.13} parent=19 // pred_fallthru
        _
    $region20: #{generator_forward.13} parent=5 // pred_fallthru
      _
    %p165 = scmp.le.s32.totalorder 1, %s9
    %p166 = scmp.lt.s32.totalorder %s9, 5
    %p167 = pnand %p165, %p166
    %p168 = pneg %p167
    // Predicated region
    $region29: #{generator_forward.13} parent=5 // pred_check
      _
    $region30: #{generator_forward.13} parent=5 // pred_check_branch
      %170 = sbr.rel (%p167) target = $region32
    $region31: #{generator_forward.13} parent=5 // pred_region
      %s171 = ssub.s32 %s9, 1
      %p172 = scmp.lt.s32.totalorder %s18, 3
      %s173 = scalar_select %p172, %s18, 3
      %s174 = smul.addr %s173, 2
      %s175 = smul.addr %s174, 4
      %s176 = scalar_lea.vmem %s0, %s175
      %p177 = pneg %p47
      %p178 = pneg %p44
      %p179 = pneg %p68
      %p180 = pneg %p65
      %p181 = scmp.lt.s32.totalorder %s18, 3
      %s182 = scalar_select %p181, %s18, 3
      %p183 = scmp.lt.s32.totalorder %s19, 0
      %s184 = scalar_select %p183, %s19, 0
      %s185 = smul.addr %s182, 16
      %s186 = sadd.s32 %s184, %s185
      %s187 = smul.addr %s186, 4
      %s188 = scalar_lea.vmem %s2, %s187
      %p189 = pneg %p96
      %p190 = pneg %p93
      %p191 = pneg %p124
      %p192 = pneg %p121
      %p193 = scmp.lt.s32.totalorder %s18, 3
      %s194 = scalar_select %p193, %s18, 3
      %p195 = scmp.lt.s32.totalorder %s19, 0
      %s196 = scalar_select %p195, %s19, 0
      %s197 = smul.addr %s194, 2
      %s198 = sadd.s32 %s196, %s197
      %s199 = smul.addr %s198, 8
      %s200 = scalar_lea.vmem %s3, %s199
      %p201 = scmp.lt.s32.totalorder %s18, 3
      %s202 = scalar_select %p201, %s18, 3
      %s203 = smul.addr %s202, 2
      %s204 = smul.addr %s203, 4
      %s205 = scalar_lea.vmem %s0, %s204
      %p206 = scmp.lt.s32.totalorder %s18, 3
      %s207 = scalar_select %p206, %s18, 3
      %p208 = scmp.lt.s32.totalorder %s19, 0
      %s209 = scalar_select %p208, %s19, 0
      %s210 = smul.addr %s207, 16
      %s211 = sadd.s32 %s209, %s210
      %s212 = smul.addr %s211, 4
      %s213 = scalar_lea.vmem %s2, %s212
      %p214 = scmp.lt.s32.totalorder %s18, 3
      %s215 = scalar_select %p214, %s18, 3
      %p216 = scmp.lt.s32.totalorder %s19, 0
      %s217 = scalar_select %p216, %s19, 0
      %s218 = smul.addr %s215, 2
      %s219 = sadd.s32 %s217, %s218
      %s220 = smul.addr %s219, 8
      %s221 = scalar_lea.vmem %s3, %s220
      %v222 = vld [vmem:[%s205] sm:$0xf]
      %v223 = vld [vmem:[%s205 + $0x4] sm:$0xf]
      %v224 = vld [vmem:[%s213] sm:$0xf]
      %v225 = vld [vmem:[%s213 + $0x4] sm:$0xf]
      %v226 = vld [vmem:[%s213 + $0x8] sm:$0xf]
      %v227 = vld [vmem:[%s213 + $0xc] sm:$0xf]
      %v228 = vld [vmem:[%s213 + $0x10] sm:$0xf]
      %v229 = vld [vmem:[%s213 + $0x14] sm:$0xf]
      %v230 = vld [vmem:[%s213 + $0x18] sm:$0xf]
      %v231 = vld [vmem:[%s213 + $0x1c] sm:$0xf]
      %v232 = vld [vmem:[%s213 + $0x20] sm:$0xf]
      %v233 = vld [vmem:[%s213 + $0x24] sm:$0xf]
      %v234 = vld [vmem:[%s213 + $0x28] sm:$0xf]
      %v235 = vld [vmem:[%s213 + $0x2c] sm:$0xf]
      %v236 = vld [vmem:[%s213 + $0x30] sm:$0xf]
      %v237 = vld [vmem:[%s213 + $0x34] sm:$0xf]
      %v238 = vld [vmem:[%s213 + $0x38] sm:$0xf]
      %v239 = vld [vmem:[%s213 + $0x3c] sm:$0xf]
      %v240 = vld [vmem:[%s1] sm:$0xff]
      %v241 = vld [vmem:[%s1 + $0x8] sm:$0xff]
      %243 = vset.pattern.permute.xlu0 0
      %244 = vperm.xlu0 %243, %v240
      %v245 = vpop.permute.xlu0 %244
      %248 = vset.pattern.permute.xlu0 0
      %249 = vperm.xlu0 %248, %v241
      %v250 = vpop.permute.xlu0 %249
      %v254 = vunpack.c.l.b16 %v222
      %v255 = vunpack.c.l.b16 %v223
      %v256 = vpack.c.b16 %v255, %v254
      %v274 = vunpack.c.l.b16 %v224
      %v275 = vunpack.c.l.b16 %v225
      %v276 = vunpack.c.l.b16 %v226
      %v277 = vunpack.c.l.b16 %v227
      %v278 = vunpack.c.l.b16 %v228
      %v279 = vunpack.c.l.b16 %v229
      %v280 = vunpack.c.l.b16 %v230
      %v281 = vunpack.c.l.b16 %v231
      %v282 = vunpack.c.l.b16 %v232
      %v283 = vunpack.c.l.b16 %v233
      %v284 = vunpack.c.l.b16 %v234
      %v285 = vunpack.c.l.b16 %v235
      %v286 = vunpack.c.l.b16 %v236
      %v287 = vunpack.c.l.b16 %v237
      %v288 = vunpack.c.l.b16 %v238
      %v289 = vunpack.c.l.b16 %v239
      %v290 = vpack.c.b16 %v275, %v274
      %v291 = vpack.c.b16 %v277, %v276
      %v292 = vpack.c.b16 %v279, %v278
      %v293 = vpack.c.b16 %v281, %v280
      %v294 = vpack.c.b16 %v283, %v282
      %v295 = vpack.c.b16 %v285, %v284
      %v296 = vpack.c.b16 %v287, %v286
      %v297 = vpack.c.b16 %v289, %v288
      %306 = vmatpush.bf16.msra.mxu0 %v297
      %307 = vmatpush.bf16.msra.mxu0 %v296
      %308 = vmatpush.bf16.msra.mxu0 %v295
      %309 = vmatpush.bf16.msra.mxu0 %v294
      %310 = vmatpush.bf16.msra.mxu0 %v293
      %311 = vmatpush.bf16.msra.mxu0 %v292
      %312 = vmatpush.bf16.msra.mxu0 %v291
      %313 = vmatpush.bf16.msra.mxu0 %v290
      %314 = vmatmul.bf16.gmra.mxu0 %v256
      %v315 = vpop.f32.mrf.mxu0
      %v316 = vadd.f32 %v245, %v315
      %v317 = vpop.f32.mrf.mxu0
      %v318 = vadd.f32 %v250, %v317
      %319 = vdwg.mxu0
      %320 = vst [vmem:[%s221] sm:$0xff] %v316
      %321 = vst [vmem:[%s221 + $0x8] sm:$0xff] %v318
      %p322 = scmp.lt.s32.totalorder %s18, 3
      %s323 = scalar_select %p322, %s18, 3
      %p324 = scmp.lt.s32.totalorder %s19, 0
      %s325 = scalar_select %p324, %s19, 0
      %s326 = smul.addr %s323, 2
      %s327 = sadd.s32 %s325, %s326
      %s328 = smul.addr %s327, 8
      %s329 = scalar_lea.vmem %s3, %s328
      // Predicated region
      $region33: #{generator_forward.13} parent=31 // pred_check
        %p330 = pneg %p121
      $region34: #{generator_forward.13} parent=31 // pred_check_branch
        %332 = sbr.rel (%p330) target = $region36
      $region35: #{generator_forward.13} parent=31 // pred_region
        _
      $region36: #{generator_forward.13} parent=31 // pred_fallthru
        _
    $region32: #{generator_forward.13} parent=5 // pred_fallthru
      _
    %p333 = scmp.le.s32.totalorder 2, %s9
    // Predicated region
    $region37: #{generator_forward.13} parent=5 // pred_check
      %p334 = pneg %p333
    $region38: #{generator_forward.13} parent=5 // pred_check_branch
      %336 = sbr.rel (%p334) target = $region40
    $region39: #{generator_forward.13} parent=5 // pred_region
      %s337 = ssub.s32 %s9, 2
      // Predicated region
      $region41: #{generator_forward.13} parent=39 // pred_check
        %p338 = pneg %p127
      $region42: #{generator_forward.13} parent=39 // pred_check_branch
        %340 = sbr.rel (%p338) target = $region44
      $region43: #{generator_forward.13} parent=39 // pred_region
        %p341 = scmp.lt.s32.totalorder %s20, 3
        %s342 = scalar_select %p341, %s20, 3
        %p343 = scmp.lt.s32.totalorder %s21, 0
        %s344 = scalar_select %p343, %s21, 0
        %s345 = smul.addr %s342, 2
        %s346 = sadd.s32 %s344, %s345
        %s347 = smul.addr %s346, 8
        %s348 = scalar_lea.vmem %s3, %s347
      $region44: #{generator_forward.13} parent=39 // pred_fallthru
        _
    $region40: #{generator_forward.13} parent=5 // pred_fallthru
      _
  $region6: #{generator_forward.13} parent=0 // loop_footer
    %s13 = sadd.s32 1, %s9
  $region7: #{generator_forward.13} parent=0 // loop_footer_branch
    %8 = sbr.rel target = $region3
  $region8: #{generator_forward.13} parent=0 // loop_exit
    _

// kernel: generator_forward.15
$region0: #{generator_forward.15}
  #allocation0 [shape = 'u32[]', space=smem, size = 0x4, offset = 0x4, fixed_abs, tag = 'smem constant byte address 0x4 - core index']
  #allocation1 [shape = 'u32[72,128]{1,0:T(1,128)}', space=vmem, size = 0x9000, scoped, tag = 'internal scratch']
  %s0 = inlined_call_operand.vmem [shape: bf16[4,8,64], index: 0, kind: input, shape index: {}]
  %s1 = inlined_call_operand.vmem [shape: f32[8,1], index: 1, kind: input, shape index: {}]
  %s2 = inlined_call_operand.vmem [shape: bf16[4,64,512], index: 2, kind: input, shape index: {}]
  %s3 = inlined_call_operand.vmem [shape: f32[4,8,512], index: 3, kind: output, shape index: {}]
  %s4 = sld [smem:[#allocation0]]
  $region45: #{generator_forward.15} parent=0
    _
  %s6 = ssub.s32 1, %s4
  %s7 = scalar_select 0, %s6, %s4
  loop: start=0, step=1, limit=6
  $region2: #{generator_forward.15} parent=0 // loop_pre_header
    _
  $region3: #{generator_forward.15} parent=0 // loop_header
    %s9 = sphi 0, %s13
    %p10 = scmp.ge.s32.totalorder %s9, 6
    %s16 = sphi 0, %s28
    %s17 = sphi 0, %s24
    %s18 = sphi 0, %s16
    %s19 = sphi 0, %s17
    %s20 = sphi 0, %s18
    %s21 = sphi 0, %s19
    %s31 = sphi 0, %s33
    %s34 = sphi 0, %s31
    %s35 = sphi 0, %s34
    %s51 = sphi 0, %s35
    %s55 = sphi 0, %s55
    %s57 = sphi 0, %s55
    %s58 = sphi 0, %s57
    %s72 = sphi 0, %s58
    %s80 = sphi 0, %s82
    %s83 = sphi 0, %s80
    %s84 = sphi 0, %s83
    %s100 = sphi 0, %s84
    %s108 = sphi 0, %s110
    %s111 = sphi 0, %s108
    %s112 = sphi 0, %s111
    %s128 = sphi 0, %s112
  $region4: #{generator_forward.15} parent=0 // loop_header_branch
    %12 = sbr.rel (%p10) target = $region8
  $region5: #{generator_forward.15} parent=0 // loop_body
    %s14 = ssub.s32 %s9, 1
    %s15 = ssub.s32 %s9, 2
    %s22 = sadd.s32 1, %s17
    %p23 = scmp.ge.s32.totalorder %s22, 1
    %s24 = scalar_select %p23, 0, %s22
    %s25 = sadd.s32 1, %s16
    %s26 = scalar_select %p23, %s25, %s16
    %p27 = scmp.ge.s32.totalorder %s26, 4
    %s28 = scalar_select %p27, 0, %s26
    %s29 = ssub.s32 %s16, %s28
    %p30 = scmp.eq.s32.totalorder %s29, 0
    %s32 = sadd.s32 %s31, 1
    %s33 = scalar_select %p30, %s31, %s32
    %p36 = pneg %p30
    %p37 = scmp.eq.s32.totalorder %s9, 3
    %p38 = por %p36, %p37
    %p39 = scmp.ne.s32.totalorder %s31, %s34
    %p40 = scmp.eq.s32.totalorder %s9, 0
    %p41 = por %p39, %p40
    %p42 = scmp.ne.s32.totalorder %s31, %s34
    %p43 = scmp.eq.s32.totalorder %s14, 3
    %p44 = por %p42, %p43
    %p45 = scmp.ne.s32.totalorder %s34, %s35
    %p46 = scmp.eq.s32.totalorder %s14, 0
    %p47 = por %p45, %p46
    %p48 = scmp.ne.s32.totalorder %s34, %s35
    %p49 = scmp.eq.s32.totalorder %s15, 3
    %p50 = por %p48, %p49
    %p52 = scmp.ne.s32.totalorder %s35, %s51
    %p53 = scmp.eq.s32.totalorder %s15, 0
    %p54 = por %p52, %p53
    %s56 = sadd.s32 %s55, 1
    %p59 = scmp.eq.s32.totalorder %s9, 3
    %p60 = scmp.ne.s32.totalorder %s55, %s57
    %p61 = scmp.eq.s32.totalorder %s9, 0
    %p62 = por %p60, %p61
    %p63 = scmp.ne.s32.totalorder %s55, %s57
    %p64 = scmp.eq.s32.totalorder %s14, 3
    %p65 = por %p63, %p64
    %p66 = scmp.ne.s32.totalorder %s57, %s58
    %p67 = scmp.eq.s32.totalorder %s14, 0
    %p68 = por %p66, %p67
    %p69 = scmp.ne.s32.totalorder %s57, %s58
    %p70 = scmp.eq.s32.totalorder %s15, 3
    %p71 = por %p69, %p70
    %p73 = scmp.ne.s32.totalorder %s58, %s72
    %p74 = scmp.eq.s32.totalorder %s15, 0
    %p75 = por %p73, %p74
    %s76 = ssub.s32 %s16, %s28
    %s77 = ssub.s32 %s17, %s24
    %s78 = sor.u32 %s76, %s77
    %p79 = scmp.eq.s32.totalorder %s78, 0
    %s81 = sadd.s32 %s80, 1
    %s82 = scalar_select %p79, %s80, %s81
    %p85 = pneg %p79
    %p86 = scmp.eq.s32.totalorder %s9, 3
    %p87 = por %p85, %p86
    %p88 = scmp.ne.s32.totalorder %s80, %s83
    %p89 = scmp.eq.s32.totalorder %s9, 0
    %p90 = por %p88, %p89
    %p91 = scmp.ne.s32.totalorder %s80, %s83
    %p92 = scmp.eq.s32.totalorder %s14, 3
    %p93 = por %p91, %p92
    %p94 = scmp.ne.s32.totalorder %s83, %s84
    %p95 = scmp.eq.s32.totalorder %s14, 0
    %p96 = por %p94, %p95
    %p97 = scmp.ne.s32.totalorder %s83, %s84
    %p98 = scmp.eq.s32.totalorder %s15, 3
    %p99 = por %p97, %p98
    %p101 = scmp.ne.s32.totalorder %s84, %s100
    %p102 = scmp.eq.s32.totalorder %s15, 0
    %p103 = por %p101, %p102
    %s104 = ssub.s32 %s16, %s28
    %s105 = ssub.s32 %s17, %s24
    %s106 = sor.u32 %s104, %s105
    %p107 = scmp.eq.s32.totalorder %s106, 0
    %s109 = sadd.s32 %s108, 1
    %s110 = scalar_select %p107, %s108, %s109
    %p113 = pneg %p107
    %p114 = scmp.eq.s32.totalorder %s9, 3
    %p115 = por %p113, %p114
    %p116 = scmp.ne.s32.totalorder %s108, %s111
    %p117 = scmp.eq.s32.totalorder %s9, 0
    %p118 = por %p116, %p117
    %p119 = scmp.ne.s32.totalorder %s108, %s111
    %p120 = scmp.eq.s32.totalorder %s14, 3
    %p121 = por %p119, %p120
    %p122 = scmp.ne.s32.totalorder %s111, %s112
    %p123 = scmp.eq.s32.totalorder %s14, 0
    %p124 = por %p122, %p123
    %p125 = scmp.ne.s32.totalorder %s111, %s112
    %p126 = scmp.eq.s32.totalorder %s15, 3
    %p127 = por %p125, %p126
    %p129 = scmp.ne.s32.totalorder %s112, %s128
    %p130 = scmp.eq.s32.totalorder %s15, 0
    %p131 = por %p129, %p130
    %p132 = scmp.le.s32.totalorder 1, %s9
    %p133 = scmp.lt.s32.totalorder %s9, 5
    %p134 = pnand %p132, %p133
    %p135 = pneg %p134
    // Predicated region
    $region9: #{generator_forward.15} parent=5 // pred_check
      _
    $region10: #{generator_forward.15} parent=5 // pred_check_branch
      %137 = sbr.rel (%p134) target = $region12
    $region11: #{generator_forward.15} parent=5 // pred_region
      %s138 = ssub.s32 %s9, 1
      // Predicated region
      $region13: #{generator_forward.15} parent=11 // pred_check
        %p139 = pneg %p68
      $region14: #{generator_forward.15} parent=11 // pred_check_branch
        %141 = sbr.rel (%p139) target = $region16
      $region15: #{generator_forward.15} parent=11 // pred_region
        _
      $region16: #{generator_forward.15} parent=11 // pred_fallthru
        _
    $region12: #{generator_forward.15} parent=5 // pred_fallthru
      _
    %p142 = scmp.lt.s32.totalorder %s9, 4
    // Predicated region
    $region17: #{generator_forward.15} parent=5 // pred_check
      %p143 = pneg %p142
    $region18: #{generator_forward.15} parent=5 // pred_check_branch
      %145 = sbr.rel (%p143) target = $region20
    $region19: #{generator_forward.15} parent=5 // pred_region
      // Predicated region
      $region21: #{generator_forward.15} parent=19 // pred_check
        %p146 = pneg %p41
      $region22: #{generator_forward.15} parent=19 // pred_check_branch
        %148 = sbr.rel (%p146) target = $region24
      $region23: #{generator_forward.15} parent=19 // pred_region
        %p149 = scmp.lt.s32.totalorder %s16, 3
        %s150 = scalar_select %p149, %s16, 3
        %s151 = smul.addr %s150, 4
        %s152 = scalar_lea.vmem %s0, %s151
      $region24: #{generator_forward.15} parent=19 // pred_fallthru
        _
      // Predicated region
      $region25: #{generator_forward.15} parent=19 // pred_check
        %p153 = pneg %p90
      $region26: #{generator_forward.15} parent=19 // pred_check_branch
        %155 = sbr.rel (%p153) target = $region28
      $region27: #{generator_forward.15} parent=19 // pred_region
        %s156 = smul.u32 4, %s17
        %p157 = scmp.lt.s32.totalorder %s16, 3
        %s158 = scalar_select %p157, %s16, 3
        %p159 = scmp.lt.s32.totalorder %s156, 3
        %s160 = scalar_select %p159, %s156, 3
        %s161 = smul.addr %s158, 32
        %s162 = sadd.s32 %s160, %s161
        %s163 = smul.addr %s162, 4
        %s164 = scalar_lea.vmem %s2, %s163
        %s165 = smul.u32 4, %s17
      $region28: #{generator_forward.15} parent=19 // pred_fallthru
        _
    $region20: #{generator_forward.15} parent=5 // pred_fallthru
      _
    %p166 = scmp.le.s32.totalorder 1, %s9
    %p167 = scmp.lt.s32.totalorder %s9, 5
    %p168 = pnand %p166, %p167
    %p169 = pneg %p168
    // Predicated region
    $region29: #{generator_forward.15} parent=5 // pred_check
      _
    $region30: #{generator_forward.15} parent=5 // pred_check_branch
      %171 = sbr.rel (%p168) target = $region32
    $region31: #{generator_forward.15} parent=5 // pred_region
      %s172 = ssub.s32 %s9, 1
      %p173 = scmp.lt.s32.totalorder %s18, 3
      %s174 = scalar_select %p173, %s18, 3
      %s175 = smul.addr %s174, 4
      %s176 = scalar_lea.vmem %s0, %s175
      %p177 = pneg %p47
      %p178 = pneg %p44
      %p179 = pneg %p68
      %p180 = pneg %p65
      %s181 = smul.u32 4, %s19
      %p182 = scmp.lt.s32.totalorder %s18, 3
      %s183 = scalar_select %p182, %s18, 3
      %p184 = scmp.lt.s32.totalorder %s181, 3
      %s185 = scalar_select %p184, %s181, 3
      %s186 = smul.addr %s183, 32
      %s187 = sadd.s32 %s185, %s186
      %s188 = smul.addr %s187, 4
      %s189 = scalar_lea.vmem %s2, %s188
      %p190 = pneg %p96
      %p191 = pneg %p93
      %p192 = pneg %p124
      %p193 = pneg %p121
      %s194 = smul.u32 4, %s19
      %p195 = scmp.lt.s32.totalorder %s18, 3
      %s196 = scalar_select %p195, %s18, 3
      %p197 = scmp.lt.s32.totalorder %s194, 3
      %s198 = scalar_select %p197, %s194, 3
      %s199 = smul.addr %s196, 4
      %s200 = sadd.s32 %s198, %s199
      %s201 = smul.addr %s200, 8
      %s202 = scalar_lea.vmem %s3, %s201
      %p203 = scmp.lt.s32.totalorder %s18, 3
      %s204 = scalar_select %p203, %s18, 3
      %s205 = smul.addr %s204, 4
      %s206 = scalar_lea.vmem %s0, %s205
      %s207 = smul.u32 4, %s19
      %p208 = scmp.lt.s32.totalorder %s18, 3
      %s209 = scalar_select %p208, %s18, 3
      %p210 = scmp.lt.s32.totalorder %s207, 3
      %s211 = scalar_select %p210, %s207, 3
      %s212 = smul.addr %s209, 32
      %s213 = sadd.s32 %s211, %s212
      %s214 = smul.addr %s213, 4
      %s215 = scalar_lea.vmem %s2, %s214
      %s216 = smul.u32 4, %s19
      %s217 = smul.u32 4, %s19
      %p218 = scmp.lt.s32.totalorder %s18, 3
      %s219 = scalar_select %p218, %s18, 3
      %p220 = scmp.lt.s32.totalorder %s217, 3
      %s221 = scalar_select %p220, %s217, 3
      %s222 = smul.addr %s219, 4
      %s223 = sadd.s32 %s221, %s222
      %s224 = smul.addr %s223, 8
      %s225 = scalar_lea.vmem %s3, %s224
      %s226 = smul.u32 4, %s19
      %v228 = vld [vmem:[%s206] sm:$0xf]
      %v229 = vld [vmem:[%s215] sm:$0xff]
      %v230 = vld [vmem:[%s215 + $0x8] sm:$0xff]
      %v231 = vld [vmem:[%s215 + $0x10] sm:$0xff]
      %v232 = vld [vmem:[%s215 + $0x18] sm:$0xff]
      %v233 = vld [vmem:[%s215 + $0x20] sm:$0xff]
      %v234 = vld [vmem:[%s215 + $0x28] sm:$0xff]
      %v235 = vld [vmem:[%s215 + $0x30] sm:$0xff]
      %v236 = vld [vmem:[%s215 + $0x38] sm:$0xff]
      %v237 = vld [vmem:[%s215 + $0x40] sm:$0xff]
      %v238 = vld [vmem:[%s215 + $0x48] sm:$0xff]
      %v239 = vld [vmem:[%s215 + $0x50] sm:$0xff]
      %v240 = vld [vmem:[%s215 + $0x58] sm:$0xff]
      %v241 = vld [vmem:[%s215 + $0x60] sm:$0xff]
      %v242 = vld [vmem:[%s215 + $0x68] sm:$0xff]
      %v243 = vld [vmem:[%s215 + $0x70] sm:$0xff]
      %v244 = vld [vmem:[%s215 + $0x78] sm:$0xff]
      %v245 = vld [vmem:[%s1] sm:$0xff]
      %247 = vset.pattern.permute.xlu0 0
      %248 = vperm.xlu0 %247, %v245
      %v249 = vpop.permute.xlu0 %248
      %v267 = vunpack.c.l.b16 %v229
      %v268 = vunpack.c.h.b16 %v229
      %v269 = vunpack.c.l.b16 %v230
      %v270 = vunpack.c.h.b16 %v230
      %v271 = vunpack.c.l.b16 %v231
      %v272 = vunpack.c.h.b16 %v231
      %v273 = vunpack.c.l.b16 %v232
      %v274 = vunpack.c.h.b16 %v232
      %v275 = vunpack.c.l.b16 %v233
      %v276 = vunpack.c.h.b16 %v233
      %v277 = vunpack.c.l.b16 %v234
      %v278 = vunpack.c.h.b16 %v234
      %v279 = vunpack.c.l.b16 %v235
      %v280 = vunpack.c.h.b16 %v235
      %v281 = vunpack.c.l.b16 %v236
      %v282 = vunpack.c.h.b16 %v236
      %v283 = vunpack.c.l.b16 %v237
      %v284 = vunpack.c.h.b16 %v237
      %v285 = vunpack.c.l.b16 %v238
      %v286 = vunpack.c.h.b16 %v238
      %v287 = vunpack.c.l.b16 %v239
      %v288 = vunpack.c.h.b16 %v239
      %v289 = vunpack.c.l.b16 %v240
      %v290 = vunpack.c.h.b16 %v240
      %v291 = vunpack.c.l.b16 %v241
      %v292 = vunpack.c.h.b16 %v241
      %v293 = vunpack.c.l.b16 %v242
      %v294 = vunpack.c.h.b16 %v242
      %v295 = vunpack.c.l.b16 %v243
      %v296 = vunpack.c.h.b16 %v243
      %v297 = vunpack.c.l.b16 %v244
      %v298 = vunpack.c.h.b16 %v244
      %v299 = vpack.c.b16 %v271, %v267
      %v300 = vpack.c.b16 %v272, %v268
      %v301 = vpack.c.b16 %v273, %v269
      %v302 = vpack.c.b16 %v274, %v270
      %v303 = vpack.c.b16 %v279, %v275
      %v304 = vpack.c.b16 %v280, %v276
      %v305 = vpack.c.b16 %v281, %v277
      %v306 = vpack.c.b16 %v282, %v278
      %v307 = vpack.c.b16 %v287, %v283
      %v308 = vpack.c.b16 %v288, %v284
      %v309 = vpack.c.b16 %v289, %v285
      %v310 = vpack.c.b16 %v290, %v286
      %v311 = vpack.c.b16 %v295, %v291
      %v312 = vpack.c.b16 %v296, %v292
      %v313 = vpack.c.b16 %v297, %v293
      %v314 = vpack.c.b16 %v298, %v294
      %vm331 = vcmask 523264
      %v333 = vsel %vm331, %v228, 0
      %335 = vmatpush.bf16.msra.mxu0 0
      %336 = vmatpush.bf16.msra.mxu0 0
      %337 = vmatpush.bf16.msra.mxu0 0
      %338 = vmatpush.bf16.msra.mxu0 0
      %339 = vmatpush.bf16.msra.mxu0 %v311
      %340 = vmatpush.bf16.msra.mxu0 %v307
      %341 = vmatpush.bf16.msra.mxu0 %v303
      %342 = vmatpush.bf16.msra.mxu0 %v299
      %343 = vmatmul.bf16.gmra.mxu0 %v333
      %v344 = vpop.f32.mrf.mxu0
      %v345 = vadd.f32 %v249, %v344
      %v346 = vpop.f32.mrf.mxu0
      %347 = vdwg.mxu0
      %348 = vmatpush.bf16.msra.mxu0 0
      %349 = vmatpush.bf16.msra.mxu0 0
      %350 = vmatpush.bf16.msra.mxu0 0
      %351 = vmatpush.bf16.msra.mxu0 0
      %352 = vmatpush.bf16.msra.mxu0 %v312
      %353 = vmatpush.bf16.msra.mxu0 %v308
      %354 = vmatpush.bf16.msra.mxu0 %v304
      %355 = vmatpush.bf16.msra.mxu0 %v300
      %356 = vmatmul.bf16.gmra.mxu0 %v333
      %v357 = vpop.f32.mrf.mxu0
      %v358 = vadd.f32 %v249, %v357
      %v359 = vpop.f32.mrf.mxu0
      %360 = vdwg.mxu0
      %361 = vmatpush.bf16.msra.mxu0 0
      %362 = vmatpush.bf16.msra.mxu0 0
      %363 = vmatpush.bf16.msra.mxu0 0
      %364 = vmatpush.bf16.msra.mxu0 0
      %365 = vmatpush.bf16.msra.mxu0 %v313
      %366 = vmatpush.bf16.msra.mxu0 %v309
      %367 = vmatpush.bf16.msra.mxu0 %v305
      %368 = vmatpush.bf16.msra.mxu0 %v301
      %369 = vmatmul.bf16.gmra.mxu0 %v333
      %v370 = vpop.f32.mrf.mxu0
      %v371 = vadd.f32 %v249, %v370
      %v372 = vpop.f32.mrf.mxu0
      %373 = vdwg.mxu0
      %374 = vmatpush.bf16.msra.mxu0 0
      %375 = vmatpush.bf16.msra.mxu0 0
      %376 = vmatpush.bf16.msra.mxu0 0
      %377 = vmatpush.bf16.msra.mxu0 0
      %378 = vmatpush.bf16.msra.mxu0 %v314
      %379 = vmatpush.bf16.msra.mxu0 %v310
      %380 = vmatpush.bf16.msra.mxu0 %v306
      %381 = vmatpush.bf16.msra.mxu0 %v302
      %382 = vmatmul.bf16.gmra.mxu0 %v333
      %v383 = vpop.f32.mrf.mxu0
      %v384 = vadd.f32 %v249, %v383
      %v385 = vpop.f32.mrf.mxu0
      %386 = vdwg.mxu0
      %387 = vst [vmem:[%s225] sm:$0xff] %v345
      %388 = vst [vmem:[%s225 + $0x8] sm:$0xff] %v358
      %389 = vst [vmem:[%s225 + $0x10] sm:$0xff] %v371
      %390 = vst [vmem:[%s225 + $0x18] sm:$0xff] %v384
      %s391 = smul.u32 4, %s19
      %p392 = scmp.lt.s32.totalorder %s18, 3
      %s393 = scalar_select %p392, %s18, 3
      %p394 = scmp.lt.s32.totalorder %s391, 3
      %s395 = scalar_select %p394, %s391, 3
      %s396 = smul.addr %s393, 4
      %s397 = sadd.s32 %s395, %s396
      %s398 = smul.addr %s397, 8
      %s399 = scalar_lea.vmem %s3, %s398
      // Predicated region
      $region33: #{generator_forward.15} parent=31 // pred_check
        %p400 = pneg %p121
      $region34: #{generator_forward.15} parent=31 // pred_check_branch
        %402 = sbr.rel (%p400) target = $region36
      $region35: #{generator_forward.15} parent=31 // pred_region
        %s403 = smul.u32 4, %s19
      $region36: #{generator_forward.15} parent=31 // pred_fallthru
        _
    $region32: #{generator_forward.15} parent=5 // pred_fallthru
      _
    %p404 = scmp.le.s32.totalorder 2, %s9
    // Predicated region
    $region37: #{generator_forward.15} parent=5 // pred_check
      %p405 = pneg %p404
    $region38: #{generator_forward.15} parent=5 // pred_check_branch
      %407 = sbr.rel (%p405) target = $region40
    $region39: #{generator_forward.15} parent=5 // pred_region
      %s408 = ssub.s32 %s9, 2
      // Predicated region
      $region41: #{generator_forward.15} parent=39 // pred_check
        %p409 = pneg %p127
      $region42: #{generator_forward.15} parent=39 // pred_check_branch
        %411 = sbr.rel (%p409) target = $region44
      $region43: #{generator_forward.15} parent=39 // pred_region
        %s412 = smul.u32 4, %s21
        %p413 = scmp.lt.s32.totalorder %s20, 3
        %s414 = scalar_select %p413, %s20, 3
        %p415 = scmp.lt.s32.totalorder %s412, 3
        %s416 = scalar_select %p415, %s412, 3
        %s417 = smul.addr %s414, 4
        %s418 = sadd.s32 %s416, %s417
        %s419 = smul.addr %s418, 8
        %s420 = scalar_lea.vmem %s3, %s419
      $region44: #{generator_forward.15} parent=39 // pred_fallthru
        _
    $region40: #{generator_forward.15} parent=5 // pred_fallthru
      _
  $region6: #{generator_forward.15} parent=0 // loop_footer
    %s13 = sadd.s32 1, %s9
  $region7: #{generator_forward.15} parent=0 // loop_footer_branch
    %8 = sbr.rel target = $region3
  $region8: #{generator_forward.15} parent=0 // loop_exit
    _

// kernel: generator_forward.16
$region0: #{generator_forward.16}
  #allocation0 [shape = 'u32[]', space=smem, size = 0x4, offset = 0x4, fixed_abs, tag = 'smem constant byte address 0x4 - core index']
  #allocation1 [shape = 'u32[72,128]{1,0:T(1,128)}', space=vmem, size = 0x9000, scoped, tag = 'internal scratch']
  %s0 = inlined_call_operand.vmem [shape: f32[4,8,512], index: 0, kind: input, shape index: {}]
  %s1 = inlined_call_operand.vmem [shape: f32[8,1], index: 1, kind: input, shape index: {}]
  %s2 = inlined_call_operand.vmem [shape: f32[8,1], index: 2, kind: input, shape index: {}]
  %s3 = inlined_call_operand.vmem [shape: bf16[4,8,512], index: 3, kind: output, shape index: {}]
  %s4 = sld [smem:[#allocation0]]
  $region45: #{generator_forward.16} parent=0
    _
  %s6 = ssub.s32 1, %s4
  %s7 = scalar_select 0, %s6, %s4
  loop: start=0, step=1, limit=6
  $region2: #{generator_forward.16} parent=0 // loop_pre_header
    _
  $region3: #{generator_forward.16} parent=0 // loop_header
    %s9 = sphi 0, %s13
    %p10 = scmp.ge.s32.totalorder %s9, 6
    %s16 = sphi 0, %s28
    %s17 = sphi 0, %s24
    %s18 = sphi 0, %s16
    %s19 = sphi 0, %s17
    %s20 = sphi 0, %s18
    %s21 = sphi 0, %s19
    %s33 = sphi 0, %s35
    %s36 = sphi 0, %s33
    %s37 = sphi 0, %s36
    %s53 = sphi 0, %s37
    %s57 = sphi 0, %s57
    %s59 = sphi 0, %s57
    %s60 = sphi 0, %s59
    %s74 = sphi 0, %s60
    %s78 = sphi 0, %s78
    %s80 = sphi 0, %s78
    %s81 = sphi 0, %s80
    %s95 = sphi 0, %s81
    %s103 = sphi 0, %s105
    %s106 = sphi 0, %s103
    %s107 = sphi 0, %s106
    %s123 = sphi 0, %s107
  $region4: #{generator_forward.16} parent=0 // loop_header_branch
    %12 = sbr.rel (%p10) target = $region8
  $region5: #{generator_forward.16} parent=0 // loop_body
    %s14 = ssub.s32 %s9, 1
    %s15 = ssub.s32 %s9, 2
    %s22 = sadd.s32 1, %s17
    %p23 = scmp.ge.s32.totalorder %s22, 1
    %s24 = scalar_select %p23, 0, %s22
    %s25 = sadd.s32 1, %s16
    %s26 = scalar_select %p23, %s25, %s16
    %p27 = scmp.ge.s32.totalorder %s26, 4
    %s28 = scalar_select %p27, 0, %s26
    %s29 = ssub.s32 %s16, %s28
    %s30 = ssub.s32 %s17, %s24
    %s31 = sor.u32 %s29, %s30
    %p32 = scmp.eq.s32.totalorder %s31, 0
    %s34 = sadd.s32 %s33, 1
    %s35 = scalar_select %p32, %s33, %s34
    %p38 = pneg %p32
    %p39 = scmp.eq.s32.totalorder %s9, 3
    %p40 = por %p38, %p39
    %p41 = scmp.ne.s32.totalorder %s33, %s36
    %p42 = scmp.eq.s32.totalorder %s9, 0
    %p43 = por %p41, %p42
    %p44 = scmp.ne.s32.totalorder %s33, %s36
    %p45 = scmp.eq.s32.totalorder %s14, 3
    %p46 = por %p44, %p45
    %p47 = scmp.ne.s32.totalorder %s36, %s37
    %p48 = scmp.eq.s32.totalorder %s14, 0
    %p49 = por %p47, %p48
    %p50 = scmp.ne.s32.totalorder %s36, %s37
    %p51 = scmp.eq.s32.totalorder %s15, 3
    %p52 = por %p50, %p51
    %p54 = scmp.ne.s32.totalorder %s37, %s53
    %p55 = scmp.eq.s32.totalorder %s15, 0
    %p56 = por %p54, %p55
    %s58 = sadd.s32 %s57, 1
    %p61 = scmp.eq.s32.totalorder %s9, 3
    %p62 = scmp.ne.s32.totalorder %s57, %s59
    %p63 = scmp.eq.s32.totalorder %s9, 0
    %p64 = por %p62, %p63
    %p65 = scmp.ne.s32.totalorder %s57, %s59
    %p66 = scmp.eq.s32.totalorder %s14, 3
    %p67 = por %p65, %p66
    %p68 = scmp.ne.s32.totalorder %s59, %s60
    %p69 = scmp.eq.s32.totalorder %s14, 0
    %p70 = por %p68, %p69
    %p71 = scmp.ne.s32.totalorder %s59, %s60
    %p72 = scmp.eq.s32.totalorder %s15, 3
    %p73 = por %p71, %p72
    %p75 = scmp.ne.s32.totalorder %s60, %s74
    %p76 = scmp.eq.s32.totalorder %s15, 0
    %p77 = por %p75, %p76
    %s79 = sadd.s32 %s78, 1
    %p82 = scmp.eq.s32.totalorder %s9, 3
    %p83 = scmp.ne.s32.totalorder %s78, %s80
    %p84 = scmp.eq.s32.totalorder %s9, 0
    %p85 = por %p83, %p84
    %p86 = scmp.ne.s32.totalorder %s78, %s80
    %p87 = scmp.eq.s32.totalorder %s14, 3
    %p88 = por %p86, %p87
    %p89 = scmp.ne.s32.totalorder %s80, %s81
    %p90 = scmp.eq.s32.totalorder %s14, 0
    %p91 = por %p89, %p90
    %p92 = scmp.ne.s32.totalorder %s80, %s81
    %p93 = scmp.eq.s32.totalorder %s15, 3
    %p94 = por %p92, %p93
    %p96 = scmp.ne.s32.totalorder %s81, %s95
    %p97 = scmp.eq.s32.totalorder %s15, 0
    %p98 = por %p96, %p97
    %s99 = ssub.s32 %s16, %s28
    %s100 = ssub.s32 %s17, %s24
    %s101 = sor.u32 %s99, %s100
    %p102 = scmp.eq.s32.totalorder %s101, 0
    %s104 = sadd.s32 %s103, 1
    %s105 = scalar_select %p102, %s103, %s104
    %p108 = pneg %p102
    %p109 = scmp.eq.s32.totalorder %s9, 3
    %p110 = por %p108, %p109
    %p111 = scmp.ne.s32.totalorder %s103, %s106
    %p112 = scmp.eq.s32.totalorder %s9, 0
    %p113 = por %p111, %p112
    %p114 = scmp.ne.s32.totalorder %s103, %s106
    %p115 = scmp.eq.s32.totalorder %s14, 3
    %p116 = por %p114, %p115
    %p117 = scmp.ne.s32.totalorder %s106, %s107
    %p118 = scmp.eq.s32.totalorder %s14, 0
    %p119 = por %p117, %p118
    %p120 = scmp.ne.s32.totalorder %s106, %s107
    %p121 = scmp.eq.s32.totalorder %s15, 3
    %p122 = por %p120, %p121
    %p124 = scmp.ne.s32.totalorder %s107, %s123
    %p125 = scmp.eq.s32.totalorder %s15, 0
    %p126 = por %p124, %p125
    %p127 = scmp.le.s32.totalorder 1, %s9
    %p128 = scmp.lt.s32.totalorder %s9, 5
    %p129 = pnand %p127, %p128
    %p130 = pneg %p129
    // Predicated region
    $region9: #{generator_forward.16} parent=5 // pred_check
      _
    $region10: #{generator_forward.16} parent=5 // pred_check_branch
      %132 = sbr.rel (%p129) target = $region12
    $region11: #{generator_forward.16} parent=5 // pred_region
      %s133 = ssub.s32 %s9, 1
      // Predicated region
      $region13: #{generator_forward.16} parent=11 // pred_check
        %p134 = pneg %p70
      $region14: #{generator_forward.16} parent=11 // pred_check_branch
        %136 = sbr.rel (%p134) target = $region16
      $region15: #{generator_forward.16} parent=11 // pred_region
        _
      $region16: #{generator_forward.16} parent=11 // pred_fallthru
        _
      // Predicated region
      $region17: #{generator_forward.16} parent=11 // pred_check
        %p137 = pneg %p91
      $region18: #{generator_forward.16} parent=11 // pred_check_branch
        %139 = sbr.rel (%p137) target = $region20
      $region19: #{generator_forward.16} parent=11 // pred_region
        _
      $region20: #{generator_forward.16} parent=11 // pred_fallthru
        _
    $region12: #{generator_forward.16} parent=5 // pred_fallthru
      _
    %p140 = scmp.lt.s32.totalorder %s9, 4
    // Predicated region
    $region21: #{generator_forward.16} parent=5 // pred_check
      %p141 = pneg %p140
    $region22: #{generator_forward.16} parent=5 // pred_check_branch
      %143 = sbr.rel (%p141) target = $region24
    $region23: #{generator_forward.16} parent=5 // pred_region
      // Predicated region
      $region25: #{generator_forward.16} parent=23 // pred_check
        %p144 = pneg %p43
      $region26: #{generator_forward.16} parent=23 // pred_check_branch
        %146 = sbr.rel (%p144) target = $region28
      $region27: #{generator_forward.16} parent=23 // pred_region
        %s147 = smul.u32 4, %s17
        %p148 = scmp.lt.s32.totalorder %s16, 3
        %s149 = scalar_select %p148, %s16, 3
        %p150 = scmp.lt.s32.totalorder %s147, 3
        %s151 = scalar_select %p150, %s147, 3
        %s152 = smul.addr %s149, 4
        %s153 = sadd.s32 %s151, %s152
        %s154 = smul.addr %s153, 8
        %s155 = scalar_lea.vmem %s0, %s154
        %s156 = smul.u32 4, %s17
      $region28: #{generator_forward.16} parent=23 // pred_fallthru
        _
    $region24: #{generator_forward.16} parent=5 // pred_fallthru
      _
    %p157 = scmp.le.s32.totalorder 1, %s9
    %p158 = scmp.lt.s32.totalorder %s9, 5
    %p159 = pnand %p157, %p158
    %p160 = pneg %p159
    // Predicated region
    $region29: #{generator_forward.16} parent=5 // pred_check
      _
    $region30: #{generator_forward.16} parent=5 // pred_check_branch
      %162 = sbr.rel (%p159) target = $region32
    $region31: #{generator_forward.16} parent=5 // pred_region
      %s163 = ssub.s32 %s9, 1
      %s164 = smul.u32 4, %s19
      %p165 = scmp.lt.s32.totalorder %s18, 3
      %s166 = scalar_select %p165, %s18, 3
      %p167 = scmp.lt.s32.totalorder %s164, 3
      %s168 = scalar_select %p167, %s164, 3
      %s169 = smul.addr %s166, 4
      %s170 = sadd.s32 %s168, %s169
      %s171 = smul.addr %s170, 8
      %s172 = scalar_lea.vmem %s0, %s171
      %p173 = pneg %p49
      %p174 = pneg %p46
      %p175 = pneg %p70
      %p176 = pneg %p67
      %p177 = pneg %p91
      %p178 = pneg %p88
      %p179 = pneg %p119
      %p180 = pneg %p116
      %s181 = smul.u32 4, %s19
      %p182 = scmp.lt.s32.totalorder %s18, 3
      %s183 = scalar_select %p182, %s18, 3
      %p184 = scmp.lt.s32.totalorder %s181, 3
      %s185 = scalar_select %p184, %s181, 3
      %s186 = smul.addr %s183, 4
      %s187 = sadd.s32 %s185, %s186
      %s188 = smul.addr %s187, 4
      %s189 = scalar_lea.vmem %s3, %s188
      %s190 = smul.u32 4, %s19
      %p191 = scmp.lt.s32.totalorder %s18, 3
      %s192 = scalar_select %p191, %s18, 3
      %p193 = scmp.lt.s32.totalorder %s190, 3
      %s194 = scalar_select %p193, %s190, 3
      %s195 = smul.addr %s192, 4
      %s196 = sadd.s32 %s194, %s195
      %s197 = smul.addr %s196, 8
      %s198 = scalar_lea.vmem %s0, %s197
      %s199 = smul.u32 4, %s19
      %s200 = smul.u32 4, %s19
      %p201 = scmp.lt.s32.totalorder %s18, 3
      %s202 = scalar_select %p201, %s18, 3
      %p203 = scmp.lt.s32.totalorder %s200, 3
      %s204 = scalar_select %p203, %s200, 3
      %s205 = smul.addr %s202, 4
      %s206 = sadd.s32 %s204, %s205
      %s207 = smul.addr %s206, 4
      %s208 = scalar_lea.vmem %s3, %s207
      %s209 = smul.u32 4, %s19
      %v210 = vld [vmem:[%s198] sm:$0xff]
      %v211 = vld [vmem:[%s198 + $0x8] sm:$0xff]
      %v212 = vld [vmem:[%s198 + $0x10] sm:$0xff]
      %v213 = vld [vmem:[%s198 + $0x18] sm:$0xff]
      %v214 = vld [vmem:[%s1] sm:$0xff]
      %216 = vset.pattern.permute.xlu0 0
      %217 = vperm.xlu0 %216, %v214
      %v218 = vpop.permute.xlu0 %217
      %v220 = vmul.f32 %v210, %v218
      %v221 = vmul.f32 %v211, %v218
      %v222 = vmul.f32 %v212, %v218
      %v223 = vmul.f32 %v213, %v218
      %v224 = vld [vmem:[%s2] sm:$0xff]
      %226 = vset.pattern.permute.xlu0 0
      %227 = vperm.xlu0 %226, %v224
      %v228 = vpop.permute.xlu0 %227
      %v230 = vadd.f32 %v220, %v228
      %v231 = vadd.f32 %v221, %v228
      %v232 = vadd.f32 %v222, %v228
      %v233 = vadd.f32 %v223, %v228
      %v234 = vmax.f32 %v230, 0.0
      %v235 = vmax.f32 %v231, 0.0
      %v236 = vmax.f32 %v232, 0.0
      %v237 = vmax.f32 %v233, 0.0
      %v238 = vpack.c.bf16 %v235, %v234
      %v239 = vpack.c.bf16 %v237, %v236
      %240 = vst [vmem:[%s208] sm:$0xff] %v238
      %241 = vst [vmem:[%s208 + $0x8] sm:$0xff] %v239
      %s242 = smul.u32 4, %s19
      %p243 = scmp.lt.s32.totalorder %s18, 3
      %s244 = scalar_select %p243, %s18, 3
      %p245 = scmp.lt.s32.totalorder %s242, 3
      %s246 = scalar_select %p245, %s242, 3
      %s247 = smul.addr %s244, 4
      %s248 = sadd.s32 %s246, %s247
      %s249 = smul.addr %s248, 4
      %s250 = scalar_lea.vmem %s3, %s249
      // Predicated region
      $region33: #{generator_forward.16} parent=31 // pred_check
        %p251 = pneg %p116
      $region34: #{generator_forward.16} parent=31 // pred_check_branch
        %253 = sbr.rel (%p251) target = $region36
      $region35: #{generator_forward.16} parent=31 // pred_region
        %s254 = smul.u32 4, %s19
      $region36: #{generator_forward.16} parent=31 // pred_fallthru
        _
    $region32: #{generator_forward.16} parent=5 // pred_fallthru
      _
    %p255 = scmp.le.s32.totalorder 2, %s9
    // Predicated region
    $region37: #{generator_forward.16} parent=5 // pred_check
      %p256 = pneg %p255
    $region38: #{generator_forward.16} parent=5 // pred_check_branch
      %258 = sbr.rel (%p256) target = $region40
    $region39: #{generator_forward.16} parent=5 // pred_region
      %s259 = ssub.s32 %s9, 2
      // Predicated region
      $region41: #{generator_forward.16} parent=39 // pred_check
        %p260 = pneg %p122
      $region42: #{generator_forward.16} parent=39 // pred_check_branch
        %262 = sbr.rel (%p260) target = $region44
      $region43: #{generator_forward.16} parent=39 // pred_region
        %s263 = smul.u32 4, %s21
        %p264 = scmp.lt.s32.totalorder %s20, 3
        %s265 = scalar_select %p264, %s20, 3
        %p266 = scmp.lt.s32.totalorder %s263, 3
        %s267 = scalar_select %p266, %s263, 3
        %s268 = smul.addr %s265, 4
        %s269 = sadd.s32 %s267, %s268
        %s270 = smul.addr %s269, 4
        %s271 = scalar_lea.vmem %s3, %s270
      $region44: #{generator_forward.16} parent=39 // pred_fallthru
        _
    $region40: #{generator_forward.16} parent=5 // pred_fallthru
      _
  $region6: #{generator_forward.16} parent=0 // loop_footer
    %s13 = sadd.s32 1, %s9
  $region7: #{generator_forward.16} parent=0 // loop_footer_branch
    %8 = sbr.rel target = $region3
  $region8: #{generator_forward.16} parent=0 // loop_exit
    _

// kernel: generator_forward.17
$region0: #{generator_forward.17}
  #allocation0 [shape = 'u32[]', space=smem, size = 0x4, offset = 0x4, fixed_abs, tag = 'smem constant byte address 0x4 - core index']
  #allocation1 [shape = 'u32[72,128]{1,0:T(1,128)}', space=vmem, size = 0x9000, scoped, tag = 'internal scratch']
  %s0 = inlined_call_operand.vmem [shape: bf16[9,3,32], index: 0, kind: input, shape index: {}]
  %s1 = inlined_call_operand.vmem [shape: f32[3,1], index: 1, kind: input, shape index: {}]
  %s2 = inlined_call_operand.vmem [shape: bf16[9,32,2048], index: 2, kind: input, shape index: {}]
  %s3 = inlined_call_operand.vmem [shape: f32[9,3,2048], index: 3, kind: output, shape index: {}]
  %s4 = sld [smem:[#allocation0]]
  $region45: #{generator_forward.17} parent=0
    _
  %s6 = ssub.s32 1, %s4
  %s7 = scalar_select 0, %s6, %s4
  loop: start=0, step=1, limit=11
  $region2: #{generator_forward.17} parent=0 // loop_pre_header
    _
  $region3: #{generator_forward.17} parent=0 // loop_header
    %s9 = sphi 0, %s13
    %p10 = scmp.ge.s32.totalorder %s9, 11
    %s16 = sphi 0, %s28
    %s17 = sphi 0, %s24
    %s18 = sphi 0, %s16
    %s19 = sphi 0, %s17
    %s20 = sphi 0, %s18
    %s21 = sphi 0, %s19
    %s31 = sphi 0, %s33
    %s34 = sphi 0, %s31
    %s35 = sphi 0, %s34
    %s51 = sphi 0, %s35
    %s55 = sphi 0, %s55
    %s57 = sphi 0, %s55
    %s58 = sphi 0, %s57
    %s72 = sphi 0, %s58
    %s80 = sphi 0, %s82
    %s83 = sphi 0, %s80
    %s84 = sphi 0, %s83
    %s100 = sphi 0, %s84
    %s108 = sphi 0, %s110
    %s111 = sphi 0, %s108
    %s112 = sphi 0, %s111
    %s128 = sphi 0, %s112
  $region4: #{generator_forward.17} parent=0 // loop_header_branch
    %12 = sbr.rel (%p10) target = $region8
  $region5: #{generator_forward.17} parent=0 // loop_body
    %s14 = ssub.s32 %s9, 1
    %s15 = ssub.s32 %s9, 2
    %s22 = sadd.s32 1, %s17
    %p23 = scmp.ge.s32.totalorder %s22, 1
    %s24 = scalar_select %p23, 0, %s22
    %s25 = sadd.s32 1, %s16
    %s26 = scalar_select %p23, %s25, %s16
    %p27 = scmp.ge.s32.totalorder %s26, 9
    %s28 = scalar_select %p27, 0, %s26
    %s29 = ssub.s32 %s16, %s28
    %p30 = scmp.eq.s32.totalorder %s29, 0
    %s32 = sadd.s32 %s31, 1
    %s33 = scalar_select %p30, %s31, %s32
    %p36 = pneg %p30
    %p37 = scmp.eq.s32.totalorder %s9, 8
    %p38 = por %p36, %p37
    %p39 = scmp.ne.s32.totalorder %s31, %s34
    %p40 = scmp.eq.s32.totalorder %s9, 0
    %p41 = por %p39, %p40
    %p42 = scmp.ne.s32.totalorder %s31, %s34
    %p43 = scmp.eq.s32.totalorder %s14, 8
    %p44 = por %p42, %p43
    %p45 = scmp.ne.s32.totalorder %s34, %s35
    %p46 = scmp.eq.s32.totalorder %s14, 0
    %p47 = por %p45, %p46
    %p48 = scmp.ne.s32.totalorder %s34, %s35
    %p49 = scmp.eq.s32.totalorder %s15, 8
    %p50 = por %p48, %p49
    %p52 = scmp.ne.s32.totalorder %s35, %s51
    %p53 = scmp.eq.s32.totalorder %s15, 0
    %p54 = por %p52, %p53
    %s56 = sadd.s32 %s55, 1
    %p59 = scmp.eq.s32.totalorder %s9, 8
    %p60 = scmp.ne.s32.totalorder %s55, %s57
    %p61 = scmp.eq.s32.totalorder %s9, 0
    %p62 = por %p60, %p61
    %p63 = scmp.ne.s32.totalorder %s55, %s57
    %p64 = scmp.eq.s32.totalorder %s14, 8
    %p65 = por %p63, %p64
    %p66 = scmp.ne.s32.totalorder %s57, %s58
    %p67 = scmp.eq.s32.totalorder %s14, 0
    %p68 = por %p66, %p67
    %p69 = scmp.ne.s32.totalorder %s57, %s58
    %p70 = scmp.eq.s32.totalorder %s15, 8
    %p71 = por %p69, %p70
    %p73 = scmp.ne.s32.totalorder %s58, %s72
    %p74 = scmp.eq.s32.totalorder %s15, 0
    %p75 = por %p73, %p74
    %s76 = ssub.s32 %s16, %s28
    %s77 = ssub.s32 %s17, %s24
    %s78 = sor.u32 %s76, %s77
    %p79 = scmp.eq.s32.totalorder %s78, 0
    %s81 = sadd.s32 %s80, 1
    %s82 = scalar_select %p79, %s80, %s81
    %p85 = pneg %p79
    %p86 = scmp.eq.s32.totalorder %s9, 8
    %p87 = por %p85, %p86
    %p88 = scmp.ne.s32.totalorder %s80, %s83
    %p89 = scmp.eq.s32.totalorder %s9, 0
    %p90 = por %p88, %p89
    %p91 = scmp.ne.s32.totalorder %s80, %s83
    %p92 = scmp.eq.s32.totalorder %s14, 8
    %p93 = por %p91, %p92
    %p94 = scmp.ne.s32.totalorder %s83, %s84
    %p95 = scmp.eq.s32.totalorder %s14, 0
    %p96 = por %p94, %p95
    %p97 = scmp.ne.s32.totalorder %s83, %s84
    %p98 = scmp.eq.s32.totalorder %s15, 8
    %p99 = por %p97, %p98
    %p101 = scmp.ne.s32.totalorder %s84, %s100
    %p102 = scmp.eq.s32.totalorder %s15, 0
    %p103 = por %p101, %p102
    %s104 = ssub.s32 %s16, %s28
    %s105 = ssub.s32 %s17, %s24
    %s106 = sor.u32 %s104, %s105
    %p107 = scmp.eq.s32.totalorder %s106, 0
    %s109 = sadd.s32 %s108, 1
    %s110 = scalar_select %p107, %s108, %s109
    %p113 = pneg %p107
    %p114 = scmp.eq.s32.totalorder %s9, 8
    %p115 = por %p113, %p114
    %p116 = scmp.ne.s32.totalorder %s108, %s111
    %p117 = scmp.eq.s32.totalorder %s9, 0
    %p118 = por %p116, %p117
    %p119 = scmp.ne.s32.totalorder %s108, %s111
    %p120 = scmp.eq.s32.totalorder %s14, 8
    %p121 = por %p119, %p120
    %p122 = scmp.ne.s32.totalorder %s111, %s112
    %p123 = scmp.eq.s32.totalorder %s14, 0
    %p124 = por %p122, %p123
    %p125 = scmp.ne.s32.totalorder %s111, %s112
    %p126 = scmp.eq.s32.totalorder %s15, 8
    %p127 = por %p125, %p126
    %p129 = scmp.ne.s32.totalorder %s112, %s128
    %p130 = scmp.eq.s32.totalorder %s15, 0
    %p131 = por %p129, %p130
    %p132 = scmp.le.s32.totalorder 1, %s9
    %p133 = scmp.lt.s32.totalorder %s9, 10
    %p134 = pnand %p132, %p133
    %p135 = pneg %p134
    // Predicated region
    $region9: #{generator_forward.17} parent=5 // pred_check
      _
    $region10: #{generator_forward.17} parent=5 // pred_check_branch
      %137 = sbr.rel (%p134) target = $region12
    $region11: #{generator_forward.17} parent=5 // pred_region
      %s138 = ssub.s32 %s9, 1
      // Predicated region
      $region13: #{generator_forward.17} parent=11 // pred_check
        %p139 = pneg %p68
      $region14: #{generator_forward.17} parent=11 // pred_check_branch
        %141 = sbr.rel (%p139) target = $region16
      $region15: #{generator_forward.17} parent=11 // pred_region
        _
      $region16: #{generator_forward.17} parent=11 // pred_fallthru
        _
    $region12: #{generator_forward.17} parent=5 // pred_fallthru
      _
    %p142 = scmp.lt.s32.totalorder %s9, 9
    // Predicated region
    $region17: #{generator_forward.17} parent=5 // pred_check
      %p143 = pneg %p142
    $region18: #{generator_forward.17} parent=5 // pred_check_branch
      %145 = sbr.rel (%p143) target = $region20
    $region19: #{generator_forward.17} parent=5 // pred_region
      // Predicated region
      $region21: #{generator_forward.17} parent=19 // pred_check
        %p146 = pneg %p41
      $region22: #{generator_forward.17} parent=19 // pred_check_branch
        %148 = sbr.rel (%p146) target = $region24
      $region23: #{generator_forward.17} parent=19 // pred_region
        %p149 = scmp.lt.s32.totalorder %s16, 8
        %s150 = scalar_select %p149, %s16, 8
        %s151 = smul.addr %s150, 2
        %s152 = scalar_lea.vmem %s0, %s151
      $region24: #{generator_forward.17} parent=19 // pred_fallthru
        _
      // Predicated region
      $region25: #{generator_forward.17} parent=19 // pred_check
        %p153 = pneg %p90
      $region26: #{generator_forward.17} parent=19 // pred_check_branch
        %155 = sbr.rel (%p153) target = $region28
      $region27: #{generator_forward.17} parent=19 // pred_region
        %s156 = smul.u32 16, %s17
        %p157 = scmp.lt.s32.totalorder %s16, 8
        %s158 = scalar_select %p157, %s16, 8
        %p159 = scmp.lt.s32.totalorder %s156, 15
        %s160 = scalar_select %p159, %s156, 15
        %s161 = smul.addr %s158, 64
        %s162 = sadd.s32 %s160, %s161
        %s163 = smul.addr %s162, 4
        %s164 = scalar_lea.vmem %s2, %s163
        %s165 = smul.u32 16, %s17
      $region28: #{generator_forward.17} parent=19 // pred_fallthru
        _
    $region20: #{generator_forward.17} parent=5 // pred_fallthru
      _
    %p166 = scmp.le.s32.totalorder 1, %s9
    %p167 = scmp.lt.s32.totalorder %s9, 10
    %p168 = pnand %p166, %p167
    %p169 = pneg %p168
    // Predicated region
    $region29: #{generator_forward.17} parent=5 // pred_check
      _
    $region30: #{generator_forward.17} parent=5 // pred_check_branch
      %171 = sbr.rel (%p168) target = $region32
    $region31: #{generator_forward.17} parent=5 // pred_region
      %s172 = ssub.s32 %s9, 1
      %p173 = scmp.lt.s32.totalorder %s18, 8
      %s174 = scalar_select %p173, %s18, 8
      %s175 = smul.addr %s174, 2
      %s176 = scalar_lea.vmem %s0, %s175
      %p177 = pneg %p47
      %p178 = pneg %p44
      %p179 = pneg %p68
      %p180 = pneg %p65
      %s181 = smul.u32 16, %s19
      %p182 = scmp.lt.s32.totalorder %s18, 8
      %s183 = scalar_select %p182, %s18, 8
      %p184 = scmp.lt.s32.totalorder %s181, 15
      %s185 = scalar_select %p184, %s181, 15
      %s186 = smul.addr %s183, 64
      %s187 = sadd.s32 %s185, %s186
      %s188 = smul.addr %s187, 4
      %s189 = scalar_lea.vmem %s2, %s188
      %p190 = pneg %p96
      %p191 = pneg %p93
      %p192 = pneg %p124
      %p193 = pneg %p121
      %s194 = smul.u32 16, %s19
      %p195 = scmp.lt.s32.totalorder %s18, 8
      %s196 = scalar_select %p195, %s18, 8
      %p197 = scmp.lt.s32.totalorder %s194, 15
      %s198 = scalar_select %p197, %s194, 15
      %s199 = smul.addr %s196, 16
      %s200 = sadd.s32 %s198, %s199
      %s201 = smul.addr %s200, 4
      %s202 = scalar_lea.vmem %s3, %s201
      %p203 = scmp.lt.s32.totalorder %s18, 8
      %s204 = scalar_select %p203, %s18, 8
      %s205 = smul.addr %s204, 2
      %s206 = scalar_lea.vmem %s0, %s205
      %s207 = smul.u32 16, %s19
      %p208 = scmp.lt.s32.totalorder %s18, 8
      %s209 = scalar_select %p208, %s18, 8
      %p210 = scmp.lt.s32.totalorder %s207, 15
      %s211 = scalar_select %p210, %s207, 15
      %s212 = smul.addr %s209, 64
      %s213 = sadd.s32 %s211, %s212
      %s214 = smul.addr %s213, 4
      %s215 = scalar_lea.vmem %s2, %s214
      %s216 = smul.u32 16, %s19
      %s217 = smul.u32 16, %s19
      %p218 = scmp.lt.s32.totalorder %s18, 8
      %s219 = scalar_select %p218, %s18, 8
      %p220 = scmp.lt.s32.totalorder %s217, 15
      %s221 = scalar_select %p220, %s217, 15
      %s222 = smul.addr %s219, 16
      %s223 = sadd.s32 %s221, %s222
      %s224 = smul.addr %s223, 4
      %s225 = scalar_lea.vmem %s3, %s224
      %s226 = smul.u32 16, %s19
      %v228 = vld [vmem:[%s206] sm:$0x3]
      %v229 = vld [vmem:[%s215] sm:$0xff]
      %v230 = vld [vmem:[%s215 + $0x8] sm:$0xff]
      %v231 = vld [vmem:[%s215 + $0x10] sm:$0xff]
      %v232 = vld [vmem:[%s215 + $0x18] sm:$0xff]
      %v233 = vld [vmem:[%s215 + $0x20] sm:$0xff]
      %v234 = vld [vmem:[%s215 + $0x28] sm:$0xff]
      %v235 = vld [vmem:[%s215 + $0x30] sm:$0xff]
      %v236 = vld [vmem:[%s215 + $0x38] sm:$0xff]
      %v237 = vld [vmem:[%s215 + $0x40] sm:$0xff]
      %v238 = vld [vmem:[%s215 + $0x48] sm:$0xff]
      %v239 = vld [vmem:[%s215 + $0x50] sm:$0xff]
      %v240 = vld [vmem:[%s215 + $0x58] sm:$0xff]
      %v241 = vld [vmem:[%s215 + $0x60] sm:$0xff]
      %v242 = vld [vmem:[%s215 + $0x68] sm:$0xff]
      %v243 = vld [vmem:[%s215 + $0x70] sm:$0xff]
      %v244 = vld [vmem:[%s215 + $0x78] sm:$0xff]
      %v245 = vld [vmem:[%s215 + $0x80] sm:$0xff]
      %v246 = vld [vmem:[%s215 + $0x88] sm:$0xff]
      %v247 = vld [vmem:[%s215 + $0x90] sm:$0xff]
      %v248 = vld [vmem:[%s215 + $0x98] sm:$0xff]
      %v249 = vld [vmem:[%s215 + $0xa0] sm:$0xff]
      %v250 = vld [vmem:[%s215 + $0xa8] sm:$0xff]
      %v251 = vld [vmem:[%s215 + $0xb0] sm:$0xff]
      %v252 = vld [vmem:[%s215 + $0xb8] sm:$0xff]
      %v253 = vld [vmem:[%s215 + $0xc0] sm:$0xff]
      %v254 = vld [vmem:[%s215 + $0xc8] sm:$0xff]
      %v255 = vld [vmem:[%s215 + $0xd0] sm:$0xff]
      %v256 = vld [vmem:[%s215 + $0xd8] sm:$0xff]
      %v257 = vld [vmem:[%s215 + $0xe0] sm:$0xff]
      %v258 = vld [vmem:[%s215 + $0xe8] sm:$0xff]
      %v259 = vld [vmem:[%s215 + $0xf0] sm:$0xff]
      %v260 = vld [vmem:[%s215 + $0xf8] sm:$0xff]
      %v261 = vld [vmem:[%s1] sm:$0x7]
      %263 = vset.pattern.permute.xlu0 0
      %264 = vperm.xlu0 %263, %v261
      %v265 = vpop.permute.xlu0 %264
      %v299 = vunpack.c.l.b16 %v229
      %v300 = vunpack.c.h.b16 %v229
      %v301 = vunpack.c.l.b16 %v230
      %v302 = vunpack.c.h.b16 %v230
      %v303 = vunpack.c.l.b16 %v231
      %v304 = vunpack.c.h.b16 %v231
      %v305 = vunpack.c.l.b16 %v232
      %v306 = vunpack.c.h.b16 %v232
      %v307 = vunpack.c.l.b16 %v233
      %v308 = vunpack.c.h.b16 %v233
      %v309 = vunpack.c.l.b16 %v234
      %v310 = vunpack.c.h.b16 %v234
      %v311 = vunpack.c.l.b16 %v235
      %v312 = vunpack.c.h.b16 %v235
      %v313 = vunpack.c.l.b16 %v236
      %v314 = vunpack.c.h.b16 %v236
      %v315 = vunpack.c.l.b16 %v237
      %v316 = vunpack.c.h.b16 %v237
      %v317 = vunpack.c.l.b16 %v238
      %v318 = vunpack.c.h.b16 %v238
      %v319 = vunpack.c.l.b16 %v239
      %v320 = vunpack.c.h.b16 %v239
      %v321 = vunpack.c.l.b16 %v240
      %v322 = vunpack.c.h.b16 %v240
      %v323 = vunpack.c.l.b16 %v241
      %v324 = vunpack.c.h.b16 %v241
      %v325 = vunpack.c.l.b16 %v242
      %v326 = vunpack.c.h.b16 %v242
      %v327 = vunpack.c.l.b16 %v243
      %v328 = vunpack.c.h.b16 %v243
      %v329 = vunpack.c.l.b16 %v244
      %v330 = vunpack.c.h.b16 %v244
      %v331 = vunpack.c.l.b16 %v245
      %v332 = vunpack.c.h.b16 %v245
      %v333 = vunpack.c.l.b16 %v246
      %v334 = vunpack.c.h.b16 %v246
      %v335 = vunpack.c.l.b16 %v247
      %v336 = vunpack.c.h.b16 %v247
      %v337 = vunpack.c.l.b16 %v248
      %v338 = vunpack.c.h.b16 %v248
      %v339 = vunpack.c.l.b16 %v249
      %v340 = vunpack.c.h.b16 %v249
      %v341 = vunpack.c.l.b16 %v250
      %v342 = vunpack.c.h.b16 %v250
      %v343 = vunpack.c.l.b16 %v251
      %v344 = vunpack.c.h.b16 %v251
      %v345 = vunpack.c.l.b16 %v252
      %v346 = vunpack.c.h.b16 %v252
      %v347 = vunpack.c.l.b16 %v253
      %v348 = vunpack.c.h.b16 %v253
      %v349 = vunpack.c.l.b16 %v254
      %v350 = vunpack.c.h.b16 %v254
      %v351 = vunpack.c.l.b16 %v255
      %v352 = vunpack.c.h.b16 %v255
      %v353 = vunpack.c.l.b16 %v256
      %v354 = vunpack.c.h.b16 %v256
      %v355 = vunpack.c.l.b16 %v257
      %v356 = vunpack.c.h.b16 %v257
      %v357 = vunpack.c.l.b16 %v258
      %v358 = vunpack.c.h.b16 %v258
      %v359 = vunpack.c.l.b16 %v259
      %v360 = vunpack.c.h.b16 %v259
      %v361 = vunpack.c.l.b16 %v260
      %v362 = vunpack.c.h.b16 %v260
      %v363 = vpack.c.b16 %v315, %v299
      %v364 = vpack.c.b16 %v316, %v300
      %v365 = vpack.c.b16 %v317, %v301
      %v366 = vpack.c.b16 %v318, %v302
      %v367 = vpack.c.b16 %v319, %v303
      %v368 = vpack.c.b16 %v320, %v304
      %v369 = vpack.c.b16 %v321, %v305
      %v370 = vpack.c.b16 %v322, %v306
      %v371 = vpack.c.b16 %v323, %v307
      %v372 = vpack.c.b16 %v324, %v308
      %v373 = vpack.c.b16 %v325, %v309
      %v374 = vpack.c.b16 %v326, %v310
      %v375 = vpack.c.b16 %v327, %v311
      %v376 = vpack.c.b16 %v328, %v312
      %v377 = vpack.c.b16 %v329, %v313
      %v378 = vpack.c.b16 %v330, %v314
      %v379 = vpack.c.b16 %v347, %v331
      %v380 = vpack.c.b16 %v348, %v332
      %v381 = vpack.c.b16 %v349, %v333
      %v382 = vpack.c.b16 %v350, %v334
      %v383 = vpack.c.b16 %v351, %v335
      %v384 = vpack.c.b16 %v352, %v336
      %v385 = vpack.c.b16 %v353, %v337
      %v386 = vpack.c.b16 %v354, %v338
      %v387 = vpack.c.b16 %v355, %v339
      %v388 = vpack.c.b16 %v356, %v340
      %v389 = vpack.c.b16 %v357, %v341
      %v390 = vpack.c.b16 %v358, %v342
      %v391 = vpack.c.b16 %v359, %v343
      %v392 = vpack.c.b16 %v360, %v344
      %v393 = vpack.c.b16 %v361, %v345
      %v394 = vpack.c.b16 %v362, %v346
      %vm427 = vcmask 261120
      %v429 = vsel %vm427, %v228, 0
      %431 = vmatpush.bf16.msra.mxu0 0
      %432 = vmatpush.bf16.msra.mxu0 0
      %433 = vmatpush.bf16.msra.mxu0 0
      %434 = vmatpush.bf16.msra.mxu0 0
      %435 = vmatpush.bf16.msra.mxu0 0
      %436 = vmatpush.bf16.msra.mxu0 0
      %437 = vmatpush.bf16.msra.mxu0 %v379
      %438 = vmatpush.bf16.msra.mxu0 %v363
      %439 = vmatmul.bf16.gmra.mxu0 %v429
      %v440 = vpop.f32.mrf.mxu0
      %v441 = vadd.f32 %v265, %v440
      %v442 = vpop.f32.mrf.mxu0
      %443 = vdwg.mxu0
      %444 = vmatpush.bf16.msra.mxu0 0
      %445 = vmatpush.bf16.msra.mxu0 0
      %446 = vmatpush.bf16.msra.mxu0 0
      %447 = vmatpush.bf16.msra.mxu0 0
      %448 = vmatpush.bf16.msra.mxu0 0
      %449 = vmatpush.bf16.msra.mxu0 0
      %450 = vmatpush.bf16.msra.mxu0 %v380
      %451 = vmatpush.bf16.msra.mxu0 %v364
      %452 = vmatmul.bf16.gmra.mxu0 %v429
      %v453 = vpop.f32.mrf.mxu0
      %v454 = vadd.f32 %v265, %v453
      %v455 = vpop.f32.mrf.mxu0
      %456 = vdwg.mxu0
      %457 = vmatpush.bf16.msra.mxu0 0
      %458 = vmatpush.bf16.msra.mxu0 0
      %459 = vmatpush.bf16.msra.mxu0 0
      %460 = vmatpush.bf16.msra.mxu0 0
      %461 = vmatpush.bf16.msra.mxu0 0
      %462 = vmatpush.bf16.msra.mxu0 0
      %463 = vmatpush.bf16.msra.mxu0 %v381
      %464 = vmatpush.bf16.msra.mxu0 %v365
      %465 = vmatmul.bf16.gmra.mxu0 %v429
      %v466 = vpop.f32.mrf.mxu0
      %v467 = vadd.f32 %v265, %v466
      %v468 = vpop.f32.mrf.mxu0
      %469 = vdwg.mxu0
      %470 = vmatpush.bf16.msra.mxu0 0
      %471 = vmatpush.bf16.msra.mxu0 0
      %472 = vmatpush.bf16.msra.mxu0 0
      %473 = vmatpush.bf16.msra.mxu0 0
      %474 = vmatpush.bf16.msra.mxu0 0
      %475 = vmatpush.bf16.msra.mxu0 0
      %476 = vmatpush.bf16.msra.mxu0 %v382
      %477 = vmatpush.bf16.msra.mxu0 %v366
      %478 = vmatmul.bf16.gmra.mxu0 %v429
      %v479 = vpop.f32.mrf.mxu0
      %v480 = vadd.f32 %v265, %v479
      %v481 = vpop.f32.mrf.mxu0
      %482 = vdwg.mxu0
      %483 = vmatpush.bf16.msra.mxu0 0
      %484 = vmatpush.bf16.msra.mxu0 0
      %485 = vmatpush.bf16.msra.mxu0 0
      %486 = vmatpush.bf16.msra.mxu0 0
      %487 = vmatpush.bf16.msra.mxu0 0
      %488 = vmatpush.bf16.msra.mxu0 0
      %489 = vmatpush.bf16.msra.mxu0 %v383
      %490 = vmatpush.bf16.msra.mxu0 %v367
      %491 = vmatmul.bf16.gmra.mxu0 %v429
      %v492 = vpop.f32.mrf.mxu0
      %v493 = vadd.f32 %v265, %v492
      %v494 = vpop.f32.mrf.mxu0
      %495 = vdwg.mxu0
      %496 = vmatpush.bf16.msra.mxu0 0
      %497 = vmatpush.bf16.msra.mxu0 0
      %498 = vmatpush.bf16.msra.mxu0 0
      %499 = vmatpush.bf16.msra.mxu0 0
      %500 = vmatpush.bf16.msra.mxu0 0
      %501 = vmatpush.bf16.msra.mxu0 0
      %502 = vmatpush.bf16.msra.mxu0 %v384
      %503 = vmatpush.bf16.msra.mxu0 %v368
      %504 = vmatmul.bf16.gmra.mxu0 %v429
      %v505 = vpop.f32.mrf.mxu0
      %v506 = vadd.f32 %v265, %v505
      %v507 = vpop.f32.mrf.mxu0
      %508 = vdwg.mxu0
      %509 = vmatpush.bf16.msra.mxu0 0
      %510 = vmatpush.bf16.msra.mxu0 0
      %511 = vmatpush.bf16.msra.mxu0 0
      %512 = vmatpush.bf16.msra.mxu0 0
      %513 = vmatpush.bf16.msra.mxu0 0
      %514 = vmatpush.bf16.msra.mxu0 0
      %515 = vmatpush.bf16.msra.mxu0 %v385
      %516 = vmatpush.bf16.msra.mxu0 %v369
      %517 = vmatmul.bf16.gmra.mxu0 %v429
      %v518 = vpop.f32.mrf.mxu0
      %v519 = vadd.f32 %v265, %v518
      %v520 = vpop.f32.mrf.mxu0
      %521 = vdwg.mxu0
      %522 = vmatpush.bf16.msra.mxu0 0
      %523 = vmatpush.bf16.msra.mxu0 0
      %524 = vmatpush.bf16.msra.mxu0 0
      %525 = vmatpush.bf16.msra.mxu0 0
      %526 = vmatpush.bf16.msra.mxu0 0
      %527 = vmatpush.bf16.msra.mxu0 0
      %528 = vmatpush.bf16.msra.mxu0 %v386
      %529 = vmatpush.bf16.msra.mxu0 %v370
      %530 = vmatmul.bf16.gmra.mxu0 %v429
      %v531 = vpop.f32.mrf.mxu0
      %v532 = vadd.f32 %v265, %v531
      %v533 = vpop.f32.mrf.mxu0
      %534 = vdwg.mxu0
      %535 = vmatpush.bf16.msra.mxu0 0
      %536 = vmatpush.bf16.msra.mxu0 0
      %537 = vmatpush.bf16.msra.mxu0 0
      %538 = vmatpush.bf16.msra.mxu0 0
      %539 = vmatpush.bf16.msra.mxu0 0
      %540 = vmatpush.bf16.msra.mxu0 0
      %541 = vmatpush.bf16.msra.mxu0 %v387
      %542 = vmatpush.bf16.msra.mxu0 %v371
      %543 = vmatmul.bf16.gmra.mxu0 %v429
      %v544 = vpop.f32.mrf.mxu0
      %v545 = vadd.f32 %v265, %v544
      %v546 = vpop.f32.mrf.mxu0
      %547 = vdwg.mxu0
      %548 = vmatpush.bf16.msra.mxu0 0
      %549 = vmatpush.bf16.msra.mxu0 0
      %550 = vmatpush.bf16.msra.mxu0 0
      %551 = vmatpush.bf16.msra.mxu0 0
      %552 = vmatpush.bf16.msra.mxu0 0
      %553 = vmatpush.bf16.msra.mxu0 0
      %554 = vmatpush.bf16.msra.mxu0 %v388
      %555 = vmatpush.bf16.msra.mxu0 %v372
      %556 = vmatmul.bf16.gmra.mxu0 %v429
      %v557 = vpop.f32.mrf.mxu0
      %v558 = vadd.f32 %v265, %v557
      %v559 = vpop.f32.mrf.mxu0
      %560 = vdwg.mxu0
      %561 = vmatpush.bf16.msra.mxu0 0
      %562 = vmatpush.bf16.msra.mxu0 0
      %563 = vmatpush.bf16.msra.mxu0 0
      %564 = vmatpush.bf16.msra.mxu0 0
      %565 = vmatpush.bf16.msra.mxu0 0
      %566 = vmatpush.bf16.msra.mxu0 0
      %567 = vmatpush.bf16.msra.mxu0 %v389
      %568 = vmatpush.bf16.msra.mxu0 %v373
      %569 = vmatmul.bf16.gmra.mxu0 %v429
      %v570 = vpop.f32.mrf.mxu0
      %v571 = vadd.f32 %v265, %v570
      %v572 = vpop.f32.mrf.mxu0
      %573 = vdwg.mxu0
      %574 = vmatpush.bf16.msra.mxu0 0
      %575 = vmatpush.bf16.msra.mxu0 0
      %576 = vmatpush.bf16.msra.mxu0 0
      %577 = vmatpush.bf16.msra.mxu0 0
      %578 = vmatpush.bf16.msra.mxu0 0
      %579 = vmatpush.bf16.msra.mxu0 0
      %580 = vmatpush.bf16.msra.mxu0 %v390
      %581 = vmatpush.bf16.msra.mxu0 %v374
      %582 = vmatmul.bf16.gmra.mxu0 %v429
      %v583 = vpop.f32.mrf.mxu0
      %v584 = vadd.f32 %v265, %v583
      %v585 = vpop.f32.mrf.mxu0
      %586 = vdwg.mxu0
      %587 = vmatpush.bf16.msra.mxu0 0
      %588 = vmatpush.bf16.msra.mxu0 0
      %589 = vmatpush.bf16.msra.mxu0 0
      %590 = vmatpush.bf16.msra.mxu0 0
      %591 = vmatpush.bf16.msra.mxu0 0
      %592 = vmatpush.bf16.msra.mxu0 0
      %593 = vmatpush.bf16.msra.mxu0 %v391
      %594 = vmatpush.bf16.msra.mxu0 %v375
      %595 = vmatmul.bf16.gmra.mxu0 %v429
      %v596 = vpop.f32.mrf.mxu0
      %v597 = vadd.f32 %v265, %v596
      %v598 = vpop.f32.mrf.mxu0
      %599 = vdwg.mxu0
      %600 = vmatpush.bf16.msra.mxu0 0
      %601 = vmatpush.bf16.msra.mxu0 0
      %602 = vmatpush.bf16.msra.mxu0 0
      %603 = vmatpush.bf16.msra.mxu0 0
      %604 = vmatpush.bf16.msra.mxu0 0
      %605 = vmatpush.bf16.msra.mxu0 0
      %606 = vmatpush.bf16.msra.mxu0 %v392
      %607 = vmatpush.bf16.msra.mxu0 %v376
      %608 = vmatmul.bf16.gmra.mxu0 %v429
      %v609 = vpop.f32.mrf.mxu0
      %v610 = vadd.f32 %v265, %v609
      %v611 = vpop.f32.mrf.mxu0
      %612 = vdwg.mxu0
      %613 = vmatpush.bf16.msra.mxu0 0
      %614 = vmatpush.bf16.msra.mxu0 0
      %615 = vmatpush.bf16.msra.mxu0 0
      %616 = vmatpush.bf16.msra.mxu0 0
      %617 = vmatpush.bf16.msra.mxu0 0
      %618 = vmatpush.bf16.msra.mxu0 0
      %619 = vmatpush.bf16.msra.mxu0 %v393
      %620 = vmatpush.bf16.msra.mxu0 %v377
      %621 = vmatmul.bf16.gmra.mxu0 %v429
      %v622 = vpop.f32.mrf.mxu0
      %v623 = vadd.f32 %v265, %v622
      %v624 = vpop.f32.mrf.mxu0
      %625 = vdwg.mxu0
      %626 = vmatpush.bf16.msra.mxu0 0
      %627 = vmatpush.bf16.msra.mxu0 0
      %628 = vmatpush.bf16.msra.mxu0 0
      %629 = vmatpush.bf16.msra.mxu0 0
      %630 = vmatpush.bf16.msra.mxu0 0
      %631 = vmatpush.bf16.msra.mxu0 0
      %632 = vmatpush.bf16.msra.mxu0 %v394
      %633 = vmatpush.bf16.msra.mxu0 %v378
      %634 = vmatmul.bf16.gmra.mxu0 %v429
      %v635 = vpop.f32.mrf.mxu0
      %v636 = vadd.f32 %v265, %v635
      %v637 = vpop.f32.mrf.mxu0
      %638 = vdwg.mxu0
      %v639 = vtanh.pop %v441
      %v640 = vtanh.pop %v454
      %v641 = vtanh.pop %v467
      %v642 = vtanh.pop %v480
      %v643 = vtanh.pop %v493
      %v644 = vtanh.pop %v506
      %v645 = vtanh.pop %v519
      %v646 = vtanh.pop %v532
      %v647 = vtanh.pop %v545
      %v648 = vtanh.pop %v558
      %v649 = vtanh.pop %v571
      %v650 = vtanh.pop %v584
      %v651 = vtanh.pop %v597
      %v652 = vtanh.pop %v610
      %v653 = vtanh.pop %v623
      %v654 = vtanh.pop %v636
      %v671 = vrot.slane %v640, 4
      %v672 = vrot.slane %v642, 4
      %v673 = vrot.slane %v644, 4
      %v674 = vrot.slane %v646, 4
      %v675 = vrot.slane %v648, 4
      %v676 = vrot.slane %v650, 4
      %v677 = vrot.slane %v652, 4
      %v678 = vrot.slane %v654, 4
      %vm679 = vcmask 1043456
      %v680 = vsel %vm679, %v639, %v671
      %v681 = vsel %vm679, %v641, %v672
      %v682 = vsel %vm679, %v643, %v673
      %v683 = vsel %vm679, %v645, %v674
      %v684 = vsel %vm679, %v647, %v675
      %v685 = vsel %vm679, %v649, %v676
      %v686 = vsel %vm679, %v651, %v677
      %v687 = vsel %vm679, %v653, %v678
      %696 = vst [vmem:[%s225] sm:$0x77] %v680
      %697 = vst [vmem:[%s225 + $0x8] sm:$0x77] %v681
      %698 = vst [vmem:[%s225 + $0x10] sm:$0x77] %v682
      %699 = vst [vmem:[%s225 + $0x18] sm:$0x77] %v683
      %700 = vst [vmem:[%s225 + $0x20] sm:$0x77] %v684
      %701 = vst [vmem:[%s225 + $0x28] sm:$0x77] %v685
      %702 = vst [vmem:[%s225 + $0x30] sm:$0x77] %v686
      %703 = vst [vmem:[%s225 + $0x38] sm:$0x77] %v687
      %s704 = smul.u32 16, %s19
      %p705 = scmp.lt.s32.totalorder %s18, 8
      %s706 = scalar_select %p705, %s18, 8
      %p707 = scmp.lt.s32.totalorder %s704, 15
      %s708 = scalar_select %p707, %s704, 15
      %s709 = smul.addr %s706, 16
      %s710 = sadd.s32 %s708, %s709
      %s711 = smul.addr %s710, 4
      %s712 = scalar_lea.vmem %s3, %s711
      // Predicated region
      $region33: #{generator_forward.17} parent=31 // pred_check
        %p713 = pneg %p121
      $region34: #{generator_forward.17} parent=31 // pred_check_branch
        %715 = sbr.rel (%p713) target = $region36
      $region35: #{generator_forward.17} parent=31 // pred_region
        %s716 = smul.u32 16, %s19
      $region36: #{generator_forward.17} parent=31 // pred_fallthru
        _
    $region32: #{generator_forward.17} parent=5 // pred_fallthru
      _
    %p717 = scmp.le.s32.totalorder 2, %s9
    // Predicated region
    $region37: #{generator_forward.17} parent=5 // pred_check
      %p718 = pneg %p717
    $region38: #{generator_forward.17} parent=5 // pred_check_branch
      %720 = sbr.rel (%p718) target = $region40
    $region39: #{generator_forward.17} parent=5 // pred_region
      %s721 = ssub.s32 %s9, 2
      // Predicated region
      $region41: #{generator_forward.17} parent=39 // pred_check
        %p722 = pneg %p127
      $region42: #{generator_forward.17} parent=39 // pred_check_branch
        %724 = sbr.rel (%p722) target = $region44
      $region43: #{generator_forward.17} parent=39 // pred_region
        %s725 = smul.u32 16, %s21
        %p726 = scmp.lt.s32.totalorder %s20, 8
        %s727 = scalar_select %p726, %s20, 8
        %p728 = scmp.lt.s32.totalorder %s725, 15
        %s729 = scalar_select %p728, %s725, 15
        %s730 = smul.addr %s727, 16
        %s731 = sadd.s32 %s729, %s730
        %s732 = smul.addr %s731, 4
        %s733 = scalar_lea.vmem %s3, %s732
      $region44: #{generator_forward.17} parent=39 // pred_fallthru
        _
    $region40: #{generator_forward.17} parent=5 // pred_fallthru
      _
  $region6: #{generator_forward.17} parent=0 // loop_footer
    %s13 = sadd.s32 1, %s9
  $region7: #{generator_forward.17} parent=0 // loop_footer_branch
    %8 = sbr.rel target = $region3
  $region8: #{generator_forward.17} parent=0 // loop_exit
    _

</llo_original>
